<compile_context>
chip_gen: v6e
topology: v6e:2x2x1
jax: 0.10.0
libtpu: 0.0.40
codegen_flags: <defaults>
</compile_context>

<pallas_src>
import numpy as np

import jax
import jax.numpy as jnp
from jax import lax
from jax.experimental import pallas as pl
from jax.experimental.pallas import tpu as pltpu


# ------------------------------ fused kernel --------------------------------

def _net_kernel(x_ref, band1_ref, b1_ref, band2_ref, b2_ref,
                fc1w_ref, fc1b_ref, fc2w_ref, fc2b_ref,
                out_ref, c1_scr, p1_scr, c2_scr, p2_scr):
    """Whole Net forward for one batch tile, fully VMEM-resident.

    x_ref    : (TB, 28, 28)      raw input images
    band1_ref: (2, 5, 28, 120)   conv1 banded weights [dj, kh, iw, c*12+ow]
    b1_ref   : (1, 120)          conv1 bias repeated per pooled column
    band2_ref: (2, 5, 120, 80)   conv2 banded weights [dj, kh, ci*12+iw, co*4+ow]
    b2_ref   : (1, 80)
    fc1w_ref : (4, 80, 50)       fc1 weights with NCHW flatten folded in
    fc1b_ref : (1, 50)
    fc2w_ref : (50, 10)
    fc2b_ref : (1, 10)
    out_ref  : (TB, 10)
    c1_scr   : VMEM (TB, 24, 120)  conv1, column-pooled, pre row-pool
    p1_scr   : VMEM (TB, 12, 120)  relu(maxpool(conv1)+b1), lanes = c*12+ow
    c2_scr   : VMEM (TB, 8, 80)    conv2, column-pooled, pre row-pool
    p2_scr   : VMEM (TB, 4, 80)    relu(maxpool(conv2)+b2), lanes = co*4+ow
    """
    TB = x_ref.shape[0]

    # ---- Stage 1: conv1 (5x5, 1->10) as banded MXU matmuls ------------------
    # acc_e / acc_o hold the even / odd output columns; max(acc_e, acc_o) IS
    # the horizontal half of the 2x2 max-pool (bias is per-channel constant,
    # so it is added after the max).
    acc_e = jnp.zeros((TB * 24, 120), jnp.float32)
    acc_o = jnp.zeros((TB * 24, 120), jnp.float32)
    for kh in range(5):
        rows = x_ref[:, kh:kh + 24, :].reshape(TB * 24, 28)
        acc_e = acc_e + jnp.dot(rows, band1_ref[0, kh],
                                preferred_element_type=jnp.float32)
        acc_o = acc_o + jnp.dot(rows, band1_ref[1, kh],
                                preferred_element_type=jnp.float32)
    c1_scr[...] = jnp.maximum(acc_e, acc_o).reshape(TB, 24, 120)

    # Vertical half of the max-pool: stride-2 sublane reads from scratch.
    r_even = c1_scr[:, pl.ds(0, 12, stride=2), :]
    r_odd = c1_scr[:, pl.ds(1, 12, stride=2), :]
    p1_scr[...] = jnp.maximum(
        jnp.maximum(r_even, r_odd) + b1_ref[...].reshape(1, 1, 120), 0.0)

    # ---- Stage 2: conv2 (5x5, 10->20) as banded MXU matmuls ------------------
    # Contract over the 120-wide (cin, width) lane axis of p1.
    acc_e = jnp.zeros((TB * 8, 80), jnp.float32)
    acc_o = jnp.zeros((TB * 8, 80), jnp.float32)
    for kh in range(5):
        rows = p1_scr[:, kh:kh + 8, :].reshape(TB * 8, 120)
        acc_e = acc_e + jnp.dot(rows, band2_ref[0, kh],
                                preferred_element_type=jnp.float32)
        acc_o = acc_o + jnp.dot(rows, band2_ref[1, kh],
                                preferred_element_type=jnp.float32)
    c2_scr[...] = jnp.maximum(acc_e, acc_o).reshape(TB, 8, 80)

    r_even = c2_scr[:, pl.ds(0, 4, stride=2), :]
    r_odd = c2_scr[:, pl.ds(1, 4, stride=2), :]
    p2_scr[...] = jnp.maximum(
        jnp.maximum(r_even, r_odd) + b2_ref[...].reshape(1, 1, 80), 0.0)

    # ---- Stage 3: fc1 + ReLU, fc2 (flatten folded into fc1 weights) ----------
    h = jnp.zeros((TB, 50), jnp.float32)
    for oh in range(4):
        h = h + jnp.dot(p2_scr[:, oh, :], fc1w_ref[oh],
                        preferred_element_type=jnp.float32)
    h = jnp.maximum(h + fc1b_ref[...], 0.0)
    out = jnp.dot(h, fc2w_ref[...], preferred_element_type=jnp.float32)
    out_ref[...] = (out + fc2b_ref[...]).astype(out_ref.dtype)


# ------------------------------ wrapper --------------------------------------

@jax.jit
def net_forward(x_nchw, kp):
    """x_nchw: (B, 1, 28, 28) float32; kp: kernel-layout params (prepare_params)."""
    B, C, H, W = x_nchw.shape
    assert C == 1 and H == 28 and W == 28, "Net expects (B, 1, 28, 28) input"

    x = x_nchw[:, 0]                               # (B, 28, 28)
    TB = B if B <= 8 else 8                        # batch tile per grid step
    nb = pl.cdiv(B, TB)
    Bp = nb * TB
    if Bp != B:
        x = jnp.pad(x, ((0, Bp - B), (0, 0), (0, 0)))

    def rep(shape):                                # weights: resident across grid
        return pl.BlockSpec(shape, lambda i, n=len(shape): (0,) * n)

    out = pl.pallas_call(
        _net_kernel,
        out_shape=jax.ShapeDtypeStruct((Bp, 10), jnp.float32),
        grid=(nb,),
        in_specs=[
            pl.BlockSpec((TB, 28, 28), lambda i: (i, 0, 0)),   # images
            rep((2, 5, 28, 120)),                              # band1
            rep((1, 120)),                                     # b1 (repeated)
            rep((2, 5, 120, 80)),                              # band2
            rep((1, 80)),                                      # b2 (repeated)
            rep((4, 80, 50)),                                  # fc1 weights
            rep((1, 50)),                                      # fc1 bias
            rep((50, 10)),                                     # fc2 weights
            rep((1, 10)),                                      # fc2 bias
        ],
        out_specs=pl.BlockSpec((TB, 10), lambda i: (i, 0)),
        scratch_shapes=[
            pltpu.VMEM((TB, 24, 120), jnp.float32),            # conv1 col-pooled
            pltpu.VMEM((TB, 12, 120), jnp.float32),            # p1
            pltpu.VMEM((TB, 8, 80), jnp.float32),              # conv2 col-pooled
            pltpu.VMEM((TB, 4, 80), jnp.float32),              # p2
        ],
        compiler_params=pltpu.CompilerParams(
            dimension_semantics=("parallel",),
            vmem_limit_bytes=32 * 1024 * 1024,
        ),
    )(x, kp["band1"], kp["b1"], kp["band2"], kp["b2"],
      kp["fc1w"], kp["fc1b"], kp["fc2w"], kp["fc2b"])
    return out[:B]


def prepare_params(p):
    """One-time conversion of PyTorch-layout params to banded kernel layouts."""
    w1 = np.asarray(p["conv1_w"], np.float32)        # (10, 1, 5, 5)
    w2 = np.asarray(p["conv2_w"], np.float32)        # (20, 10, 5, 5)

    # band1[dj, kh, iw, c*12+ow] = w1[c, 0, kh, iw - (2*ow+dj)]  (0 <= . < 5)
    band1 = np.zeros((2, 5, 28, 120), np.float32)
    for dj in range(2):
        for kh in range(5):
            for c in range(10):
                for ow in range(12):
                    j0 = 2 * ow + dj
                    band1[dj, kh, j0:j0 + 5, c * 12 + ow] = w1[c, 0, kh, :]

    # band2[dj, kh, ci*12+iw, co*4+ow] = w2[co, ci, kh, iw - (2*ow+dj)]
    band2 = np.zeros((2, 5, 120, 80), np.float32)
    for dj in range(2):
        for kh in range(5):
            for co in range(20):
                for ci in range(10):
                    for ow in range(4):
                        j0 = 2 * ow + dj
                        band2[dj, kh, ci * 12 + j0:ci * 12 + j0 + 5,
                              co * 4 + ow] = w2[co, ci, kh, :]

    # Fold torch's NCHW x.view(-1, 320) order into fc1:
    # kernel layout is [oh][co*4+ow, out] <-> torch flat index co*16 + oh*4 + ow.
    fc1 = np.asarray(p["fc1_w"], np.float32).reshape(50, 20, 4, 4)  # [o, co, oh, ow]
    fc1 = np.transpose(fc1, (2, 1, 3, 0)).reshape(4, 80, 50)        # [oh, co*4+ow, o]

    return {
        "band1": jnp.asarray(band1),
        "b1": jnp.asarray(np.repeat(np.asarray(p["conv1_b"], np.float32), 12)
                          .reshape(1, 120)),
        "band2": jnp.asarray(band2),
        "b2": jnp.asarray(np.repeat(np.asarray(p["conv2_b"], np.float32), 4)
                          .reshape(1, 80)),
        "fc1w": jnp.asarray(fc1),
        "fc1b": jnp.asarray(np.asarray(p["fc1_b"], np.float32).reshape(1, 50)),
        "fc2w": jnp.asarray(np.asarray(p["fc2_w"], np.float32).T.copy()),
        "fc2b": jnp.asarray(np.asarray(p["fc2_b"], np.float32).reshape(1, 10)),
    }


def init_params(key):
    """Deterministic init in PyTorch-native layouts (OIHW conv, (out,in) linear)."""
    ks = jax.random.split(key, 8)

    def u(k, shape, fan_in):
        bound = 1.0 / float(fan_in) ** 0.5
        return jax.random.uniform(k, shape, jnp.float32, -bound, bound)

    return {
        "conv1_w": u(ks[0], (10, 1, 5, 5), 25),
        "conv1_b": u(ks[1], (10,), 25),
        "conv2_w": u(ks[2], (20, 10, 5, 5), 250),
        "conv2_b": u(ks[3], (20,), 250),
        "fc1_w": u(ks[4], (50, 320), 320),
        "fc1_b": u(ks[5], (50,), 320),
        "fc2_w": u(ks[6], (10, 50), 50),
        "fc2_b": u(ks[7], (10,), 50),
    }


def reference_forward(x, p):
    """Pure-JAX (XLA) reference with PyTorch semantics, for a numeric check."""
    B = x.shape[0]
    hi = lax.Precision.HIGHEST
    y = lax.conv_general_dilated(
        x, p["conv1_w"], (1, 1), "VALID",
        dimension_numbers=("NCHW", "OIHW", "NCHW"), precision=hi)
    y = y + p["conv1_b"].reshape(1, -1, 1, 1)
    y = jnp.max(y.reshape(B, 10, 12, 2, 12, 2), axis=(3, 5))
    y = jnp.maximum(y, 0.0)
    y = lax.conv_general_dilated(
        y, p["conv2_w"], (1, 1), "VALID",
        dimension_numbers=("NCHW", "OIHW", "NCHW"), precision=hi)
    y = y + p["conv2_b"].reshape(1, -1, 1, 1)
    y = jnp.max(y.reshape(B, 20, 4, 2, 4, 2), axis=(3, 5))
    y = jnp.maximum(y, 0.0)
    y = y.reshape(B, 320)
    y = jnp.maximum(jnp.dot(y, p["fc1_w"].T, precision=hi) + p["fc1_b"], 0.0)
    return jnp.dot(y, p["fc2_w"].T, precision=hi) + p["fc2_b"]


if __name__ == "__main__":
    key = jax.random.PRNGKey(0)
    kx, kw = jax.random.split(key)
    x = jax.random.normal(kx, (2, 1, 28, 28), jnp.float32)   # NCHW, like torch
    params = init_params(kw)
    kparams = prepare_params(params)          # one-time layout prep (outside jit)

    out = jax.block_until_ready(net_forward(x, kparams))
    assert out.shape == (2, 10) and out.dtype == jnp.float32

    ref = jax.block_until_ready(reference_forward(x, params))
    err = float(jnp.max(jnp.abs(out - ref)))
    assert err < 2e-3, "max abs err = %g" % err
    print("KERNEL_OK")
</pallas_src>

<mosaic_0001>
module attributes {stable_mosaic.version = 11 : i64} {
  func.func @_net_kernel(%arg0: i32, %arg1: memref<2x28x28xf32, #tpu.memory_space<vmem>>, %arg2: memref<2x5x28x120xf32, #tpu.memory_space<vmem>>, %arg3: memref<1x120xf32, #tpu.memory_space<vmem>>, %arg4: memref<2x5x120x80xf32, #tpu.memory_space<vmem>>, %arg5: memref<1x80xf32, #tpu.memory_space<vmem>>, %arg6: memref<4x80x50xf32, #tpu.memory_space<vmem>>, %arg7: memref<1x50xf32, #tpu.memory_space<vmem>>, %arg8: memref<50x10xf32, #tpu.memory_space<vmem>>, %arg9: memref<1x10xf32, #tpu.memory_space<vmem>>, %arg10: memref<2x10xf32, #tpu.memory_space<vmem>>, %arg11: memref<2x24x120xf32, #tpu.memory_space<vmem>>, %arg12: memref<2x12x120xf32, #tpu.memory_space<vmem>>, %arg13: memref<2x8x80xf32, #tpu.memory_space<vmem>>, %arg14: memref<2x4x80xf32, #tpu.memory_space<vmem>>) attributes {dimension_semantics = [#tpu.dimension_semantics<parallel>], iteration_bounds = array<i64: 1>, scalar_prefetch = 0 : i64, scratch_operands = 4 : i64, tpu.core_type = #tpu.core_type<tc>, window_params = [{transform_indices = @transform_0, window_bounds = array<i64: 2, 28, 28>}, {pipeline_mode = #tpu.pipeline_mode<synchronous>, transform_indices = @transform_1, window_bounds = array<i64: 2, 5, 28, 120>}, {pipeline_mode = #tpu.pipeline_mode<synchronous>, transform_indices = @transform_2, window_bounds = array<i64: 1, 120>}, {pipeline_mode = #tpu.pipeline_mode<synchronous>, transform_indices = @transform_3, window_bounds = array<i64: 2, 5, 120, 80>}, {pipeline_mode = #tpu.pipeline_mode<synchronous>, transform_indices = @transform_4, window_bounds = array<i64: 1, 80>}, {pipeline_mode = #tpu.pipeline_mode<synchronous>, transform_indices = @transform_5, window_bounds = array<i64: 4, 80, 50>}, {pipeline_mode = #tpu.pipeline_mode<synchronous>, transform_indices = @transform_6, window_bounds = array<i64: 1, 50>}, {pipeline_mode = #tpu.pipeline_mode<synchronous>, transform_indices = @transform_7, window_bounds = array<i64: 50, 10>}, {pipeline_mode = #tpu.pipeline_mode<synchronous>, transform_indices = @transform_8, window_bounds = array<i64: 1, 10>}, {transform_indices = @transform_9, window_bounds = array<i64: 2, 10>}]} {
    %cst = arith.constant 0.000000e+00 : f32
    %0 = vector.broadcast %cst : f32 to vector<48x120xf32>
    %cst_0 = arith.constant 0.000000e+00 : f32
    %1 = vector.broadcast %cst_0 : f32 to vector<48x120xf32>
    %c0 = arith.constant 0 : index
    %c0_1 = arith.constant 0 : index
    %c0_2 = arith.constant 0 : index
    %2 = vector.load %arg1[%c0, %c0_1, %c0_2] : memref<2x28x28xf32, #tpu.memory_space<vmem>>, vector<2x24x28xf32>
    %3 = vector.shape_cast %2 : vector<2x24x28xf32> to vector<48x28xf32>
    %c0_3 = arith.constant 0 : index
    %c0_4 = arith.constant 0 : index
    %c0_5 = arith.constant 0 : index
    %c0_6 = arith.constant 0 : index
    %4 = vector.load %arg2[%c0_3, %c0_4, %c0_5, %c0_6] : memref<2x5x28x120xf32, #tpu.memory_space<vmem>>, vector<1x1x28x120xf32>
    %5 = vector.shape_cast %4 : vector<1x1x28x120xf32> to vector<28x120xf32>
    %cst_7 = arith.constant dense<0.000000e+00> : vector<48x120xf32>
    %6 = tpu.matmul %3, %5, %cst_7 {dimension_numbers = #tpu.dot_dimension_numbers<[1], [0], [0], [1], [0, 0, 1, 1], [], []>} : vector<48x28xf32>, vector<28x120xf32>, vector<48x120xf32> -> vector<48x120xf32>
    %7 = arith.addf %0, %6 : vector<48x120xf32>
    %c1 = arith.constant 1 : index
    %c0_8 = arith.constant 0 : index
    %c0_9 = arith.constant 0 : index
    %c0_10 = arith.constant 0 : index
    %8 = vector.load %arg2[%c1, %c0_8, %c0_9, %c0_10] : memref<2x5x28x120xf32, #tpu.memory_space<vmem>>, vector<1x1x28x120xf32>
    %9 = vector.shape_cast %8 : vector<1x1x28x120xf32> to vector<28x120xf32>
    %cst_11 = arith.constant dense<0.000000e+00> : vector<48x120xf32>
    %10 = tpu.matmul %3, %9, %cst_11 {dimension_numbers = #tpu.dot_dimension_numbers<[1], [0], [0], [1], [0, 0, 1, 1], [], []>} : vector<48x28xf32>, vector<28x120xf32>, vector<48x120xf32> -> vector<48x120xf32>
    %11 = arith.addf %1, %10 : vector<48x120xf32>
    %c0_12 = arith.constant 0 : index
    %c1_13 = arith.constant 1 : index
    %c0_14 = arith.constant 0 : index
    %12 = vector.load %arg1[%c0_12, %c1_13, %c0_14] : memref<2x28x28xf32, #tpu.memory_space<vmem>>, vector<2x24x28xf32>
    %13 = vector.shape_cast %12 : vector<2x24x28xf32> to vector<48x28xf32>
    %c0_15 = arith.constant 0 : index
    %c1_16 = arith.constant 1 : index
    %c0_17 = arith.constant 0 : index
    %c0_18 = arith.constant 0 : index
    %14 = vector.load %arg2[%c0_15, %c1_16, %c0_17, %c0_18] : memref<2x5x28x120xf32, #tpu.memory_space<vmem>>, vector<1x1x28x120xf32>
    %15 = vector.shape_cast %14 : vector<1x1x28x120xf32> to vector<28x120xf32>
    %cst_19 = arith.constant dense<0.000000e+00> : vector<48x120xf32>
    %16 = tpu.matmul %13, %15, %cst_19 {dimension_numbers = #tpu.dot_dimension_numbers<[1], [0], [0], [1], [0, 0, 1, 1], [], []>} : vector<48x28xf32>, vector<28x120xf32>, vector<48x120xf32> -> vector<48x120xf32>
    %17 = arith.addf %7, %16 : vector<48x120xf32>
    %c1_20 = arith.constant 1 : index
    %c1_21 = arith.constant 1 : index
    %c0_22 = arith.constant 0 : index
    %c0_23 = arith.constant 0 : index
    %18 = vector.load %arg2[%c1_20, %c1_21, %c0_22, %c0_23] : memref<2x5x28x120xf32, #tpu.memory_space<vmem>>, vector<1x1x28x120xf32>
    %19 = vector.shape_cast %18 : vector<1x1x28x120xf32> to vector<28x120xf32>
    %cst_24 = arith.constant dense<0.000000e+00> : vector<48x120xf32>
    %20 = tpu.matmul %13, %19, %cst_24 {dimension_numbers = #tpu.dot_dimension_numbers<[1], [0], [0], [1], [0, 0, 1, 1], [], []>} : vector<48x28xf32>, vector<28x120xf32>, vector<48x120xf32> -> vector<48x120xf32>
    %21 = arith.addf %11, %20 : vector<48x120xf32>
    %c0_25 = arith.constant 0 : index
    %c2 = arith.constant 2 : index
    %c0_26 = arith.constant 0 : index
    %22 = vector.load %arg1[%c0_25, %c2, %c0_26] : memref<2x28x28xf32, #tpu.memory_space<vmem>>, vector<2x24x28xf32>
    %23 = vector.shape_cast %22 : vector<2x24x28xf32> to vector<48x28xf32>
    %c0_27 = arith.constant 0 : index
    %c2_28 = arith.constant 2 : index
    %c0_29 = arith.constant 0 : index
    %c0_30 = arith.constant 0 : index
    %24 = vector.load %arg2[%c0_27, %c2_28, %c0_29, %c0_30] : memref<2x5x28x120xf32, #tpu.memory_space<vmem>>, vector<1x1x28x120xf32>
    %25 = vector.shape_cast %24 : vector<1x1x28x120xf32> to vector<28x120xf32>
    %cst_31 = arith.constant dense<0.000000e+00> : vector<48x120xf32>
    %26 = tpu.matmul %23, %25, %cst_31 {dimension_numbers = #tpu.dot_dimension_numbers<[1], [0], [0], [1], [0, 0, 1, 1], [], []>} : vector<48x28xf32>, vector<28x120xf32>, vector<48x120xf32> -> vector<48x120xf32>
    %27 = arith.addf %17, %26 : vector<48x120xf32>
    %c1_32 = arith.constant 1 : index
    %c2_33 = arith.constant 2 : index
    %c0_34 = arith.constant 0 : index
    %c0_35 = arith.constant 0 : index
    %28 = vector.load %arg2[%c1_32, %c2_33, %c0_34, %c0_35] : memref<2x5x28x120xf32, #tpu.memory_space<vmem>>, vector<1x1x28x120xf32>
    %29 = vector.shape_cast %28 : vector<1x1x28x120xf32> to vector<28x120xf32>
    %cst_36 = arith.constant dense<0.000000e+00> : vector<48x120xf32>
    %30 = tpu.matmul %23, %29, %cst_36 {dimension_numbers = #tpu.dot_dimension_numbers<[1], [0], [0], [1], [0, 0, 1, 1], [], []>} : vector<48x28xf32>, vector<28x120xf32>, vector<48x120xf32> -> vector<48x120xf32>
    %31 = arith.addf %21, %30 : vector<48x120xf32>
    %c0_37 = arith.constant 0 : index
    %c3 = arith.constant 3 : index
    %c0_38 = arith.constant 0 : index
    %32 = vector.load %arg1[%c0_37, %c3, %c0_38] : memref<2x28x28xf32, #tpu.memory_space<vmem>>, vector<2x24x28xf32>
    %33 = vector.shape_cast %32 : vector<2x24x28xf32> to vector<48x28xf32>
    %c0_39 = arith.constant 0 : index
    %c3_40 = arith.constant 3 : index
    %c0_41 = arith.constant 0 : index
    %c0_42 = arith.constant 0 : index
    %34 = vector.load %arg2[%c0_39, %c3_40, %c0_41, %c0_42] : memref<2x5x28x120xf32, #tpu.memory_space<vmem>>, vector<1x1x28x120xf32>
    %35 = vector.shape_cast %34 : vector<1x1x28x120xf32> to vector<28x120xf32>
    %cst_43 = arith.constant dense<0.000000e+00> : vector<48x120xf32>
    %36 = tpu.matmul %33, %35, %cst_43 {dimension_numbers = #tpu.dot_dimension_numbers<[1], [0], [0], [1], [0, 0, 1, 1], [], []>} : vector<48x28xf32>, vector<28x120xf32>, vector<48x120xf32> -> vector<48x120xf32>
    %37 = arith.addf %27, %36 : vector<48x120xf32>
    %c1_44 = arith.constant 1 : index
    %c3_45 = arith.constant 3 : index
    %c0_46 = arith.constant 0 : index
    %c0_47 = arith.constant 0 : index
    %38 = vector.load %arg2[%c1_44, %c3_45, %c0_46, %c0_47] : memref<2x5x28x120xf32, #tpu.memory_space<vmem>>, vector<1x1x28x120xf32>
    %39 = vector.shape_cast %38 : vector<1x1x28x120xf32> to vector<28x120xf32>
    %cst_48 = arith.constant dense<0.000000e+00> : vector<48x120xf32>
    %40 = tpu.matmul %33, %39, %cst_48 {dimension_numbers = #tpu.dot_dimension_numbers<[1], [0], [0], [1], [0, 0, 1, 1], [], []>} : vector<48x28xf32>, vector<28x120xf32>, vector<48x120xf32> -> vector<48x120xf32>
    %41 = arith.addf %31, %40 : vector<48x120xf32>
    %c0_49 = arith.constant 0 : index
    %c4 = arith.constant 4 : index
    %c0_50 = arith.constant 0 : index
    %42 = vector.load %arg1[%c0_49, %c4, %c0_50] : memref<2x28x28xf32, #tpu.memory_space<vmem>>, vector<2x24x28xf32>
    %43 = vector.shape_cast %42 : vector<2x24x28xf32> to vector<48x28xf32>
    %c0_51 = arith.constant 0 : index
    %c4_52 = arith.constant 4 : index
    %c0_53 = arith.constant 0 : index
    %c0_54 = arith.constant 0 : index
    %44 = vector.load %arg2[%c0_51, %c4_52, %c0_53, %c0_54] : memref<2x5x28x120xf32, #tpu.memory_space<vmem>>, vector<1x1x28x120xf32>
    %45 = vector.shape_cast %44 : vector<1x1x28x120xf32> to vector<28x120xf32>
    %cst_55 = arith.constant dense<0.000000e+00> : vector<48x120xf32>
    %46 = tpu.matmul %43, %45, %cst_55 {dimension_numbers = #tpu.dot_dimension_numbers<[1], [0], [0], [1], [0, 0, 1, 1], [], []>} : vector<48x28xf32>, vector<28x120xf32>, vector<48x120xf32> -> vector<48x120xf32>
    %47 = arith.addf %37, %46 : vector<48x120xf32>
    %c1_56 = arith.constant 1 : index
    %c4_57 = arith.constant 4 : index
    %c0_58 = arith.constant 0 : index
    %c0_59 = arith.constant 0 : index
    %48 = vector.load %arg2[%c1_56, %c4_57, %c0_58, %c0_59] : memref<2x5x28x120xf32, #tpu.memory_space<vmem>>, vector<1x1x28x120xf32>
    %49 = vector.shape_cast %48 : vector<1x1x28x120xf32> to vector<28x120xf32>
    %cst_60 = arith.constant dense<0.000000e+00> : vector<48x120xf32>
    %50 = tpu.matmul %43, %49, %cst_60 {dimension_numbers = #tpu.dot_dimension_numbers<[1], [0], [0], [1], [0, 0, 1, 1], [], []>} : vector<48x28xf32>, vector<28x120xf32>, vector<48x120xf32> -> vector<48x120xf32>
    %51 = arith.addf %41, %50 : vector<48x120xf32>
    %52 = arith.maximumf %47, %51 : vector<48x120xf32>
    %53 = vector.shape_cast %52 : vector<48x120xf32> to vector<2x24x120xf32>
    %c0_61 = arith.constant 0 : index
    %c0_62 = arith.constant 0 : index
    %c0_63 = arith.constant 0 : index
    %54 = vector.load %arg11[%c0_61, %c0_62, %c0_63] : memref<2x24x120xf32, #tpu.memory_space<vmem>>, vector<2x24x120xf32>
    tpu.vector_store %arg11[%c0_61, %c0_62, %c0_63], %53 {strides = array<i32>} : memref<2x24x120xf32, #tpu.memory_space<vmem>>, vector<2x24x120xf32>,
    %c0_64 = arith.constant 0 : index
    %c0_65 = arith.constant 0 : index
    %c0_66 = arith.constant 0 : index
    %55 = tpu.strided_load %arg11[%c0_64, %c0_65, %c0_66] {strides = array<i32: 1, 2, 1>} : memref<2x24x120xf32, #tpu.memory_space<vmem>>, vector<2x12x120xf32>
    %c0_67 = arith.constant 0 : index
    %c1_68 = arith.constant 1 : index
    %c0_69 = arith.constant 0 : index
    %56 = tpu.strided_load %arg11[%c0_67, %c1_68, %c0_69] {strides = array<i32: 1, 2, 1>} : memref<2x24x120xf32, #tpu.memory_space<vmem>>, vector<2x12x120xf32>
    %57 = arith.maximumf %55, %56 : vector<2x12x120xf32>
    %c0_70 = arith.constant 0 : index
    %c0_71 = arith.constant 0 : index
    %58 = vector.load %arg3[%c0_70, %c0_71] : memref<1x120xf32, #tpu.memory_space<vmem>>, vector<1x120xf32>
    %59 = vector.shape_cast %58 : vector<1x120xf32> to vector<1x1x120xf32>
    %60 = vector.broadcast %59 : vector<1x1x120xf32> to vector<2x12x120xf32>
    %61 = arith.addf %57, %60 : vector<2x12x120xf32>
    %cst_72 = arith.constant 0.000000e+00 : f32
    %62 = vector.broadcast %cst_72 : f32 to vector<2x12x120xf32>
    %63 = arith.maximumf %61, %62 : vector<2x12x120xf32>
    %c0_73 = arith.constant 0 : index
    %c0_74 = arith.constant 0 : index
    %c0_75 = arith.constant 0 : index
    %64 = vector.load %arg12[%c0_73, %c0_74, %c0_75] : memref<2x12x120xf32, #tpu.memory_space<vmem>>, vector<2x12x120xf32>
    tpu.vector_store %arg12[%c0_73, %c0_74, %c0_75], %63 {strides = array<i32>} : memref<2x12x120xf32, #tpu.memory_space<vmem>>, vector<2x12x120xf32>,
    %cst_76 = arith.constant 0.000000e+00 : f32
    %65 = vector.broadcast %cst_76 : f32 to vector<16x80xf32>
    %cst_77 = arith.constant 0.000000e+00 : f32
    %66 = vector.broadcast %cst_77 : f32 to vector<16x80xf32>
    %c0_78 = arith.constant 0 : index
    %c0_79 = arith.constant 0 : index
    %c0_80 = arith.constant 0 : index
    %67 = vector.load %arg12[%c0_78, %c0_79, %c0_80] : memref<2x12x120xf32, #tpu.memory_space<vmem>>, vector<2x8x120xf32>
    %68 = vector.shape_cast %67 : vector<2x8x120xf32> to vector<16x120xf32>
    %c0_81 = arith.constant 0 : index
    %c0_82 = arith.constant 0 : index
    %c0_83 = arith.constant 0 : index
    %c0_84 = arith.constant 0 : index
    %69 = vector.load %arg4[%c0_81, %c0_82, %c0_83, %c0_84] : memref<2x5x120x80xf32, #tpu.memory_space<vmem>>, vector<1x1x120x80xf32>
    %70 = vector.shape_cast %69 : vector<1x1x120x80xf32> to vector<120x80xf32>
    %cst_85 = arith.constant dense<0.000000e+00> : vector<16x80xf32>
    %71 = tpu.matmul %68, %70, %cst_85 {dimension_numbers = #tpu.dot_dimension_numbers<[1], [0], [0], [1], [0, 0, 1, 1], [], []>} : vector<16x120xf32>, vector<120x80xf32>, vector<16x80xf32> -> vector<16x80xf32>
    %72 = arith.addf %65, %71 : vector<16x80xf32>
    %c1_86 = arith.constant 1 : index
    %c0_87 = arith.constant 0 : index
    %c0_88 = arith.constant 0 : index
    %c0_89 = arith.constant 0 : index
    %73 = vector.load %arg4[%c1_86, %c0_87, %c0_88, %c0_89] : memref<2x5x120x80xf32, #tpu.memory_space<vmem>>, vector<1x1x120x80xf32>
    %74 = vector.shape_cast %73 : vector<1x1x120x80xf32> to vector<120x80xf32>
    %cst_90 = arith.constant dense<0.000000e+00> : vector<16x80xf32>
    %75 = tpu.matmul %68, %74, %cst_90 {dimension_numbers = #tpu.dot_dimension_numbers<[1], [0], [0], [1], [0, 0, 1, 1], [], []>} : vector<16x120xf32>, vector<120x80xf32>, vector<16x80xf32> -> vector<16x80xf32>
    %76 = arith.addf %66, %75 : vector<16x80xf32>
    %c0_91 = arith.constant 0 : index
    %c1_92 = arith.constant 1 : index
    %c0_93 = arith.constant 0 : index
    %77 = vector.load %arg12[%c0_91, %c1_92, %c0_93] : memref<2x12x120xf32, #tpu.memory_space<vmem>>, vector<2x8x120xf32>
    %78 = vector.shape_cast %77 : vector<2x8x120xf32> to vector<16x120xf32>
    %c0_94 = arith.constant 0 : index
    %c1_95 = arith.constant 1 : index
    %c0_96 = arith.constant 0 : index
    %c0_97 = arith.constant 0 : index
    %79 = vector.load %arg4[%c0_94, %c1_95, %c0_96, %c0_97] : memref<2x5x120x80xf32, #tpu.memory_space<vmem>>, vector<1x1x120x80xf32>
    %80 = vector.shape_cast %79 : vector<1x1x120x80xf32> to vector<120x80xf32>
    %cst_98 = arith.constant dense<0.000000e+00> : vector<16x80xf32>
    %81 = tpu.matmul %78, %80, %cst_98 {dimension_numbers = #tpu.dot_dimension_numbers<[1], [0], [0], [1], [0, 0, 1, 1], [], []>} : vector<16x120xf32>, vector<120x80xf32>, vector<16x80xf32> -> vector<16x80xf32>
    %82 = arith.addf %72, %81 : vector<16x80xf32>
    %c1_99 = arith.constant 1 : index
    %c1_100 = arith.constant 1 : index
    %c0_101 = arith.constant 0 : index
    %c0_102 = arith.constant 0 : index
    %83 = vector.load %arg4[%c1_99, %c1_100, %c0_101, %c0_102] : memref<2x5x120x80xf32, #tpu.memory_space<vmem>>, vector<1x1x120x80xf32>
    %84 = vector.shape_cast %83 : vector<1x1x120x80xf32> to vector<120x80xf32>
    %cst_103 = arith.constant dense<0.000000e+00> : vector<16x80xf32>
    %85 = tpu.matmul %78, %84, %cst_103 {dimension_numbers = #tpu.dot_dimension_numbers<[1], [0], [0], [1], [0, 0, 1, 1], [], []>} : vector<16x120xf32>, vector<120x80xf32>, vector<16x80xf32> -> vector<16x80xf32>
    %86 = arith.addf %76, %85 : vector<16x80xf32>
    %c0_104 = arith.constant 0 : index
    %c2_105 = arith.constant 2 : index
    %c0_106 = arith.constant 0 : index
    %87 = vector.load %arg12[%c0_104, %c2_105, %c0_106] : memref<2x12x120xf32, #tpu.memory_space<vmem>>, vector<2x8x120xf32>
    %88 = vector.shape_cast %87 : vector<2x8x120xf32> to vector<16x120xf32>
    %c0_107 = arith.constant 0 : index
    %c2_108 = arith.constant 2 : index
    %c0_109 = arith.constant 0 : index
    %c0_110 = arith.constant 0 : index
    %89 = vector.load %arg4[%c0_107, %c2_108, %c0_109, %c0_110] : memref<2x5x120x80xf32, #tpu.memory_space<vmem>>, vector<1x1x120x80xf32>
    %90 = vector.shape_cast %89 : vector<1x1x120x80xf32> to vector<120x80xf32>
    %cst_111 = arith.constant dense<0.000000e+00> : vector<16x80xf32>
    %91 = tpu.matmul %88, %90, %cst_111 {dimension_numbers = #tpu.dot_dimension_numbers<[1], [0], [0], [1], [0, 0, 1, 1], [], []>} : vector<16x120xf32>, vector<120x80xf32>, vector<16x80xf32> -> vector<16x80xf32>
    %92 = arith.addf %82, %91 : vector<16x80xf32>
    %c1_112 = arith.constant 1 : index
    %c2_113 = arith.constant 2 : index
    %c0_114 = arith.constant 0 : index
    %c0_115 = arith.constant 0 : index
    %93 = vector.load %arg4[%c1_112, %c2_113, %c0_114, %c0_115] : memref<2x5x120x80xf32, #tpu.memory_space<vmem>>, vector<1x1x120x80xf32>
    %94 = vector.shape_cast %93 : vector<1x1x120x80xf32> to vector<120x80xf32>
    %cst_116 = arith.constant dense<0.000000e+00> : vector<16x80xf32>
    %95 = tpu.matmul %88, %94, %cst_116 {dimension_numbers = #tpu.dot_dimension_numbers<[1], [0], [0], [1], [0, 0, 1, 1], [], []>} : vector<16x120xf32>, vector<120x80xf32>, vector<16x80xf32> -> vector<16x80xf32>
    %96 = arith.addf %86, %95 : vector<16x80xf32>
    %c0_117 = arith.constant 0 : index
    %c3_118 = arith.constant 3 : index
    %c0_119 = arith.constant 0 : index
    %97 = vector.load %arg12[%c0_117, %c3_118, %c0_119] : memref<2x12x120xf32, #tpu.memory_space<vmem>>, vector<2x8x120xf32>
    %98 = vector.shape_cast %97 : vector<2x8x120xf32> to vector<16x120xf32>
    %c0_120 = arith.constant 0 : index
    %c3_121 = arith.constant 3 : index
    %c0_122 = arith.constant 0 : index
    %c0_123 = arith.constant 0 : index
    %99 = vector.load %arg4[%c0_120, %c3_121, %c0_122, %c0_123] : memref<2x5x120x80xf32, #tpu.memory_space<vmem>>, vector<1x1x120x80xf32>
    %100 = vector.shape_cast %99 : vector<1x1x120x80xf32> to vector<120x80xf32>
    %cst_124 = arith.constant dense<0.000000e+00> : vector<16x80xf32>
    %101 = tpu.matmul %98, %100, %cst_124 {dimension_numbers = #tpu.dot_dimension_numbers<[1], [0], [0], [1], [0, 0, 1, 1], [], []>} : vector<16x120xf32>, vector<120x80xf32>, vector<16x80xf32> -> vector<16x80xf32>
    %102 = arith.addf %92, %101 : vector<16x80xf32>
    %c1_125 = arith.constant 1 : index
    %c3_126 = arith.constant 3 : index
    %c0_127 = arith.constant 0 : index
    %c0_128 = arith.constant 0 : index
    %103 = vector.load %arg4[%c1_125, %c3_126, %c0_127, %c0_128] : memref<2x5x120x80xf32, #tpu.memory_space<vmem>>, vector<1x1x120x80xf32>
    %104 = vector.shape_cast %103 : vector<1x1x120x80xf32> to vector<120x80xf32>
    %cst_129 = arith.constant dense<0.000000e+00> : vector<16x80xf32>
    %105 = tpu.matmul %98, %104, %cst_129 {dimension_numbers = #tpu.dot_dimension_numbers<[1], [0], [0], [1], [0, 0, 1, 1], [], []>} : vector<16x120xf32>, vector<120x80xf32>, vector<16x80xf32> -> vector<16x80xf32>
    %106 = arith.addf %96, %105 : vector<16x80xf32>
    %c0_130 = arith.constant 0 : index
    %c4_131 = arith.constant 4 : index
    %c0_132 = arith.constant 0 : index
    %107 = vector.load %arg12[%c0_130, %c4_131, %c0_132] : memref<2x12x120xf32, #tpu.memory_space<vmem>>, vector<2x8x120xf32>
    %108 = vector.shape_cast %107 : vector<2x8x120xf32> to vector<16x120xf32>
    %c0_133 = arith.constant 0 : index
    %c4_134 = arith.constant 4 : index
    %c0_135 = arith.constant 0 : index
    %c0_136 = arith.constant 0 : index
    %109 = vector.load %arg4[%c0_133, %c4_134, %c0_135, %c0_136] : memref<2x5x120x80xf32, #tpu.memory_space<vmem>>, vector<1x1x120x80xf32>
    %110 = vector.shape_cast %109 : vector<1x1x120x80xf32> to vector<120x80xf32>
    %cst_137 = arith.constant dense<0.000000e+00> : vector<16x80xf32>
    %111 = tpu.matmul %108, %110, %cst_137 {dimension_numbers = #tpu.dot_dimension_numbers<[1], [0], [0], [1], [0, 0, 1, 1], [], []>} : vector<16x120xf32>, vector<120x80xf32>, vector<16x80xf32> -> vector<16x80xf32>
    %112 = arith.addf %102, %111 : vector<16x80xf32>
    %c1_138 = arith.constant 1 : index
    %c4_139 = arith.constant 4 : index
    %c0_140 = arith.constant 0 : index
    %c0_141 = arith.constant 0 : index
    %113 = vector.load %arg4[%c1_138, %c4_139, %c0_140, %c0_141] : memref<2x5x120x80xf32, #tpu.memory_space<vmem>>, vector<1x1x120x80xf32>
    %114 = vector.shape_cast %113 : vector<1x1x120x80xf32> to vector<120x80xf32>
    %cst_142 = arith.constant dense<0.000000e+00> : vector<16x80xf32>
    %115 = tpu.matmul %108, %114, %cst_142 {dimension_numbers = #tpu.dot_dimension_numbers<[1], [0], [0], [1], [0, 0, 1, 1], [], []>} : vector<16x120xf32>, vector<120x80xf32>, vector<16x80xf32> -> vector<16x80xf32>
    %116 = arith.addf %106, %115 : vector<16x80xf32>
    %117 = arith.maximumf %112, %116 : vector<16x80xf32>
    %118 = vector.shape_cast %117 : vector<16x80xf32> to vector<2x8x80xf32>
    %c0_143 = arith.constant 0 : index
    %c0_144 = arith.constant 0 : index
    %c0_145 = arith.constant 0 : index
    %119 = vector.load %arg13[%c0_143, %c0_144, %c0_145] : memref<2x8x80xf32, #tpu.memory_space<vmem>>, vector<2x8x80xf32>
    tpu.vector_store %arg13[%c0_143, %c0_144, %c0_145], %118 {strides = array<i32>} : memref<2x8x80xf32, #tpu.memory_space<vmem>>, vector<2x8x80xf32>,
    %c0_146 = arith.constant 0 : index
    %c0_147 = arith.constant 0 : index
    %c0_148 = arith.constant 0 : index
    %120 = tpu.strided_load %arg13[%c0_146, %c0_147, %c0_148] {strides = array<i32: 1, 2, 1>} : memref<2x8x80xf32, #tpu.memory_space<vmem>>, vector<2x4x80xf32>
    %c0_149 = arith.constant 0 : index
    %c1_150 = arith.constant 1 : index
    %c0_151 = arith.constant 0 : index
    %121 = tpu.strided_load %arg13[%c0_149, %c1_150, %c0_151] {strides = array<i32: 1, 2, 1>} : memref<2x8x80xf32, #tpu.memory_space<vmem>>, vector<2x4x80xf32>
    %122 = arith.maximumf %120, %121 : vector<2x4x80xf32>
    %c0_152 = arith.constant 0 : index
    %c0_153 = arith.constant 0 : index
    %123 = vector.load %arg5[%c0_152, %c0_153] : memref<1x80xf32, #tpu.memory_space<vmem>>, vector<1x80xf32>
    %124 = vector.shape_cast %123 : vector<1x80xf32> to vector<1x1x80xf32>
    %125 = vector.broadcast %124 : vector<1x1x80xf32> to vector<2x4x80xf32>
    %126 = arith.addf %122, %125 : vector<2x4x80xf32>
    %cst_154 = arith.constant 0.000000e+00 : f32
    %127 = vector.broadcast %cst_154 : f32 to vector<2x4x80xf32>
    %128 = arith.maximumf %126, %127 : vector<2x4x80xf32>
    %c0_155 = arith.constant 0 : index
    %c0_156 = arith.constant 0 : index
    %c0_157 = arith.constant 0 : index
    %129 = vector.load %arg14[%c0_155, %c0_156, %c0_157] : memref<2x4x80xf32, #tpu.memory_space<vmem>>, vector<2x4x80xf32>
    tpu.vector_store %arg14[%c0_155, %c0_156, %c0_157], %128 {strides = array<i32>} : memref<2x4x80xf32, #tpu.memory_space<vmem>>, vector<2x4x80xf32>,
    %cst_158 = arith.constant 0.000000e+00 : f32
    %130 = vector.broadcast %cst_158 : f32 to vector<2x50xf32>
    %c0_159 = arith.constant 0 : index
    %c0_160 = arith.constant 0 : index
    %c0_161 = arith.constant 0 : index
    %131 = vector.load %arg14[%c0_159, %c0_160, %c0_161] : memref<2x4x80xf32, #tpu.memory_space<vmem>>, vector<2x1x80xf32>
    %132 = vector.shape_cast %131 : vector<2x1x80xf32> to vector<2x80xf32>
    %c0_162 = arith.constant 0 : index
    %c0_163 = arith.constant 0 : index
    %c0_164 = arith.constant 0 : index
    %133 = vector.load %arg6[%c0_162, %c0_163, %c0_164] : memref<4x80x50xf32, #tpu.memory_space<vmem>>, vector<1x80x50xf32>
    %134 = vector.shape_cast %133 : vector<1x80x50xf32> to vector<80x50xf32>
    %cst_165 = arith.constant dense<0.000000e+00> : vector<2x50xf32>
    %135 = tpu.matmul %132, %134, %cst_165 {dimension_numbers = #tpu.dot_dimension_numbers<[1], [0], [0], [1], [0, 0, 1, 1], [], []>} : vector<2x80xf32>, vector<80x50xf32>, vector<2x50xf32> -> vector<2x50xf32>
    %136 = arith.addf %130, %135 : vector<2x50xf32>
    %c0_166 = arith.constant 0 : index
    %c1_167 = arith.constant 1 : index
    %c0_168 = arith.constant 0 : index
    %137 = vector.load %arg14[%c0_166, %c1_167, %c0_168] : memref<2x4x80xf32, #tpu.memory_space<vmem>>, vector<2x1x80xf32>
    %138 = vector.shape_cast %137 : vector<2x1x80xf32> to vector<2x80xf32>
    %c1_169 = arith.constant 1 : index
    %c0_170 = arith.constant 0 : index
    %c0_171 = arith.constant 0 : index
    %139 = vector.load %arg6[%c1_169, %c0_170, %c0_171] : memref<4x80x50xf32, #tpu.memory_space<vmem>>, vector<1x80x50xf32>
    %140 = vector.shape_cast %139 : vector<1x80x50xf32> to vector<80x50xf32>
    %cst_172 = arith.constant dense<0.000000e+00> : vector<2x50xf32>
    %141 = tpu.matmul %138, %140, %cst_172 {dimension_numbers = #tpu.dot_dimension_numbers<[1], [0], [0], [1], [0, 0, 1, 1], [], []>} : vector<2x80xf32>, vector<80x50xf32>, vector<2x50xf32> -> vector<2x50xf32>
    %142 = arith.addf %136, %141 : vector<2x50xf32>
    %c0_173 = arith.constant 0 : index
    %c2_174 = arith.constant 2 : index
    %c0_175 = arith.constant 0 : index
    %143 = vector.load %arg14[%c0_173, %c2_174, %c0_175] : memref<2x4x80xf32, #tpu.memory_space<vmem>>, vector<2x1x80xf32>
    %144 = vector.shape_cast %143 : vector<2x1x80xf32> to vector<2x80xf32>
    %c2_176 = arith.constant 2 : index
    %c0_177 = arith.constant 0 : index
    %c0_178 = arith.constant 0 : index
    %145 = vector.load %arg6[%c2_176, %c0_177, %c0_178] : memref<4x80x50xf32, #tpu.memory_space<vmem>>, vector<1x80x50xf32>
    %146 = vector.shape_cast %145 : vector<1x80x50xf32> to vector<80x50xf32>
    %cst_179 = arith.constant dense<0.000000e+00> : vector<2x50xf32>
    %147 = tpu.matmul %144, %146, %cst_179 {dimension_numbers = #tpu.dot_dimension_numbers<[1], [0], [0], [1], [0, 0, 1, 1], [], []>} : vector<2x80xf32>, vector<80x50xf32>, vector<2x50xf32> -> vector<2x50xf32>
    %148 = arith.addf %142, %147 : vector<2x50xf32>
    %c0_180 = arith.constant 0 : index
    %c3_181 = arith.constant 3 : index
    %c0_182 = arith.constant 0 : index
    %149 = vector.load %arg14[%c0_180, %c3_181, %c0_182] : memref<2x4x80xf32, #tpu.memory_space<vmem>>, vector<2x1x80xf32>
    %150 = vector.shape_cast %149 : vector<2x1x80xf32> to vector<2x80xf32>
    %c3_183 = arith.constant 3 : index
    %c0_184 = arith.constant 0 : index
    %c0_185 = arith.constant 0 : index
    %151 = vector.load %arg6[%c3_183, %c0_184, %c0_185] : memref<4x80x50xf32, #tpu.memory_space<vmem>>, vector<1x80x50xf32>
    %152 = vector.shape_cast %151 : vector<1x80x50xf32> to vector<80x50xf32>
    %cst_186 = arith.constant dense<0.000000e+00> : vector<2x50xf32>
    %153 = tpu.matmul %150, %152, %cst_186 {dimension_numbers = #tpu.dot_dimension_numbers<[1], [0], [0], [1], [0, 0, 1, 1], [], []>} : vector<2x80xf32>, vector<80x50xf32>, vector<2x50xf32> -> vector<2x50xf32>
    %154 = arith.addf %148, %153 : vector<2x50xf32>
    %c0_187 = arith.constant 0 : index
    %c0_188 = arith.constant 0 : index
    %155 = vector.load %arg7[%c0_187, %c0_188] : memref<1x50xf32, #tpu.memory_space<vmem>>, vector<1x50xf32>
    %156 = vector.broadcast %155 : vector<1x50xf32> to vector<2x50xf32>
    %157 = arith.addf %154, %156 : vector<2x50xf32>
    %cst_189 = arith.constant 0.000000e+00 : f32
    %158 = vector.broadcast %cst_189 : f32 to vector<2x50xf32>
    %159 = arith.maximumf %157, %158 : vector<2x50xf32>
    %c0_190 = arith.constant 0 : index
    %c0_191 = arith.constant 0 : index
    %160 = vector.load %arg8[%c0_190, %c0_191] : memref<50x10xf32, #tpu.memory_space<vmem>>, vector<50x10xf32>
    %cst_192 = arith.constant dense<0.000000e+00> : vector<2x10xf32>
    %161 = tpu.matmul %159, %160, %cst_192 {dimension_numbers = #tpu.dot_dimension_numbers<[1], [0], [0], [1], [0, 0, 1, 1], [], []>} : vector<2x50xf32>, vector<50x10xf32>, vector<2x10xf32> -> vector<2x10xf32>
    %c0_193 = arith.constant 0 : index
    %c0_194 = arith.constant 0 : index
    %162 = vector.load %arg9[%c0_193, %c0_194] : memref<1x10xf32, #tpu.memory_space<vmem>>, vector<1x10xf32>
    %163 = vector.broadcast %162 : vector<1x10xf32> to vector<2x10xf32>
    %164 = arith.addf %161, %163 : vector<2x10xf32>
    %c0_195 = arith.constant 0 : index
    %c0_196 = arith.constant 0 : index
    %165 = vector.load %arg10[%c0_195, %c0_196] : memref<2x10xf32, #tpu.memory_space<vmem>>, vector<2x10xf32>
    tpu.vector_store %arg10[%c0_195, %c0_196], %164 {strides = array<i32>} : memref<2x10xf32, #tpu.memory_space<vmem>>, vector<2x10xf32>,
    return
  }
  func.func @transform_0(%arg0: i32) -> (i32, i32, i32) {
    %c0_i32 = arith.constant 0 : i32
    %c0_i32_0 = arith.constant 0 : i32
    %c0_i32_1 = arith.constant 0 : i32
    return %arg0, %c0_i32, %c0_i32_0 : i32, i32, i32
  }
  func.func @transform_1(%arg0: i32) -> (i32, i32, i32, i32) {
    %c0_i32 = arith.constant 0 : i32
    %c0_i32_0 = arith.constant 0 : i32
    %c0_i32_1 = arith.constant 0 : i32
    %c0_i32_2 = arith.constant 0 : i32
    %c0_i32_3 = arith.constant 0 : i32
    return %c0_i32, %c0_i32_0, %c0_i32_1, %c0_i32_2 : i32, i32, i32, i32
  }
  func.func @transform_2(%arg0: i32) -> (i32, i32) {
    %c0_i32 = arith.constant 0 : i32
    %c0_i32_0 = arith.constant 0 : i32
    %c0_i32_1 = arith.constant 0 : i32
    return %c0_i32, %c0_i32_0 : i32, i32
  }
  func.func @transform_3(%arg0: i32) -> (i32, i32, i32, i32) {
    %c0_i32 = arith.constant 0 : i32
    %c0_i32_0 = arith.constant 0 : i32
    %c0_i32_1 = arith.constant 0 : i32
    %c0_i32_2 = arith.constant 0 : i32
    %c0_i32_3 = arith.constant 0 : i32
    return %c0_i32, %c0_i32_0, %c0_i32_1, %c0_i32_2 : i32, i32, i32, i32
  }
  func.func @transform_4(%arg0: i32) -> (i32, i32) {
    %c0_i32 = arith.constant 0 : i32
    %c0_i32_0 = arith.constant 0 : i32
    %c0_i32_1 = arith.constant 0 : i32
    return %c0_i32, %c0_i32_0 : i32, i32
  }
  func.func @transform_5(%arg0: i32) -> (i32, i32, i32) {
    %c0_i32 = arith.constant 0 : i32
    %c0_i32_0 = arith.constant 0 : i32
    %c0_i32_1 = arith.constant 0 : i32
    %c0_i32_2 = arith.constant 0 : i32
    return %c0_i32, %c0_i32_0, %c0_i32_1 : i32, i32, i32
  }
  func.func @transform_6(%arg0: i32) -> (i32, i32) {
    %c0_i32 = arith.constant 0 : i32
    %c0_i32_0 = arith.constant 0 : i32
    %c0_i32_1 = arith.constant 0 : i32
    return %c0_i32, %c0_i32_0 : i32, i32
  }
  func.func @transform_7(%arg0: i32) -> (i32, i32) {
    %c0_i32 = arith.constant 0 : i32
    %c0_i32_0 = arith.constant 0 : i32
    %c0_i32_1 = arith.constant 0 : i32
    return %c0_i32, %c0_i32_0 : i32, i32
  }
  func.func @transform_8(%arg0: i32) -> (i32, i32) {
    %c0_i32 = arith.constant 0 : i32
    %c0_i32_0 = arith.constant 0 : i32
    %c0_i32_1 = arith.constant 0 : i32
    return %c0_i32, %c0_i32_0 : i32, i32
  }
  func.func @transform_9(%arg0: i32) -> (i32, i32) {
    %c0_i32 = arith.constant 0 : i32
    %c0_i32_0 = arith.constant 0 : i32
    return %arg0, %c0_i32 : i32, i32
  }
}

</mosaic_0001>

<llo_original>
// kernel: net_forward.1
$region0: #{net_forward.1}
  #allocation0 [shape = 'u32[]', space=smem, size = 0x4, offset = 0x4, fixed_abs, tag = 'smem constant byte address 0x4 - core index']
  #allocation1 [shape = 'u32[144,128]{1,0:T(1,128)}', space=vmem, size = 0x12000, scoped, tag = 'internal scratch']
  #allocation2 [shape = 'f32[2,24,120]{2,1,0:T(8,128)}', space=vmem, size = 0x6000, scoped, tag = 'scratch operand']
  #allocation3 [shape = 'f32[2,12,120]{2,1,0:T(8,128)}', space=vmem, size = 0x4000, scoped, tag = 'scratch operand']
  #allocation4 [shape = 'f32[2,8,80]{2,1,0:T(8,128)}', space=vmem, size = 0x2000, scoped, tag = 'scratch operand']
  #allocation5 [shape = 'f32[2,4,80]{2,1,0:T(4,128)}', space=vmem, size = 0x1000, scoped, tag = 'scratch operand']
  %s0 = inlined_call_operand.vmem [shape: f32[2,28,28], index: 0, kind: input, shape index: {}]
  %s1 = inlined_call_operand.vmem [shape: f32[2,5,28,120], index: 1, kind: input, shape index: {}]
  %s2 = inlined_call_operand.vmem [shape: f32[1,120], index: 2, kind: input, shape index: {}]
  %s3 = inlined_call_operand.vmem [shape: f32[2,5,120,80], index: 3, kind: input, shape index: {}]
  %s4 = inlined_call_operand.vmem [shape: f32[1,80], index: 4, kind: input, shape index: {}]
  %s5 = inlined_call_operand.vmem [shape: f32[4,80,50], index: 5, kind: input, shape index: {}]
  %s6 = inlined_call_operand.vmem [shape: f32[1,50], index: 6, kind: input, shape index: {}]
  %s7 = inlined_call_operand.vmem [shape: f32[50,10], index: 7, kind: input, shape index: {}]
  %s8 = inlined_call_operand.vmem [shape: f32[1,10], index: 8, kind: input, shape index: {}]
  %s9 = inlined_call_operand.hbm [shape: f32[2,10], index: 9, kind: output, shape index: {}]
  %s10 = sld [smem:[#allocation0]]
  $region46: #{net_forward.1} parent=0
    _
  %s12 = ssub.s32 1, %s10
  %s13 = scalar_select 0, %s12, %s10
  $region1: #{net_forward.1} parent=0
    #allocation6 [shape = 'u8[1024]{0}', space=vmem, size = 0x400, scoped, tag = 'output window, operand 0, single buffered']
    #allocation7 [shape = 's32[1]{0}', space=sflag, size = 0x4, scoped, tag = 'scoped memory for net_forward.1']
    %14 = vsyncpa [#allocation7], 0
    // Predicated region
    $region2: #{net_forward.1} parent=1 // pred_check
      _
    $region3: #{net_forward.1} parent=1 // pred_check_branch
      %16 = sbr.rel (0) target = $region5
    $region4: #{net_forward.1} parent=1 // pred_region
      _
    $region5: #{net_forward.1} parent=1 // pred_fallthru
      _
    // Predicated region
    $region6: #{net_forward.1} parent=1 // pred_check
      _
    $region7: #{net_forward.1} parent=1 // pred_check_branch
      %18 = sbr.rel (0) target = $region9
    $region8: #{net_forward.1} parent=1 // pred_region
      _
    $region9: #{net_forward.1} parent=1 // pred_fallthru
      _
    // Predicated region
    $region10: #{net_forward.1} parent=1 // pred_check
      _
    $region11: #{net_forward.1} parent=1 // pred_check_branch
      %20 = sbr.rel (0) target = $region13
    $region12: #{net_forward.1} parent=1 // pred_region
      _
    $region13: #{net_forward.1} parent=1 // pred_fallthru
      _
    // Predicated region
    $region14: #{net_forward.1} parent=1 // pred_check
      _
    $region15: #{net_forward.1} parent=1 // pred_check_branch
      %22 = sbr.rel (0) target = $region17
    $region16: #{net_forward.1} parent=1 // pred_region
      _
    $region17: #{net_forward.1} parent=1 // pred_fallthru
      _
    // Predicated region
    $region18: #{net_forward.1} parent=1 // pred_check
      _
    $region19: #{net_forward.1} parent=1 // pred_check_branch
      %24 = sbr.rel (0) target = $region21
    $region20: #{net_forward.1} parent=1 // pred_region
      _
    $region21: #{net_forward.1} parent=1 // pred_fallthru
      _
    // Predicated region
    $region22: #{net_forward.1} parent=1 // pred_check
      _
    $region23: #{net_forward.1} parent=1 // pred_check_branch
      %26 = sbr.rel (0) target = $region25
    $region24: #{net_forward.1} parent=1 // pred_region
      _
    $region25: #{net_forward.1} parent=1 // pred_fallthru
      _
    // Predicated region
    $region26: #{net_forward.1} parent=1 // pred_check
      _
    $region27: #{net_forward.1} parent=1 // pred_check_branch
      %28 = sbr.rel (0) target = $region29
    $region28: #{net_forward.1} parent=1 // pred_region
      _
    $region29: #{net_forward.1} parent=1 // pred_fallthru
      _
    // Predicated region
    $region30: #{net_forward.1} parent=1 // pred_check
      _
    $region31: #{net_forward.1} parent=1 // pred_check_branch
      %30 = sbr.rel (0) target = $region33
    $region32: #{net_forward.1} parent=1 // pred_region
      _
    $region33: #{net_forward.1} parent=1 // pred_fallthru
      _
    // Predicated region
    $region34: #{net_forward.1} parent=1 // pred_check
      _
    $region35: #{net_forward.1} parent=1 // pred_check_branch
      %32 = sbr.rel (0) target = $region37
    $region36: #{net_forward.1} parent=1 // pred_region
      _
    $region37: #{net_forward.1} parent=1 // pred_fallthru
      _
    %v33 = vld [vmem:[%s0] sm:$0xff]
    %v34 = vld [vmem:[%s0 + $0x8] sm:$0xff]
    %v35 = vld [vmem:[%s0 + $0x10] sm:$0xff]
    %v36 = vld [vmem:[%s0 + $0x20] sm:$0xff]
    %v37 = vld [vmem:[%s0 + $0x28] sm:$0xff]
    %v38 = vld [vmem:[%s0 + $0x30] sm:$0xff]
    %v39 = vld [vmem:[%s1] sm:$0xff]
    %v40 = vld [vmem:[%s1 + $0x8] sm:$0xff]
    %v41 = vld [vmem:[%s1 + $0x10] sm:$0xff]
    %v42 = vld [vmem:[%s1 + $0x18] sm:$0xf]
    %s43 = scalar_lea.vmem %s1, 160
    %v44 = vld [vmem:[%s43] sm:$0xff]
    %v45 = vld [vmem:[%s43 + $0x8] sm:$0xff]
    %v46 = vld [vmem:[%s43 + $0x10] sm:$0xff]
    %v47 = vld [vmem:[%s43 + $0x18] sm:$0xf]
    %v48 = vld [vmem:[%s0 + $0x1] sm:$0xff]
    %v49 = vld [vmem:[%s0 + $0x9] sm:$0xff]
    %v50 = vld [vmem:[%s0 + $0x11] sm:$0xff]
    %v51 = vld [vmem:[%s0 + $0x21] sm:$0xff]
    %v52 = vld [vmem:[%s0 + $0x29] sm:$0xff]
    %v53 = vld [vmem:[%s0 + $0x31] sm:$0xff]
    %s54 = scalar_lea.vmem %s1, 32
    %v55 = vld [vmem:[%s54] sm:$0xff]
    %v56 = vld [vmem:[%s54 + $0x8] sm:$0xff]
    %v57 = vld [vmem:[%s54 + $0x10] sm:$0xff]
    %v58 = vld [vmem:[%s54 + $0x18] sm:$0xf]
    %vm59 = vcmask 228352
    %v61 = vsel %vm59, %v48, 0
    %v64 = vsel %vm59, %v49, 0
    %v67 = vsel %vm59, %v50, 0
    %v70 = vsel %vm59, %v51, 0
    %v73 = vsel %vm59, %v52, 0
    %v76 = vsel %vm59, %v53, 0
    %vm78 = vcmask 1043456
    %v80 = vsel %vm78, %v58, 0
    %82 = vmatprep.subr.mxu0 0.0
    %83 = vmatpush1.msra.mxu0 0.0
    %84 = vmatprep.subr.mxu0 0.0
    %85 = vmatpush1.msra.mxu0 0.0
    %86 = vmatprep.subr.mxu0 0.0
    %87 = vmatpush1.msra.mxu0 0.0
    %88 = vmatprep.subr.mxu0 0.0
    %89 = vmatpush1.msra.mxu0 0.0
    %90 = vmatprep.subr.mxu0 0.0
    %91 = vmatpush1.msra.mxu0 0.0
    %92 = vmatprep.subr.mxu0 0.0
    %93 = vmatpush1.msra.mxu0 0.0
    %94 = vmatprep.subr.mxu0 0.0
    %95 = vmatpush1.msra.mxu0 0.0
    %96 = vmatprep.subr.mxu0 0.0
    %97 = vmatpush1.msra.mxu0 0.0
    %98 = vmatprep.subr.mxu0 0.0
    %99 = vmatpush1.msra.mxu0 0.0
    %100 = vmatprep.subr.mxu0 0.0
    %101 = vmatpush1.msra.mxu0 0.0
    %102 = vmatprep.subr.mxu0 0.0
    %103 = vmatpush1.msra.mxu0 0.0
    %104 = vmatprep.subr.mxu0 0.0
    %105 = vmatpush1.msra.mxu0 0.0
    %106 = vmatprep.subr.mxu0 0.0
    %107 = vmatpush1.msra.mxu0 %v80
    %108 = vmatprep.subr.mxu0 0.0
    %109 = vmatpush1.msra.mxu0 %v57
    %110 = vmatprep.subr.mxu0 0.0
    %111 = vmatpush1.msra.mxu0 %v56
    %112 = vmatprep.subr.mxu0 0.0
    %113 = vmatpush1.msra.mxu0 %v55
    %114 = vmatprep.subr.mxu0 0.0
    %115 = vmatpush2.msra.mxu0 0.0
    %116 = vmatprep.subr.mxu0 0.0
    %117 = vmatpush2.msra.mxu0 0.0
    %118 = vmatprep.subr.mxu0 0.0
    %119 = vmatpush2.msra.mxu0 0.0
    %120 = vmatprep.subr.mxu0 0.0
    %121 = vmatpush2.msra.mxu0 0.0
    %122 = vmatprep.subr.mxu0 0.0
    %123 = vmatpush2.msra.mxu0 0.0
    %124 = vmatprep.subr.mxu0 0.0
    %125 = vmatpush2.msra.mxu0 0.0
    %126 = vmatprep.subr.mxu0 0.0
    %127 = vmatpush2.msra.mxu0 0.0
    %128 = vmatprep.subr.mxu0 0.0
    %129 = vmatpush2.msra.mxu0 0.0
    %130 = vmatprep.subr.mxu0 0.0
    %131 = vmatpush2.msra.mxu0 0.0
    %132 = vmatprep.subr.mxu0 0.0
    %133 = vmatpush2.msra.mxu0 0.0
    %134 = vmatprep.subr.mxu0 0.0
    %135 = vmatpush2.msra.mxu0 0.0
    %136 = vmatprep.subr.mxu0 0.0
    %137 = vmatpush2.msra.mxu0 0.0
    %138 = vmatprep.subr.mxu0 0.0
    %139 = vmatpush2.msra.mxu0 0.0
    %140 = vmatprep.subr.mxu0 0.0
    %141 = vmatpush2.msra.mxu0 0.0
    %142 = vmatprep.subr.mxu0 0.0
    %143 = vmatpush2.msra.mxu0 0.0
    %144 = vmatprep.subr.mxu0 0.0
    %145 = vmatpush2.msra.mxu0 0.0
    %146 = vmatprep.mubr.f32.mxu0 0.0
    %147 = vmatmul.mubr.f32.gmra.mxu0 %v61
    %v148 = vpop.f32.mrf.mxu0
    %v149 = vadd.f32 0.0, %v148
    %v150 = vpop.f32.mrf.mxu0
    %151 = vmatprep.mubr.f32.mxu0 0.0
    %152 = vmatmul.mubr.f32.gmra.mxu0 %v64
    %v153 = vpop.f32.mrf.mxu0
    %v154 = vadd.f32 0.0, %v153
    %v155 = vpop.f32.mrf.mxu0
    %156 = vmatprep.mubr.f32.mxu0 0.0
    %157 = vmatmul.mubr.f32.gmra.mxu0 %v67
    %v158 = vpop.f32.mrf.mxu0
    %v159 = vadd.f32 0.0, %v158
    %v160 = vpop.f32.mrf.mxu0
    %161 = vmatprep.mubr.f32.mxu0 0.0
    %162 = vmatmul.mubr.f32.gmra.mxu0 %v70
    %v163 = vpop.f32.mrf.mxu0
    %v164 = vadd.f32 0.0, %v163
    %v165 = vpop.f32.mrf.mxu0
    %166 = vmatprep.mubr.f32.mxu0 0.0
    %167 = vmatmul.mubr.f32.gmra.mxu0 %v73
    %v168 = vpop.f32.mrf.mxu0
    %v169 = vadd.f32 0.0, %v168
    %v170 = vpop.f32.mrf.mxu0
    %171 = vmatprep.mubr.f32.mxu0 0.0
    %172 = vmatmul.mubr.f32.gmra.mxu0 %v76
    %v173 = vpop.f32.mrf.mxu0
    %v174 = vadd.f32 0.0, %v173
    %v175 = vpop.f32.mrf.mxu0
    %176 = vdwg.mxu0
    %v178 = vsel %vm59, %v33, 0
    %v181 = vsel %vm59, %v34, 0
    %v184 = vsel %vm59, %v35, 0
    %v187 = vsel %vm59, %v36, 0
    %v190 = vsel %vm59, %v37, 0
    %v193 = vsel %vm59, %v38, 0
    %v196 = vsel %vm78, %v42, 0
    %198 = vmatprep.subr.mxu0 0.0
    %199 = vmatpush1.msra.mxu0 0.0
    %200 = vmatprep.subr.mxu0 0.0
    %201 = vmatpush1.msra.mxu0 0.0
    %202 = vmatprep.subr.mxu0 0.0
    %203 = vmatpush1.msra.mxu0 0.0
    %204 = vmatprep.subr.mxu0 0.0
    %205 = vmatpush1.msra.mxu0 0.0
    %206 = vmatprep.subr.mxu0 0.0
    %207 = vmatpush1.msra.mxu0 0.0
    %208 = vmatprep.subr.mxu0 0.0
    %209 = vmatpush1.msra.mxu0 0.0
    %210 = vmatprep.subr.mxu0 0.0
    %211 = vmatpush1.msra.mxu0 0.0
    %212 = vmatprep.subr.mxu0 0.0
    %213 = vmatpush1.msra.mxu0 0.0
    %214 = vmatprep.subr.mxu0 0.0
    %215 = vmatpush1.msra.mxu0 0.0
    %216 = vmatprep.subr.mxu0 0.0
    %217 = vmatpush1.msra.mxu0 0.0
    %218 = vmatprep.subr.mxu0 0.0
    %219 = vmatpush1.msra.mxu0 0.0
    %220 = vmatprep.subr.mxu0 0.0
    %221 = vmatpush1.msra.mxu0 0.0
    %222 = vmatprep.subr.mxu0 0.0
    %223 = vmatpush1.msra.mxu0 %v196
    %224 = vmatprep.subr.mxu0 0.0
    %225 = vmatpush1.msra.mxu0 %v41
    %226 = vmatprep.subr.mxu0 0.0
    %227 = vmatpush1.msra.mxu0 %v40
    %228 = vmatprep.subr.mxu0 0.0
    %229 = vmatpush1.msra.mxu0 %v39
    %230 = vmatprep.subr.mxu0 0.0
    %231 = vmatpush2.msra.mxu0 0.0
    %232 = vmatprep.subr.mxu0 0.0
    %233 = vmatpush2.msra.mxu0 0.0
    %234 = vmatprep.subr.mxu0 0.0
    %235 = vmatpush2.msra.mxu0 0.0
    %236 = vmatprep.subr.mxu0 0.0
    %237 = vmatpush2.msra.mxu0 0.0
    %238 = vmatprep.subr.mxu0 0.0
    %239 = vmatpush2.msra.mxu0 0.0
    %240 = vmatprep.subr.mxu0 0.0
    %241 = vmatpush2.msra.mxu0 0.0
    %242 = vmatprep.subr.mxu0 0.0
    %243 = vmatpush2.msra.mxu0 0.0
    %244 = vmatprep.subr.mxu0 0.0
    %245 = vmatpush2.msra.mxu0 0.0
    %246 = vmatprep.subr.mxu0 0.0
    %247 = vmatpush2.msra.mxu0 0.0
    %248 = vmatprep.subr.mxu0 0.0
    %249 = vmatpush2.msra.mxu0 0.0
    %250 = vmatprep.subr.mxu0 0.0
    %251 = vmatpush2.msra.mxu0 0.0
    %252 = vmatprep.subr.mxu0 0.0
    %253 = vmatpush2.msra.mxu0 0.0
    %254 = vmatprep.subr.mxu0 0.0
    %255 = vmatpush2.msra.mxu0 0.0
    %256 = vmatprep.subr.mxu0 0.0
    %257 = vmatpush2.msra.mxu0 0.0
    %258 = vmatprep.subr.mxu0 0.0
    %259 = vmatpush2.msra.mxu0 0.0
    %260 = vmatprep.subr.mxu0 0.0
    %261 = vmatpush2.msra.mxu0 0.0
    %262 = vmatprep.mubr.f32.mxu0 0.0
    %263 = vmatmul.mubr.f32.gmra.mxu0 %v178
    %v264 = vpop.f32.mrf.mxu0
    %v265 = vadd.f32 %v149, %v264
    %v266 = vpop.f32.mrf.mxu0
    %267 = vmatprep.mubr.f32.mxu0 0.0
    %268 = vmatmul.mubr.f32.gmra.mxu0 %v181
    %v269 = vpop.f32.mrf.mxu0
    %v270 = vadd.f32 %v154, %v269
    %v271 = vpop.f32.mrf.mxu0
    %272 = vmatprep.mubr.f32.mxu0 0.0
    %273 = vmatmul.mubr.f32.gmra.mxu0 %v184
    %v274 = vpop.f32.mrf.mxu0
    %v275 = vadd.f32 %v159, %v274
    %v276 = vpop.f32.mrf.mxu0
    %277 = vmatprep.mubr.f32.mxu0 0.0
    %278 = vmatmul.mubr.f32.gmra.mxu0 %v187
    %v279 = vpop.f32.mrf.mxu0
    %v280 = vadd.f32 %v164, %v279
    %v281 = vpop.f32.mrf.mxu0
    %282 = vmatprep.mubr.f32.mxu0 0.0
    %283 = vmatmul.mubr.f32.gmra.mxu0 %v190
    %v284 = vpop.f32.mrf.mxu0
    %v285 = vadd.f32 %v169, %v284
    %v286 = vpop.f32.mrf.mxu0
    %287 = vmatprep.mubr.f32.mxu0 0.0
    %288 = vmatmul.mubr.f32.gmra.mxu0 %v193
    %v289 = vpop.f32.mrf.mxu0
    %v290 = vadd.f32 %v174, %v289
    %v291 = vpop.f32.mrf.mxu0
    %292 = vdwg.mxu0
    %s293 = scalar_lea.vmem %s1, 192
    %v294 = vld [vmem:[%s293] sm:$0xff]
    %v295 = vld [vmem:[%s293 + $0x8] sm:$0xff]
    %v296 = vld [vmem:[%s293 + $0x10] sm:$0xff]
    %v297 = vld [vmem:[%s293 + $0x18] sm:$0xf]
    %v299 = vsel %vm78, %v297, 0
    %301 = vmatprep.subr.mxu0 0.0
    %302 = vmatpush1.msra.mxu0 0.0
    %303 = vmatprep.subr.mxu0 0.0
    %304 = vmatpush1.msra.mxu0 0.0
    %305 = vmatprep.subr.mxu0 0.0
    %306 = vmatpush1.msra.mxu0 0.0
    %307 = vmatprep.subr.mxu0 0.0
    %308 = vmatpush1.msra.mxu0 0.0
    %309 = vmatprep.subr.mxu0 0.0
    %310 = vmatpush1.msra.mxu0 0.0
    %311 = vmatprep.subr.mxu0 0.0
    %312 = vmatpush1.msra.mxu0 0.0
    %313 = vmatprep.subr.mxu0 0.0
    %314 = vmatpush1.msra.mxu0 0.0
    %315 = vmatprep.subr.mxu0 0.0
    %316 = vmatpush1.msra.mxu0 0.0
    %317 = vmatprep.subr.mxu0 0.0
    %318 = vmatpush1.msra.mxu0 0.0
    %319 = vmatprep.subr.mxu0 0.0
    %320 = vmatpush1.msra.mxu0 0.0
    %321 = vmatprep.subr.mxu0 0.0
    %322 = vmatpush1.msra.mxu0 0.0
    %323 = vmatprep.subr.mxu0 0.0
    %324 = vmatpush1.msra.mxu0 0.0
    %325 = vmatprep.subr.mxu0 0.0
    %326 = vmatpush1.msra.mxu0 %v299
    %327 = vmatprep.subr.mxu0 0.0
    %328 = vmatpush1.msra.mxu0 %v296
    %329 = vmatprep.subr.mxu0 0.0
    %330 = vmatpush1.msra.mxu0 %v295
    %331 = vmatprep.subr.mxu0 0.0
    %332 = vmatpush1.msra.mxu0 %v294
    %333 = vmatprep.subr.mxu0 0.0
    %334 = vmatpush2.msra.mxu0 0.0
    %335 = vmatprep.subr.mxu0 0.0
    %336 = vmatpush2.msra.mxu0 0.0
    %337 = vmatprep.subr.mxu0 0.0
    %338 = vmatpush2.msra.mxu0 0.0
    %339 = vmatprep.subr.mxu0 0.0
    %340 = vmatpush2.msra.mxu0 0.0
    %341 = vmatprep.subr.mxu0 0.0
    %342 = vmatpush2.msra.mxu0 0.0
    %343 = vmatprep.subr.mxu0 0.0
    %344 = vmatpush2.msra.mxu0 0.0
    %345 = vmatprep.subr.mxu0 0.0
    %346 = vmatpush2.msra.mxu0 0.0
    %347 = vmatprep.subr.mxu0 0.0
    %348 = vmatpush2.msra.mxu0 0.0
    %349 = vmatprep.subr.mxu0 0.0
    %350 = vmatpush2.msra.mxu0 0.0
    %351 = vmatprep.subr.mxu0 0.0
    %352 = vmatpush2.msra.mxu0 0.0
    %353 = vmatprep.subr.mxu0 0.0
    %354 = vmatpush2.msra.mxu0 0.0
    %355 = vmatprep.subr.mxu0 0.0
    %356 = vmatpush2.msra.mxu0 0.0
    %357 = vmatprep.subr.mxu0 0.0
    %358 = vmatpush2.msra.mxu0 0.0
    %359 = vmatprep.subr.mxu0 0.0
    %360 = vmatpush2.msra.mxu0 0.0
    %361 = vmatprep.subr.mxu0 0.0
    %362 = vmatpush2.msra.mxu0 0.0
    %363 = vmatprep.subr.mxu0 0.0
    %364 = vmatpush2.msra.mxu0 0.0
    %365 = vmatprep.mubr.f32.mxu0 0.0
    %366 = vmatmul.mubr.f32.gmra.mxu0 %v61
    %v367 = vpop.f32.mrf.mxu0
    %v368 = vadd.f32 0.0, %v367
    %v369 = vpop.f32.mrf.mxu0
    %370 = vmatprep.mubr.f32.mxu0 0.0
    %371 = vmatmul.mubr.f32.gmra.mxu0 %v64
    %v372 = vpop.f32.mrf.mxu0
    %v373 = vadd.f32 0.0, %v372
    %v374 = vpop.f32.mrf.mxu0
    %375 = vmatprep.mubr.f32.mxu0 0.0
    %376 = vmatmul.mubr.f32.gmra.mxu0 %v67
    %v377 = vpop.f32.mrf.mxu0
    %v378 = vadd.f32 0.0, %v377
    %v379 = vpop.f32.mrf.mxu0
    %380 = vmatprep.mubr.f32.mxu0 0.0
    %381 = vmatmul.mubr.f32.gmra.mxu0 %v70
    %v382 = vpop.f32.mrf.mxu0
    %v383 = vadd.f32 0.0, %v382
    %v384 = vpop.f32.mrf.mxu0
    %385 = vmatprep.mubr.f32.mxu0 0.0
    %386 = vmatmul.mubr.f32.gmra.mxu0 %v73
    %v387 = vpop.f32.mrf.mxu0
    %v388 = vadd.f32 0.0, %v387
    %v389 = vpop.f32.mrf.mxu0
    %390 = vmatprep.mubr.f32.mxu0 0.0
    %391 = vmatmul.mubr.f32.gmra.mxu0 %v76
    %v392 = vpop.f32.mrf.mxu0
    %v393 = vadd.f32 0.0, %v392
    %v394 = vpop.f32.mrf.mxu0
    %395 = vdwg.mxu0
    %v397 = vsel %vm78, %v47, 0
    %399 = vmatprep.subr.mxu0 0.0
    %400 = vmatpush1.msra.mxu0 0.0
    %401 = vmatprep.subr.mxu0 0.0
    %402 = vmatpush1.msra.mxu0 0.0
    %403 = vmatprep.subr.mxu0 0.0
    %404 = vmatpush1.msra.mxu0 0.0
    %405 = vmatprep.subr.mxu0 0.0
    %406 = vmatpush1.msra.mxu0 0.0
    %407 = vmatprep.subr.mxu0 0.0
    %408 = vmatpush1.msra.mxu0 0.0
    %409 = vmatprep.subr.mxu0 0.0
    %410 = vmatpush1.msra.mxu0 0.0
    %411 = vmatprep.subr.mxu0 0.0
    %412 = vmatpush1.msra.mxu0 0.0
    %413 = vmatprep.subr.mxu0 0.0
    %414 = vmatpush1.msra.mxu0 0.0
    %415 = vmatprep.subr.mxu0 0.0
    %416 = vmatpush1.msra.mxu0 0.0
    %417 = vmatprep.subr.mxu0 0.0
    %418 = vmatpush1.msra.mxu0 0.0
    %419 = vmatprep.subr.mxu0 0.0
    %420 = vmatpush1.msra.mxu0 0.0
    %421 = vmatprep.subr.mxu0 0.0
    %422 = vmatpush1.msra.mxu0 0.0
    %423 = vmatprep.subr.mxu0 0.0
    %424 = vmatpush1.msra.mxu0 %v397
    %425 = vmatprep.subr.mxu0 0.0
    %426 = vmatpush1.msra.mxu0 %v46
    %427 = vmatprep.subr.mxu0 0.0
    %428 = vmatpush1.msra.mxu0 %v45
    %429 = vmatprep.subr.mxu0 0.0
    %430 = vmatpush1.msra.mxu0 %v44
    %431 = vmatprep.subr.mxu0 0.0
    %432 = vmatpush2.msra.mxu0 0.0
    %433 = vmatprep.subr.mxu0 0.0
    %434 = vmatpush2.msra.mxu0 0.0
    %435 = vmatprep.subr.mxu0 0.0
    %436 = vmatpush2.msra.mxu0 0.0
    %437 = vmatprep.subr.mxu0 0.0
    %438 = vmatpush2.msra.mxu0 0.0
    %439 = vmatprep.subr.mxu0 0.0
    %440 = vmatpush2.msra.mxu0 0.0
    %441 = vmatprep.subr.mxu0 0.0
    %442 = vmatpush2.msra.mxu0 0.0
    %443 = vmatprep.subr.mxu0 0.0
    %444 = vmatpush2.msra.mxu0 0.0
    %445 = vmatprep.subr.mxu0 0.0
    %446 = vmatpush2.msra.mxu0 0.0
    %447 = vmatprep.subr.mxu0 0.0
    %448 = vmatpush2.msra.mxu0 0.0
    %449 = vmatprep.subr.mxu0 0.0
    %450 = vmatpush2.msra.mxu0 0.0
    %451 = vmatprep.subr.mxu0 0.0
    %452 = vmatpush2.msra.mxu0 0.0
    %453 = vmatprep.subr.mxu0 0.0
    %454 = vmatpush2.msra.mxu0 0.0
    %455 = vmatprep.subr.mxu0 0.0
    %456 = vmatpush2.msra.mxu0 0.0
    %457 = vmatprep.subr.mxu0 0.0
    %458 = vmatpush2.msra.mxu0 0.0
    %459 = vmatprep.subr.mxu0 0.0
    %460 = vmatpush2.msra.mxu0 0.0
    %461 = vmatprep.subr.mxu0 0.0
    %462 = vmatpush2.msra.mxu0 0.0
    %463 = vmatprep.mubr.f32.mxu0 0.0
    %464 = vmatmul.mubr.f32.gmra.mxu0 %v178
    %v465 = vpop.f32.mrf.mxu0
    %v466 = vadd.f32 %v368, %v465
    %v467 = vpop.f32.mrf.mxu0
    %468 = vmatprep.mubr.f32.mxu0 0.0
    %469 = vmatmul.mubr.f32.gmra.mxu0 %v181
    %v470 = vpop.f32.mrf.mxu0
    %v471 = vadd.f32 %v373, %v470
    %v472 = vpop.f32.mrf.mxu0
    %473 = vmatprep.mubr.f32.mxu0 0.0
    %474 = vmatmul.mubr.f32.gmra.mxu0 %v184
    %v475 = vpop.f32.mrf.mxu0
    %v476 = vadd.f32 %v378, %v475
    %v477 = vpop.f32.mrf.mxu0
    %478 = vmatprep.mubr.f32.mxu0 0.0
    %479 = vmatmul.mubr.f32.gmra.mxu0 %v187
    %v480 = vpop.f32.mrf.mxu0
    %v481 = vadd.f32 %v383, %v480
    %v482 = vpop.f32.mrf.mxu0
    %483 = vmatprep.mubr.f32.mxu0 0.0
    %484 = vmatmul.mubr.f32.gmra.mxu0 %v190
    %v485 = vpop.f32.mrf.mxu0
    %v486 = vadd.f32 %v388, %v485
    %v487 = vpop.f32.mrf.mxu0
    %488 = vmatprep.mubr.f32.mxu0 0.0
    %489 = vmatmul.mubr.f32.gmra.mxu0 %v193
    %v490 = vpop.f32.mrf.mxu0
    %v491 = vadd.f32 %v393, %v490
    %v492 = vpop.f32.mrf.mxu0
    %493 = vdwg.mxu0
    %v494 = vld [vmem:[%s0 + $0x2] sm:$0xff]
    %v495 = vld [vmem:[%s0 + $0xa] sm:$0xff]
    %v496 = vld [vmem:[%s0 + $0x12] sm:$0xff]
    %v497 = vld [vmem:[%s0 + $0x22] sm:$0xff]
    %v498 = vld [vmem:[%s0 + $0x2a] sm:$0xff]
    %v499 = vld [vmem:[%s0 + $0x32] sm:$0xff]
    %s500 = scalar_lea.vmem %s1, 64
    %v501 = vld [vmem:[%s500] sm:$0xff]
    %v502 = vld [vmem:[%s500 + $0x8] sm:$0xff]
    %v503 = vld [vmem:[%s500 + $0x10] sm:$0xff]
    %v504 = vld [vmem:[%s500 + $0x18] sm:$0xf]
    %v506 = vsel %vm59, %v494, 0
    %v509 = vsel %vm59, %v495, 0
    %v512 = vsel %vm59, %v496, 0
    %v515 = vsel %vm59, %v497, 0
    %v518 = vsel %vm59, %v498, 0
    %v521 = vsel %vm59, %v499, 0
    %v524 = vsel %vm78, %v504, 0
    %526 = vmatprep.subr.mxu0 0.0
    %527 = vmatpush1.msra.mxu0 0.0
    %528 = vmatprep.subr.mxu0 0.0
    %529 = vmatpush1.msra.mxu0 0.0
    %530 = vmatprep.subr.mxu0 0.0
    %531 = vmatpush1.msra.mxu0 0.0
    %532 = vmatprep.subr.mxu0 0.0
    %533 = vmatpush1.msra.mxu0 0.0
    %534 = vmatprep.subr.mxu0 0.0
    %535 = vmatpush1.msra.mxu0 0.0
    %536 = vmatprep.subr.mxu0 0.0
    %537 = vmatpush1.msra.mxu0 0.0
    %538 = vmatprep.subr.mxu0 0.0
    %539 = vmatpush1.msra.mxu0 0.0
    %540 = vmatprep.subr.mxu0 0.0
    %541 = vmatpush1.msra.mxu0 0.0
    %542 = vmatprep.subr.mxu0 0.0
    %543 = vmatpush1.msra.mxu0 0.0
    %544 = vmatprep.subr.mxu0 0.0
    %545 = vmatpush1.msra.mxu0 0.0
    %546 = vmatprep.subr.mxu0 0.0
    %547 = vmatpush1.msra.mxu0 0.0
    %548 = vmatprep.subr.mxu0 0.0
    %549 = vmatpush1.msra.mxu0 0.0
    %550 = vmatprep.subr.mxu0 0.0
    %551 = vmatpush1.msra.mxu0 %v524
    %552 = vmatprep.subr.mxu0 0.0
    %553 = vmatpush1.msra.mxu0 %v503
    %554 = vmatprep.subr.mxu0 0.0
    %555 = vmatpush1.msra.mxu0 %v502
    %556 = vmatprep.subr.mxu0 0.0
    %557 = vmatpush1.msra.mxu0 %v501
    %558 = vmatprep.subr.mxu0 0.0
    %559 = vmatpush2.msra.mxu0 0.0
    %560 = vmatprep.subr.mxu0 0.0
    %561 = vmatpush2.msra.mxu0 0.0
    %562 = vmatprep.subr.mxu0 0.0
    %563 = vmatpush2.msra.mxu0 0.0
    %564 = vmatprep.subr.mxu0 0.0
    %565 = vmatpush2.msra.mxu0 0.0
    %566 = vmatprep.subr.mxu0 0.0
    %567 = vmatpush2.msra.mxu0 0.0
    %568 = vmatprep.subr.mxu0 0.0
    %569 = vmatpush2.msra.mxu0 0.0
    %570 = vmatprep.subr.mxu0 0.0
    %571 = vmatpush2.msra.mxu0 0.0
    %572 = vmatprep.subr.mxu0 0.0
    %573 = vmatpush2.msra.mxu0 0.0
    %574 = vmatprep.subr.mxu0 0.0
    %575 = vmatpush2.msra.mxu0 0.0
    %576 = vmatprep.subr.mxu0 0.0
    %577 = vmatpush2.msra.mxu0 0.0
    %578 = vmatprep.subr.mxu0 0.0
    %579 = vmatpush2.msra.mxu0 0.0
    %580 = vmatprep.subr.mxu0 0.0
    %581 = vmatpush2.msra.mxu0 0.0
    %582 = vmatprep.subr.mxu0 0.0
    %583 = vmatpush2.msra.mxu0 0.0
    %584 = vmatprep.subr.mxu0 0.0
    %585 = vmatpush2.msra.mxu0 0.0
    %586 = vmatprep.subr.mxu0 0.0
    %587 = vmatpush2.msra.mxu0 0.0
    %588 = vmatprep.subr.mxu0 0.0
    %589 = vmatpush2.msra.mxu0 0.0
    %590 = vmatprep.mubr.f32.mxu0 0.0
    %591 = vmatmul.mubr.f32.gmra.mxu0 %v506
    %v592 = vpop.f32.mrf.mxu0
    %v593 = vadd.f32 0.0, %v592
    %v594 = vpop.f32.mrf.mxu0
    %595 = vmatprep.mubr.f32.mxu0 0.0
    %596 = vmatmul.mubr.f32.gmra.mxu0 %v509
    %v597 = vpop.f32.mrf.mxu0
    %v598 = vadd.f32 0.0, %v597
    %v599 = vpop.f32.mrf.mxu0
    %600 = vmatprep.mubr.f32.mxu0 0.0
    %601 = vmatmul.mubr.f32.gmra.mxu0 %v512
    %v602 = vpop.f32.mrf.mxu0
    %v603 = vadd.f32 0.0, %v602
    %v604 = vpop.f32.mrf.mxu0
    %605 = vmatprep.mubr.f32.mxu0 0.0
    %606 = vmatmul.mubr.f32.gmra.mxu0 %v515
    %v607 = vpop.f32.mrf.mxu0
    %v608 = vadd.f32 0.0, %v607
    %v609 = vpop.f32.mrf.mxu0
    %610 = vmatprep.mubr.f32.mxu0 0.0
    %611 = vmatmul.mubr.f32.gmra.mxu0 %v518
    %v612 = vpop.f32.mrf.mxu0
    %v613 = vadd.f32 0.0, %v612
    %v614 = vpop.f32.mrf.mxu0
    %615 = vmatprep.mubr.f32.mxu0 0.0
    %616 = vmatmul.mubr.f32.gmra.mxu0 %v521
    %v617 = vpop.f32.mrf.mxu0
    %v618 = vadd.f32 0.0, %v617
    %v619 = vpop.f32.mrf.mxu0
    %620 = vdwg.mxu0
    %v621 = vadd.f32 %v265, %v593
    %v622 = vadd.f32 %v270, %v598
    %v623 = vadd.f32 %v275, %v603
    %v624 = vadd.f32 %v280, %v608
    %v625 = vadd.f32 %v285, %v613
    %v626 = vadd.f32 %v290, %v618
    %s627 = scalar_lea.vmem %s1, 224
    %v628 = vld [vmem:[%s627] sm:$0xff]
    %v629 = vld [vmem:[%s627 + $0x8] sm:$0xff]
    %v630 = vld [vmem:[%s627 + $0x10] sm:$0xff]
    %v631 = vld [vmem:[%s627 + $0x18] sm:$0xf]
    %v633 = vsel %vm78, %v631, 0
    %635 = vmatprep.subr.mxu0 0.0
    %636 = vmatpush1.msra.mxu0 0.0
    %637 = vmatprep.subr.mxu0 0.0
    %638 = vmatpush1.msra.mxu0 0.0
    %639 = vmatprep.subr.mxu0 0.0
    %640 = vmatpush1.msra.mxu0 0.0
    %641 = vmatprep.subr.mxu0 0.0
    %642 = vmatpush1.msra.mxu0 0.0
    %643 = vmatprep.subr.mxu0 0.0
    %644 = vmatpush1.msra.mxu0 0.0
    %645 = vmatprep.subr.mxu0 0.0
    %646 = vmatpush1.msra.mxu0 0.0
    %647 = vmatprep.subr.mxu0 0.0
    %648 = vmatpush1.msra.mxu0 0.0
    %649 = vmatprep.subr.mxu0 0.0
    %650 = vmatpush1.msra.mxu0 0.0
    %651 = vmatprep.subr.mxu0 0.0
    %652 = vmatpush1.msra.mxu0 0.0
    %653 = vmatprep.subr.mxu0 0.0
    %654 = vmatpush1.msra.mxu0 0.0
    %655 = vmatprep.subr.mxu0 0.0
    %656 = vmatpush1.msra.mxu0 0.0
    %657 = vmatprep.subr.mxu0 0.0
    %658 = vmatpush1.msra.mxu0 0.0
    %659 = vmatprep.subr.mxu0 0.0
    %660 = vmatpush1.msra.mxu0 %v633
    %661 = vmatprep.subr.mxu0 0.0
    %662 = vmatpush1.msra.mxu0 %v630
    %663 = vmatprep.subr.mxu0 0.0
    %664 = vmatpush1.msra.mxu0 %v629
    %665 = vmatprep.subr.mxu0 0.0
    %666 = vmatpush1.msra.mxu0 %v628
    %667 = vmatprep.subr.mxu0 0.0
    %668 = vmatpush2.msra.mxu0 0.0
    %669 = vmatprep.subr.mxu0 0.0
    %670 = vmatpush2.msra.mxu0 0.0
    %671 = vmatprep.subr.mxu0 0.0
    %672 = vmatpush2.msra.mxu0 0.0
    %673 = vmatprep.subr.mxu0 0.0
    %674 = vmatpush2.msra.mxu0 0.0
    %675 = vmatprep.subr.mxu0 0.0
    %676 = vmatpush2.msra.mxu0 0.0
    %677 = vmatprep.subr.mxu0 0.0
    %678 = vmatpush2.msra.mxu0 0.0
    %679 = vmatprep.subr.mxu0 0.0
    %680 = vmatpush2.msra.mxu0 0.0
    %681 = vmatprep.subr.mxu0 0.0
    %682 = vmatpush2.msra.mxu0 0.0
    %683 = vmatprep.subr.mxu0 0.0
    %684 = vmatpush2.msra.mxu0 0.0
    %685 = vmatprep.subr.mxu0 0.0
    %686 = vmatpush2.msra.mxu0 0.0
    %687 = vmatprep.subr.mxu0 0.0
    %688 = vmatpush2.msra.mxu0 0.0
    %689 = vmatprep.subr.mxu0 0.0
    %690 = vmatpush2.msra.mxu0 0.0
    %691 = vmatprep.subr.mxu0 0.0
    %692 = vmatpush2.msra.mxu0 0.0
    %693 = vmatprep.subr.mxu0 0.0
    %694 = vmatpush2.msra.mxu0 0.0
    %695 = vmatprep.subr.mxu0 0.0
    %696 = vmatpush2.msra.mxu0 0.0
    %697 = vmatprep.subr.mxu0 0.0
    %698 = vmatpush2.msra.mxu0 0.0
    %699 = vmatprep.mubr.f32.mxu0 0.0
    %700 = vmatmul.mubr.f32.gmra.mxu0 %v506
    %v701 = vpop.f32.mrf.mxu0
    %v702 = vadd.f32 0.0, %v701
    %v703 = vpop.f32.mrf.mxu0
    %704 = vmatprep.mubr.f32.mxu0 0.0
    %705 = vmatmul.mubr.f32.gmra.mxu0 %v509
    %v706 = vpop.f32.mrf.mxu0
    %v707 = vadd.f32 0.0, %v706
    %v708 = vpop.f32.mrf.mxu0
    %709 = vmatprep.mubr.f32.mxu0 0.0
    %710 = vmatmul.mubr.f32.gmra.mxu0 %v512
    %v711 = vpop.f32.mrf.mxu0
    %v712 = vadd.f32 0.0, %v711
    %v713 = vpop.f32.mrf.mxu0
    %714 = vmatprep.mubr.f32.mxu0 0.0
    %715 = vmatmul.mubr.f32.gmra.mxu0 %v515
    %v716 = vpop.f32.mrf.mxu0
    %v717 = vadd.f32 0.0, %v716
    %v718 = vpop.f32.mrf.mxu0
    %719 = vmatprep.mubr.f32.mxu0 0.0
    %720 = vmatmul.mubr.f32.gmra.mxu0 %v518
    %v721 = vpop.f32.mrf.mxu0
    %v722 = vadd.f32 0.0, %v721
    %v723 = vpop.f32.mrf.mxu0
    %724 = vmatprep.mubr.f32.mxu0 0.0
    %725 = vmatmul.mubr.f32.gmra.mxu0 %v521
    %v726 = vpop.f32.mrf.mxu0
    %v727 = vadd.f32 0.0, %v726
    %v728 = vpop.f32.mrf.mxu0
    %729 = vdwg.mxu0
    %v730 = vadd.f32 %v466, %v702
    %v731 = vadd.f32 %v471, %v707
    %v732 = vadd.f32 %v476, %v712
    %v733 = vadd.f32 %v481, %v717
    %v734 = vadd.f32 %v486, %v722
    %v735 = vadd.f32 %v491, %v727
    %v736 = vld [vmem:[%s0 + $0x3] sm:$0xff]
    %v737 = vld [vmem:[%s0 + $0xb] sm:$0xff]
    %v738 = vld [vmem:[%s0 + $0x13] sm:$0xff]
    %v739 = vld [vmem:[%s0 + $0x23] sm:$0xff]
    %v740 = vld [vmem:[%s0 + $0x2b] sm:$0xff]
    %v741 = vld [vmem:[%s0 + $0x33] sm:$0xff]
    %s742 = scalar_lea.vmem %s1, 96
    %v743 = vld [vmem:[%s742] sm:$0xff]
    %v744 = vld [vmem:[%s742 + $0x8] sm:$0xff]
    %v745 = vld [vmem:[%s742 + $0x10] sm:$0xff]
    %v746 = vld [vmem:[%s742 + $0x18] sm:$0xf]
    %v748 = vsel %vm59, %v736, 0
    %v751 = vsel %vm59, %v737, 0
    %v754 = vsel %vm59, %v738, 0
    %v757 = vsel %vm59, %v739, 0
    %v760 = vsel %vm59, %v740, 0
    %v763 = vsel %vm59, %v741, 0
    %v766 = vsel %vm78, %v746, 0
    %768 = vmatprep.subr.mxu0 0.0
    %769 = vmatpush1.msra.mxu0 0.0
    %770 = vmatprep.subr.mxu0 0.0
    %771 = vmatpush1.msra.mxu0 0.0
    %772 = vmatprep.subr.mxu0 0.0
    %773 = vmatpush1.msra.mxu0 0.0
    %774 = vmatprep.subr.mxu0 0.0
    %775 = vmatpush1.msra.mxu0 0.0
    %776 = vmatprep.subr.mxu0 0.0
    %777 = vmatpush1.msra.mxu0 0.0
    %778 = vmatprep.subr.mxu0 0.0
    %779 = vmatpush1.msra.mxu0 0.0
    %780 = vmatprep.subr.mxu0 0.0
    %781 = vmatpush1.msra.mxu0 0.0
    %782 = vmatprep.subr.mxu0 0.0
    %783 = vmatpush1.msra.mxu0 0.0
    %784 = vmatprep.subr.mxu0 0.0
    %785 = vmatpush1.msra.mxu0 0.0
    %786 = vmatprep.subr.mxu0 0.0
    %787 = vmatpush1.msra.mxu0 0.0
    %788 = vmatprep.subr.mxu0 0.0
    %789 = vmatpush1.msra.mxu0 0.0
    %790 = vmatprep.subr.mxu0 0.0
    %791 = vmatpush1.msra.mxu0 0.0
    %792 = vmatprep.subr.mxu0 0.0
    %793 = vmatpush1.msra.mxu0 %v766
    %794 = vmatprep.subr.mxu0 0.0
    %795 = vmatpush1.msra.mxu0 %v745
    %796 = vmatprep.subr.mxu0 0.0
    %797 = vmatpush1.msra.mxu0 %v744
    %798 = vmatprep.subr.mxu0 0.0
    %799 = vmatpush1.msra.mxu0 %v743
    %800 = vmatprep.subr.mxu0 0.0
    %801 = vmatpush2.msra.mxu0 0.0
    %802 = vmatprep.subr.mxu0 0.0
    %803 = vmatpush2.msra.mxu0 0.0
    %804 = vmatprep.subr.mxu0 0.0
    %805 = vmatpush2.msra.mxu0 0.0
    %806 = vmatprep.subr.mxu0 0.0
    %807 = vmatpush2.msra.mxu0 0.0
    %808 = vmatprep.subr.mxu0 0.0
    %809 = vmatpush2.msra.mxu0 0.0
    %810 = vmatprep.subr.mxu0 0.0
    %811 = vmatpush2.msra.mxu0 0.0
    %812 = vmatprep.subr.mxu0 0.0
    %813 = vmatpush2.msra.mxu0 0.0
    %814 = vmatprep.subr.mxu0 0.0
    %815 = vmatpush2.msra.mxu0 0.0
    %816 = vmatprep.subr.mxu0 0.0
    %817 = vmatpush2.msra.mxu0 0.0
    %818 = vmatprep.subr.mxu0 0.0
    %819 = vmatpush2.msra.mxu0 0.0
    %820 = vmatprep.subr.mxu0 0.0
    %821 = vmatpush2.msra.mxu0 0.0
    %822 = vmatprep.subr.mxu0 0.0
    %823 = vmatpush2.msra.mxu0 0.0
    %824 = vmatprep.subr.mxu0 0.0
    %825 = vmatpush2.msra.mxu0 0.0
    %826 = vmatprep.subr.mxu0 0.0
    %827 = vmatpush2.msra.mxu0 0.0
    %828 = vmatprep.subr.mxu0 0.0
    %829 = vmatpush2.msra.mxu0 0.0
    %830 = vmatprep.subr.mxu0 0.0
    %831 = vmatpush2.msra.mxu0 0.0
    %832 = vmatprep.mubr.f32.mxu0 0.0
    %833 = vmatmul.mubr.f32.gmra.mxu0 %v748
    %v834 = vpop.f32.mrf.mxu0
    %v835 = vadd.f32 0.0, %v834
    %v836 = vpop.f32.mrf.mxu0
    %837 = vmatprep.mubr.f32.mxu0 0.0
    %838 = vmatmul.mubr.f32.gmra.mxu0 %v751
    %v839 = vpop.f32.mrf.mxu0
    %v840 = vadd.f32 0.0, %v839
    %v841 = vpop.f32.mrf.mxu0
    %842 = vmatprep.mubr.f32.mxu0 0.0
    %843 = vmatmul.mubr.f32.gmra.mxu0 %v754
    %v844 = vpop.f32.mrf.mxu0
    %v845 = vadd.f32 0.0, %v844
    %v846 = vpop.f32.mrf.mxu0
    %847 = vmatprep.mubr.f32.mxu0 0.0
    %848 = vmatmul.mubr.f32.gmra.mxu0 %v757
    %v849 = vpop.f32.mrf.mxu0
    %v850 = vadd.f32 0.0, %v849
    %v851 = vpop.f32.mrf.mxu0
    %852 = vmatprep.mubr.f32.mxu0 0.0
    %853 = vmatmul.mubr.f32.gmra.mxu0 %v760
    %v854 = vpop.f32.mrf.mxu0
    %v855 = vadd.f32 0.0, %v854
    %v856 = vpop.f32.mrf.mxu0
    %857 = vmatprep.mubr.f32.mxu0 0.0
    %858 = vmatmul.mubr.f32.gmra.mxu0 %v763
    %v859 = vpop.f32.mrf.mxu0
    %v860 = vadd.f32 0.0, %v859
    %v861 = vpop.f32.mrf.mxu0
    %862 = vdwg.mxu0
    %v863 = vadd.f32 %v621, %v835
    %v864 = vadd.f32 %v622, %v840
    %v865 = vadd.f32 %v623, %v845
    %v866 = vadd.f32 %v624, %v850
    %v867 = vadd.f32 %v625, %v855
    %v868 = vadd.f32 %v626, %v860
    %s869 = scalar_lea.vmem %s1, 256
    %v870 = vld [vmem:[%s869] sm:$0xff]
    %v871 = vld [vmem:[%s869 + $0x8] sm:$0xff]
    %v872 = vld [vmem:[%s869 + $0x10] sm:$0xff]
    %v873 = vld [vmem:[%s869 + $0x18] sm:$0xf]
    %v875 = vsel %vm78, %v873, 0
    %877 = vmatprep.subr.mxu0 0.0
    %878 = vmatpush1.msra.mxu0 0.0
    %879 = vmatprep.subr.mxu0 0.0
    %880 = vmatpush1.msra.mxu0 0.0
    %881 = vmatprep.subr.mxu0 0.0
    %882 = vmatpush1.msra.mxu0 0.0
    %883 = vmatprep.subr.mxu0 0.0
    %884 = vmatpush1.msra.mxu0 0.0
    %885 = vmatprep.subr.mxu0 0.0
    %886 = vmatpush1.msra.mxu0 0.0
    %887 = vmatprep.subr.mxu0 0.0
    %888 = vmatpush1.msra.mxu0 0.0
    %889 = vmatprep.subr.mxu0 0.0
    %890 = vmatpush1.msra.mxu0 0.0
    %891 = vmatprep.subr.mxu0 0.0
    %892 = vmatpush1.msra.mxu0 0.0
    %893 = vmatprep.subr.mxu0 0.0
    %894 = vmatpush1.msra.mxu0 0.0
    %895 = vmatprep.subr.mxu0 0.0
    %896 = vmatpush1.msra.mxu0 0.0
    %897 = vmatprep.subr.mxu0 0.0
    %898 = vmatpush1.msra.mxu0 0.0
    %899 = vmatprep.subr.mxu0 0.0
    %900 = vmatpush1.msra.mxu0 0.0
    %901 = vmatprep.subr.mxu0 0.0
    %902 = vmatpush1.msra.mxu0 %v875
    %903 = vmatprep.subr.mxu0 0.0
    %904 = vmatpush1.msra.mxu0 %v872
    %905 = vmatprep.subr.mxu0 0.0
    %906 = vmatpush1.msra.mxu0 %v871
    %907 = vmatprep.subr.mxu0 0.0
    %908 = vmatpush1.msra.mxu0 %v870
    %909 = vmatprep.subr.mxu0 0.0
    %910 = vmatpush2.msra.mxu0 0.0
    %911 = vmatprep.subr.mxu0 0.0
    %912 = vmatpush2.msra.mxu0 0.0
    %913 = vmatprep.subr.mxu0 0.0
    %914 = vmatpush2.msra.mxu0 0.0
    %915 = vmatprep.subr.mxu0 0.0
    %916 = vmatpush2.msra.mxu0 0.0
    %917 = vmatprep.subr.mxu0 0.0
    %918 = vmatpush2.msra.mxu0 0.0
    %919 = vmatprep.subr.mxu0 0.0
    %920 = vmatpush2.msra.mxu0 0.0
    %921 = vmatprep.subr.mxu0 0.0
    %922 = vmatpush2.msra.mxu0 0.0
    %923 = vmatprep.subr.mxu0 0.0
    %924 = vmatpush2.msra.mxu0 0.0
    %925 = vmatprep.subr.mxu0 0.0
    %926 = vmatpush2.msra.mxu0 0.0
    %927 = vmatprep.subr.mxu0 0.0
    %928 = vmatpush2.msra.mxu0 0.0
    %929 = vmatprep.subr.mxu0 0.0
    %930 = vmatpush2.msra.mxu0 0.0
    %931 = vmatprep.subr.mxu0 0.0
    %932 = vmatpush2.msra.mxu0 0.0
    %933 = vmatprep.subr.mxu0 0.0
    %934 = vmatpush2.msra.mxu0 0.0
    %935 = vmatprep.subr.mxu0 0.0
    %936 = vmatpush2.msra.mxu0 0.0
    %937 = vmatprep.subr.mxu0 0.0
    %938 = vmatpush2.msra.mxu0 0.0
    %939 = vmatprep.subr.mxu0 0.0
    %940 = vmatpush2.msra.mxu0 0.0
    %941 = vmatprep.mubr.f32.mxu0 0.0
    %942 = vmatmul.mubr.f32.gmra.mxu0 %v748
    %v943 = vpop.f32.mrf.mxu0
    %v944 = vadd.f32 0.0, %v943
    %v945 = vpop.f32.mrf.mxu0
    %946 = vmatprep.mubr.f32.mxu0 0.0
    %947 = vmatmul.mubr.f32.gmra.mxu0 %v751
    %v948 = vpop.f32.mrf.mxu0
    %v949 = vadd.f32 0.0, %v948
    %v950 = vpop.f32.mrf.mxu0
    %951 = vmatprep.mubr.f32.mxu0 0.0
    %952 = vmatmul.mubr.f32.gmra.mxu0 %v754
    %v953 = vpop.f32.mrf.mxu0
    %v954 = vadd.f32 0.0, %v953
    %v955 = vpop.f32.mrf.mxu0
    %956 = vmatprep.mubr.f32.mxu0 0.0
    %957 = vmatmul.mubr.f32.gmra.mxu0 %v757
    %v958 = vpop.f32.mrf.mxu0
    %v959 = vadd.f32 0.0, %v958
    %v960 = vpop.f32.mrf.mxu0
    %961 = vmatprep.mubr.f32.mxu0 0.0
    %962 = vmatmul.mubr.f32.gmra.mxu0 %v760
    %v963 = vpop.f32.mrf.mxu0
    %v964 = vadd.f32 0.0, %v963
    %v965 = vpop.f32.mrf.mxu0
    %966 = vmatprep.mubr.f32.mxu0 0.0
    %967 = vmatmul.mubr.f32.gmra.mxu0 %v763
    %v968 = vpop.f32.mrf.mxu0
    %v969 = vadd.f32 0.0, %v968
    %v970 = vpop.f32.mrf.mxu0
    %971 = vdwg.mxu0
    %v972 = vadd.f32 %v730, %v944
    %v973 = vadd.f32 %v731, %v949
    %v974 = vadd.f32 %v732, %v954
    %v975 = vadd.f32 %v733, %v959
    %v976 = vadd.f32 %v734, %v964
    %v977 = vadd.f32 %v735, %v969
    %v978 = vld [vmem:[%s0 + $0x4] sm:$0xff]
    %v979 = vld [vmem:[%s0 + $0xc] sm:$0xff]
    %v980 = vld [vmem:[%s0 + $0x14] sm:$0xff]
    %v981 = vld [vmem:[%s0 + $0x24] sm:$0xff]
    %v982 = vld [vmem:[%s0 + $0x2c] sm:$0xff]
    %v983 = vld [vmem:[%s0 + $0x34] sm:$0xff]
    %s984 = scalar_lea.vmem %s1, 128
    %v985 = vld [vmem:[%s984] sm:$0xff]
    %v986 = vld [vmem:[%s984 + $0x8] sm:$0xff]
    %v987 = vld [vmem:[%s984 + $0x10] sm:$0xff]
    %v988 = vld [vmem:[%s984 + $0x18] sm:$0xf]
    %v990 = vsel %vm59, %v978, 0
    %v993 = vsel %vm59, %v979, 0
    %v996 = vsel %vm59, %v980, 0
    %v999 = vsel %vm59, %v981, 0
    %v1002 = vsel %vm59, %v982, 0
    %v1005 = vsel %vm59, %v983, 0
    %v1008 = vsel %vm78, %v988, 0
    %1010 = vmatprep.subr.mxu0 0.0
    %1011 = vmatpush1.msra.mxu0 0.0
    %1012 = vmatprep.subr.mxu0 0.0
    %1013 = vmatpush1.msra.mxu0 0.0
    %1014 = vmatprep.subr.mxu0 0.0
    %1015 = vmatpush1.msra.mxu0 0.0
    %1016 = vmatprep.subr.mxu0 0.0
    %1017 = vmatpush1.msra.mxu0 0.0
    %1018 = vmatprep.subr.mxu0 0.0
    %1019 = vmatpush1.msra.mxu0 0.0
    %1020 = vmatprep.subr.mxu0 0.0
    %1021 = vmatpush1.msra.mxu0 0.0
    %1022 = vmatprep.subr.mxu0 0.0
    %1023 = vmatpush1.msra.mxu0 0.0
    %1024 = vmatprep.subr.mxu0 0.0
    %1025 = vmatpush1.msra.mxu0 0.0
    %1026 = vmatprep.subr.mxu0 0.0
    %1027 = vmatpush1.msra.mxu0 0.0
    %1028 = vmatprep.subr.mxu0 0.0
    %1029 = vmatpush1.msra.mxu0 0.0
    %1030 = vmatprep.subr.mxu0 0.0
    %1031 = vmatpush1.msra.mxu0 0.0
    %1032 = vmatprep.subr.mxu0 0.0
    %1033 = vmatpush1.msra.mxu0 0.0
    %1034 = vmatprep.subr.mxu0 0.0
    %1035 = vmatpush1.msra.mxu0 %v1008
    %1036 = vmatprep.subr.mxu0 0.0
    %1037 = vmatpush1.msra.mxu0 %v987
    %1038 = vmatprep.subr.mxu0 0.0
    %1039 = vmatpush1.msra.mxu0 %v986
    %1040 = vmatprep.subr.mxu0 0.0
    %1041 = vmatpush1.msra.mxu0 %v985
    %1042 = vmatprep.subr.mxu0 0.0
    %1043 = vmatpush2.msra.mxu0 0.0
    %1044 = vmatprep.subr.mxu0 0.0
    %1045 = vmatpush2.msra.mxu0 0.0
    %1046 = vmatprep.subr.mxu0 0.0
    %1047 = vmatpush2.msra.mxu0 0.0
    %1048 = vmatprep.subr.mxu0 0.0
    %1049 = vmatpush2.msra.mxu0 0.0
    %1050 = vmatprep.subr.mxu0 0.0
    %1051 = vmatpush2.msra.mxu0 0.0
    %1052 = vmatprep.subr.mxu0 0.0
    %1053 = vmatpush2.msra.mxu0 0.0
    %1054 = vmatprep.subr.mxu0 0.0
    %1055 = vmatpush2.msra.mxu0 0.0
    %1056 = vmatprep.subr.mxu0 0.0
    %1057 = vmatpush2.msra.mxu0 0.0
    %1058 = vmatprep.subr.mxu0 0.0
    %1059 = vmatpush2.msra.mxu0 0.0
    %1060 = vmatprep.subr.mxu0 0.0
    %1061 = vmatpush2.msra.mxu0 0.0
    %1062 = vmatprep.subr.mxu0 0.0
    %1063 = vmatpush2.msra.mxu0 0.0
    %1064 = vmatprep.subr.mxu0 0.0
    %1065 = vmatpush2.msra.mxu0 0.0
    %1066 = vmatprep.subr.mxu0 0.0
    %1067 = vmatpush2.msra.mxu0 0.0
    %1068 = vmatprep.subr.mxu0 0.0
    %1069 = vmatpush2.msra.mxu0 0.0
    %1070 = vmatprep.subr.mxu0 0.0
    %1071 = vmatpush2.msra.mxu0 0.0
    %1072 = vmatprep.subr.mxu0 0.0
    %1073 = vmatpush2.msra.mxu0 0.0
    %1074 = vmatprep.mubr.f32.mxu0 0.0
    %1075 = vmatmul.mubr.f32.gmra.mxu0 %v990
    %v1076 = vpop.f32.mrf.mxu0
    %v1077 = vadd.f32 0.0, %v1076
    %v1078 = vpop.f32.mrf.mxu0
    %1079 = vmatprep.mubr.f32.mxu0 0.0
    %1080 = vmatmul.mubr.f32.gmra.mxu0 %v993
    %v1081 = vpop.f32.mrf.mxu0
    %v1082 = vadd.f32 0.0, %v1081
    %v1083 = vpop.f32.mrf.mxu0
    %1084 = vmatprep.mubr.f32.mxu0 0.0
    %1085 = vmatmul.mubr.f32.gmra.mxu0 %v996
    %v1086 = vpop.f32.mrf.mxu0
    %v1087 = vadd.f32 0.0, %v1086
    %v1088 = vpop.f32.mrf.mxu0
    %1089 = vmatprep.mubr.f32.mxu0 0.0
    %1090 = vmatmul.mubr.f32.gmra.mxu0 %v999
    %v1091 = vpop.f32.mrf.mxu0
    %v1092 = vadd.f32 0.0, %v1091
    %v1093 = vpop.f32.mrf.mxu0
    %1094 = vmatprep.mubr.f32.mxu0 0.0
    %1095 = vmatmul.mubr.f32.gmra.mxu0 %v1002
    %v1096 = vpop.f32.mrf.mxu0
    %v1097 = vadd.f32 0.0, %v1096
    %v1098 = vpop.f32.mrf.mxu0
    %1099 = vmatprep.mubr.f32.mxu0 0.0
    %1100 = vmatmul.mubr.f32.gmra.mxu0 %v1005
    %v1101 = vpop.f32.mrf.mxu0
    %v1102 = vadd.f32 0.0, %v1101
    %v1103 = vpop.f32.mrf.mxu0
    %1104 = vdwg.mxu0
    %v1105 = vadd.f32 %v863, %v1077
    %v1106 = vadd.f32 %v864, %v1082
    %v1107 = vadd.f32 %v865, %v1087
    %v1108 = vadd.f32 %v866, %v1092
    %v1109 = vadd.f32 %v867, %v1097
    %v1110 = vadd.f32 %v868, %v1102
    %s1111 = scalar_lea.vmem %s1, 288
    %v1112 = vld [vmem:[%s1111] sm:$0xff]
    %v1113 = vld [vmem:[%s1111 + $0x8] sm:$0xff]
    %v1114 = vld [vmem:[%s1111 + $0x10] sm:$0xff]
    %v1115 = vld [vmem:[%s1111 + $0x18] sm:$0xf]
    %v1117 = vsel %vm78, %v1115, 0
    %1119 = vmatprep.subr.mxu0 0.0
    %1120 = vmatpush1.msra.mxu0 0.0
    %1121 = vmatprep.subr.mxu0 0.0
    %1122 = vmatpush1.msra.mxu0 0.0
    %1123 = vmatprep.subr.mxu0 0.0
    %1124 = vmatpush1.msra.mxu0 0.0
    %1125 = vmatprep.subr.mxu0 0.0
    %1126 = vmatpush1.msra.mxu0 0.0
    %1127 = vmatprep.subr.mxu0 0.0
    %1128 = vmatpush1.msra.mxu0 0.0
    %1129 = vmatprep.subr.mxu0 0.0
    %1130 = vmatpush1.msra.mxu0 0.0
    %1131 = vmatprep.subr.mxu0 0.0
    %1132 = vmatpush1.msra.mxu0 0.0
    %1133 = vmatprep.subr.mxu0 0.0
    %1134 = vmatpush1.msra.mxu0 0.0
    %1135 = vmatprep.subr.mxu0 0.0
    %1136 = vmatpush1.msra.mxu0 0.0
    %1137 = vmatprep.subr.mxu0 0.0
    %1138 = vmatpush1.msra.mxu0 0.0
    %1139 = vmatprep.subr.mxu0 0.0
    %1140 = vmatpush1.msra.mxu0 0.0
    %1141 = vmatprep.subr.mxu0 0.0
    %1142 = vmatpush1.msra.mxu0 0.0
    %1143 = vmatprep.subr.mxu0 0.0
    %1144 = vmatpush1.msra.mxu0 %v1117
    %1145 = vmatprep.subr.mxu0 0.0
    %1146 = vmatpush1.msra.mxu0 %v1114
    %1147 = vmatprep.subr.mxu0 0.0
    %1148 = vmatpush1.msra.mxu0 %v1113
    %1149 = vmatprep.subr.mxu0 0.0
    %1150 = vmatpush1.msra.mxu0 %v1112
    %1151 = vmatprep.subr.mxu0 0.0
    %1152 = vmatpush2.msra.mxu0 0.0
    %1153 = vmatprep.subr.mxu0 0.0
    %1154 = vmatpush2.msra.mxu0 0.0
    %1155 = vmatprep.subr.mxu0 0.0
    %1156 = vmatpush2.msra.mxu0 0.0
    %1157 = vmatprep.subr.mxu0 0.0
    %1158 = vmatpush2.msra.mxu0 0.0
    %1159 = vmatprep.subr.mxu0 0.0
    %1160 = vmatpush2.msra.mxu0 0.0
    %1161 = vmatprep.subr.mxu0 0.0
    %1162 = vmatpush2.msra.mxu0 0.0
    %1163 = vmatprep.subr.mxu0 0.0
    %1164 = vmatpush2.msra.mxu0 0.0
    %1165 = vmatprep.subr.mxu0 0.0
    %1166 = vmatpush2.msra.mxu0 0.0
    %1167 = vmatprep.subr.mxu0 0.0
    %1168 = vmatpush2.msra.mxu0 0.0
    %1169 = vmatprep.subr.mxu0 0.0
    %1170 = vmatpush2.msra.mxu0 0.0
    %1171 = vmatprep.subr.mxu0 0.0
    %1172 = vmatpush2.msra.mxu0 0.0
    %1173 = vmatprep.subr.mxu0 0.0
    %1174 = vmatpush2.msra.mxu0 0.0
    %1175 = vmatprep.subr.mxu0 0.0
    %1176 = vmatpush2.msra.mxu0 0.0
    %1177 = vmatprep.subr.mxu0 0.0
    %1178 = vmatpush2.msra.mxu0 0.0
    %1179 = vmatprep.subr.mxu0 0.0
    %1180 = vmatpush2.msra.mxu0 0.0
    %1181 = vmatprep.subr.mxu0 0.0
    %1182 = vmatpush2.msra.mxu0 0.0
    %1183 = vmatprep.mubr.f32.mxu0 0.0
    %1184 = vmatmul.mubr.f32.gmra.mxu0 %v990
    %v1185 = vpop.f32.mrf.mxu0
    %v1186 = vadd.f32 0.0, %v1185
    %v1187 = vpop.f32.mrf.mxu0
    %1188 = vmatprep.mubr.f32.mxu0 0.0
    %1189 = vmatmul.mubr.f32.gmra.mxu0 %v993
    %v1190 = vpop.f32.mrf.mxu0
    %v1191 = vadd.f32 0.0, %v1190
    %v1192 = vpop.f32.mrf.mxu0
    %1193 = vmatprep.mubr.f32.mxu0 0.0
    %1194 = vmatmul.mubr.f32.gmra.mxu0 %v996
    %v1195 = vpop.f32.mrf.mxu0
    %v1196 = vadd.f32 0.0, %v1195
    %v1197 = vpop.f32.mrf.mxu0
    %1198 = vmatprep.mubr.f32.mxu0 0.0
    %1199 = vmatmul.mubr.f32.gmra.mxu0 %v999
    %v1200 = vpop.f32.mrf.mxu0
    %v1201 = vadd.f32 0.0, %v1200
    %v1202 = vpop.f32.mrf.mxu0
    %1203 = vmatprep.mubr.f32.mxu0 0.0
    %1204 = vmatmul.mubr.f32.gmra.mxu0 %v1002
    %v1205 = vpop.f32.mrf.mxu0
    %v1206 = vadd.f32 0.0, %v1205
    %v1207 = vpop.f32.mrf.mxu0
    %1208 = vmatprep.mubr.f32.mxu0 0.0
    %1209 = vmatmul.mubr.f32.gmra.mxu0 %v1005
    %v1210 = vpop.f32.mrf.mxu0
    %v1211 = vadd.f32 0.0, %v1210
    %v1212 = vpop.f32.mrf.mxu0
    %1213 = vdwg.mxu0
    %v1214 = vadd.f32 %v972, %v1186
    %v1215 = vadd.f32 %v973, %v1191
    %v1216 = vadd.f32 %v974, %v1196
    %v1217 = vadd.f32 %v975, %v1201
    %v1218 = vadd.f32 %v976, %v1206
    %v1219 = vadd.f32 %v977, %v1211
    %v1220 = vmax.f32 %v1105, %v1214
    %v1221 = vmax.f32 %v1106, %v1215
    %v1222 = vmax.f32 %v1107, %v1216
    %v1223 = vmax.f32 %v1108, %v1217
    %v1224 = vmax.f32 %v1109, %v1218
    %v1225 = vmax.f32 %v1110, %v1219
    %vm1226 = vcmask 982016
    %1227 = vst.msk [vmem:[#allocation2] sm:$0xff] %vm1226, %v1220
    %1228 = vst.msk [vmem:[#allocation2 + $0x8] sm:$0xff] %vm1226, %v1221
    %1229 = vst.msk [vmem:[#allocation2 + $0x10] sm:$0xff] %vm1226, %v1222
    %1230 = vst.msk [vmem:[#allocation2 + $0x18] sm:$0xff] %vm1226, %v1223
    %1231 = vst.msk [vmem:[#allocation2 + $0x20] sm:$0xff] %vm1226, %v1224
    %1232 = vst.msk [vmem:[#allocation2 + $0x28] sm:$0xff] %vm1226, %v1225
    %v1233 = vld [vmem:[#allocation2] ss:$2 sm:$0xff]
    %s1234 = scalar_lea.vmem [#allocation2], 16
    %v1235 = vld [vmem:[%s1234] ss:$2 sm:$0xf]
    %s1236 = scalar_lea.vmem [#allocation2], 24
    %v1237 = vld [vmem:[%s1236] ss:$2 sm:$0xff]
    %s1238 = scalar_lea.vmem [#allocation2], 40
    %v1239 = vld [vmem:[%s1238] ss:$2 sm:$0xf]
    %s1240 = scalar_lea.vmem [#allocation2], 1
    %v1241 = vld [vmem:[%s1240] ss:$2 sm:$0xff]
    %s1242 = scalar_lea.vmem [#allocation2], 17
    %v1243 = vld [vmem:[%s1242] ss:$2 sm:$0xf]
    %s1244 = scalar_lea.vmem [#allocation2], 25
    %v1245 = vld [vmem:[%s1244] ss:$2 sm:$0xff]
    %s1246 = scalar_lea.vmem [#allocation2], 41
    %v1247 = vld [vmem:[%s1246] ss:$2 sm:$0xf]
    %v1248 = vmax.f32 %v1233, %v1241
    %v1249 = vmax.f32 %v1235, %v1243
    %v1250 = vmax.f32 %v1237, %v1245
    %v1251 = vmax.f32 %v1239, %v1247
    %v1252 = vld [vmem:[%s2] sm:$0x1]
    %v1254 = vlaneseq
    %v1255 = vshrl.u32 %v1254, 7
    %v1256 = vsub.s32 0, %v1255
    %v1257 = vrot.slane %v1252, %v1256
    %v1259 = vadd.f32 %v1248, %v1257
    %v1260 = vadd.f32 %v1249, %v1257
    %v1261 = vadd.f32 %v1250, %v1257
    %v1262 = vadd.f32 %v1251, %v1257
    %v1263 = vmax.f32 %v1259, 0.0
    %v1264 = vmax.f32 %v1260, 0.0
    %v1265 = vmax.f32 %v1261, 0.0
    %v1266 = vmax.f32 %v1262, 0.0
    %1267 = vst.msk [vmem:[#allocation3] sm:$0xff] %vm1226, %v1263
    %vm1268 = vcmask 977920
    %1269 = vst.msk [vmem:[#allocation3 + $0x8] sm:$0xf] %vm1268, %v1264
    %1270 = vst.msk [vmem:[#allocation3 + $0x10] sm:$0xff] %vm1226, %v1265
    %1271 = vst.msk [vmem:[#allocation3 + $0x18] sm:$0xf] %vm1268, %v1266
    %v1272 = vld [vmem:[#allocation3] sm:$0xff]
    %v1273 = vld [vmem:[#allocation3 + $0x10] sm:$0xff]
    %v1274 = vld [vmem:[%s3] sm:$0xff]
    %v1275 = vld [vmem:[%s3 + $0x8] sm:$0xff]
    %v1276 = vld [vmem:[%s3 + $0x10] sm:$0xff]
    %v1277 = vld [vmem:[%s3 + $0x18] sm:$0xff]
    %v1278 = vld [vmem:[%s3 + $0x20] sm:$0xff]
    %v1279 = vld [vmem:[%s3 + $0x28] sm:$0xff]
    %v1280 = vld [vmem:[%s3 + $0x30] sm:$0xff]
    %v1281 = vld [vmem:[%s3 + $0x38] sm:$0xff]
    %v1282 = vld [vmem:[%s3 + $0x40] sm:$0xff]
    %v1283 = vld [vmem:[%s3 + $0x48] sm:$0xff]
    %v1284 = vld [vmem:[%s3 + $0x50] sm:$0xff]
    %v1285 = vld [vmem:[%s3 + $0x58] sm:$0xff]
    %v1286 = vld [vmem:[%s3 + $0x60] sm:$0xff]
    %v1287 = vld [vmem:[%s3 + $0x68] sm:$0xff]
    %v1288 = vld [vmem:[%s3 + $0x70] sm:$0xff]
    %s1289 = scalar_lea.vmem %s3, 600
    %v1290 = vld [vmem:[%s1289] sm:$0xff]
    %v1291 = vld [vmem:[%s1289 + $0x8] sm:$0xff]
    %v1292 = vld [vmem:[%s1289 + $0x10] sm:$0xff]
    %v1293 = vld [vmem:[%s1289 + $0x18] sm:$0xff]
    %v1294 = vld [vmem:[%s1289 + $0x20] sm:$0xff]
    %v1295 = vld [vmem:[%s1289 + $0x28] sm:$0xff]
    %v1296 = vld [vmem:[%s1289 + $0x30] sm:$0xff]
    %v1297 = vld [vmem:[%s1289 + $0x38] sm:$0xff]
    %v1298 = vld [vmem:[%s1289 + $0x40] sm:$0xff]
    %v1299 = vld [vmem:[%s1289 + $0x48] sm:$0xff]
    %v1300 = vld [vmem:[%s1289 + $0x50] sm:$0xff]
    %v1301 = vld [vmem:[%s1289 + $0x58] sm:$0xff]
    %v1302 = vld [vmem:[%s1289 + $0x60] sm:$0xff]
    %v1303 = vld [vmem:[%s1289 + $0x68] sm:$0xff]
    %v1304 = vld [vmem:[%s1289 + $0x70] sm:$0xff]
    %v1305 = vld [vmem:[#allocation3 + $0x1] sm:$0xff]
    %v1306 = vld [vmem:[#allocation3 + $0x11] sm:$0xff]
    %s1307 = scalar_lea.vmem %s3, 120
    %v1308 = vld [vmem:[%s1307] sm:$0xff]
    %v1309 = vld [vmem:[%s1307 + $0x8] sm:$0xff]
    %v1310 = vld [vmem:[%s1307 + $0x10] sm:$0xff]
    %v1311 = vld [vmem:[%s1307 + $0x18] sm:$0xff]
    %v1312 = vld [vmem:[%s1307 + $0x20] sm:$0xff]
    %v1313 = vld [vmem:[%s1307 + $0x28] sm:$0xff]
    %v1314 = vld [vmem:[%s1307 + $0x30] sm:$0xff]
    %v1315 = vld [vmem:[%s1307 + $0x38] sm:$0xff]
    %v1316 = vld [vmem:[%s1307 + $0x40] sm:$0xff]
    %v1317 = vld [vmem:[%s1307 + $0x48] sm:$0xff]
    %v1318 = vld [vmem:[%s1307 + $0x50] sm:$0xff]
    %v1319 = vld [vmem:[%s1307 + $0x58] sm:$0xff]
    %v1320 = vld [vmem:[%s1307 + $0x60] sm:$0xff]
    %v1321 = vld [vmem:[%s1307 + $0x68] sm:$0xff]
    %v1322 = vld [vmem:[%s1307 + $0x70] sm:$0xff]
    %v1324 = vsel %vm1226, %v1305, 0
    %v1327 = vsel %vm1226, %v1306, 0
    %1329 = vmatprep.subr.mxu0 0.0
    %1330 = vmatpush1.msra.mxu0 0.0
    %1331 = vmatprep.subr.mxu0 0.0
    %1332 = vmatpush1.msra.mxu0 %v1322
    %1333 = vmatprep.subr.mxu0 0.0
    %1334 = vmatpush1.msra.mxu0 %v1321
    %1335 = vmatprep.subr.mxu0 0.0
    %1336 = vmatpush1.msra.mxu0 %v1320
    %1337 = vmatprep.subr.mxu0 0.0
    %1338 = vmatpush1.msra.mxu0 %v1319
    %1339 = vmatprep.subr.mxu0 0.0
    %1340 = vmatpush1.msra.mxu0 %v1318
    %1341 = vmatprep.subr.mxu0 0.0
    %1342 = vmatpush1.msra.mxu0 %v1317
    %1343 = vmatprep.subr.mxu0 0.0
    %1344 = vmatpush1.msra.mxu0 %v1316
    %1345 = vmatprep.subr.mxu0 0.0
    %1346 = vmatpush1.msra.mxu0 %v1315
    %1347 = vmatprep.subr.mxu0 0.0
    %1348 = vmatpush1.msra.mxu0 %v1314
    %1349 = vmatprep.subr.mxu0 0.0
    %1350 = vmatpush1.msra.mxu0 %v1313
    %1351 = vmatprep.subr.mxu0 0.0
    %1352 = vmatpush1.msra.mxu0 %v1312
    %1353 = vmatprep.subr.mxu0 0.0
    %1354 = vmatpush1.msra.mxu0 %v1311
    %1355 = vmatprep.subr.mxu0 0.0
    %1356 = vmatpush1.msra.mxu0 %v1310
    %1357 = vmatprep.subr.mxu0 0.0
    %1358 = vmatpush1.msra.mxu0 %v1309
    %1359 = vmatprep.subr.mxu0 0.0
    %1360 = vmatpush1.msra.mxu0 %v1308
    %1361 = vmatprep.subr.mxu0 0.0
    %1362 = vmatpush2.msra.mxu0 0.0
    %1363 = vmatprep.subr.mxu0 0.0
    %1364 = vmatpush2.msra.mxu0 0.0
    %1365 = vmatprep.subr.mxu0 0.0
    %1366 = vmatpush2.msra.mxu0 0.0
    %1367 = vmatprep.subr.mxu0 0.0
    %1368 = vmatpush2.msra.mxu0 0.0
    %1369 = vmatprep.subr.mxu0 0.0
    %1370 = vmatpush2.msra.mxu0 0.0
    %1371 = vmatprep.subr.mxu0 0.0
    %1372 = vmatpush2.msra.mxu0 0.0
    %1373 = vmatprep.subr.mxu0 0.0
    %1374 = vmatpush2.msra.mxu0 0.0
    %1375 = vmatprep.subr.mxu0 0.0
    %1376 = vmatpush2.msra.mxu0 0.0
    %1377 = vmatprep.subr.mxu0 0.0
    %1378 = vmatpush2.msra.mxu0 0.0
    %1379 = vmatprep.subr.mxu0 0.0
    %1380 = vmatpush2.msra.mxu0 0.0
    %1381 = vmatprep.subr.mxu0 0.0
    %1382 = vmatpush2.msra.mxu0 0.0
    %1383 = vmatprep.subr.mxu0 0.0
    %1384 = vmatpush2.msra.mxu0 0.0
    %1385 = vmatprep.subr.mxu0 0.0
    %1386 = vmatpush2.msra.mxu0 0.0
    %1387 = vmatprep.subr.mxu0 0.0
    %1388 = vmatpush2.msra.mxu0 0.0
    %1389 = vmatprep.subr.mxu0 0.0
    %1390 = vmatpush2.msra.mxu0 0.0
    %1391 = vmatprep.subr.mxu0 0.0
    %1392 = vmatpush2.msra.mxu0 0.0
    %1393 = vmatprep.mubr.f32.mxu0 0.0
    %1394 = vmatmul.mubr.f32.gmra.mxu0 %v1324
    %v1395 = vpop.f32.mrf.mxu0
    %v1396 = vadd.f32 0.0, %v1395
    %v1397 = vpop.f32.mrf.mxu0
    %1398 = vmatprep.mubr.f32.mxu0 0.0
    %1399 = vmatmul.mubr.f32.gmra.mxu0 %v1327
    %v1400 = vpop.f32.mrf.mxu0
    %v1401 = vadd.f32 0.0, %v1400
    %v1402 = vpop.f32.mrf.mxu0
    %1403 = vdwg.mxu0
    %v1405 = vsel %vm1226, %v1272, 0
    %v1408 = vsel %vm1226, %v1273, 0
    %1410 = vmatprep.subr.mxu0 0.0
    %1411 = vmatpush1.msra.mxu0 0.0
    %1412 = vmatprep.subr.mxu0 0.0
    %1413 = vmatpush1.msra.mxu0 %v1288
    %1414 = vmatprep.subr.mxu0 0.0
    %1415 = vmatpush1.msra.mxu0 %v1287
    %1416 = vmatprep.subr.mxu0 0.0
    %1417 = vmatpush1.msra.mxu0 %v1286
    %1418 = vmatprep.subr.mxu0 0.0
    %1419 = vmatpush1.msra.mxu0 %v1285
    %1420 = vmatprep.subr.mxu0 0.0
    %1421 = vmatpush1.msra.mxu0 %v1284
    %1422 = vmatprep.subr.mxu0 0.0
    %1423 = vmatpush1.msra.mxu0 %v1283
    %1424 = vmatprep.subr.mxu0 0.0
    %1425 = vmatpush1.msra.mxu0 %v1282
    %1426 = vmatprep.subr.mxu0 0.0
    %1427 = vmatpush1.msra.mxu0 %v1281
    %1428 = vmatprep.subr.mxu0 0.0
    %1429 = vmatpush1.msra.mxu0 %v1280
    %1430 = vmatprep.subr.mxu0 0.0
    %1431 = vmatpush1.msra.mxu0 %v1279
    %1432 = vmatprep.subr.mxu0 0.0
    %1433 = vmatpush1.msra.mxu0 %v1278
    %1434 = vmatprep.subr.mxu0 0.0
    %1435 = vmatpush1.msra.mxu0 %v1277
    %1436 = vmatprep.subr.mxu0 0.0
    %1437 = vmatpush1.msra.mxu0 %v1276
    %1438 = vmatprep.subr.mxu0 0.0
    %1439 = vmatpush1.msra.mxu0 %v1275
    %1440 = vmatprep.subr.mxu0 0.0
    %1441 = vmatpush1.msra.mxu0 %v1274
    %1442 = vmatprep.subr.mxu0 0.0
    %1443 = vmatpush2.msra.mxu0 0.0
    %1444 = vmatprep.subr.mxu0 0.0
    %1445 = vmatpush2.msra.mxu0 0.0
    %1446 = vmatprep.subr.mxu0 0.0
    %1447 = vmatpush2.msra.mxu0 0.0
    %1448 = vmatprep.subr.mxu0 0.0
    %1449 = vmatpush2.msra.mxu0 0.0
    %1450 = vmatprep.subr.mxu0 0.0
    %1451 = vmatpush2.msra.mxu0 0.0
    %1452 = vmatprep.subr.mxu0 0.0
    %1453 = vmatpush2.msra.mxu0 0.0
    %1454 = vmatprep.subr.mxu0 0.0
    %1455 = vmatpush2.msra.mxu0 0.0
    %1456 = vmatprep.subr.mxu0 0.0
    %1457 = vmatpush2.msra.mxu0 0.0
    %1458 = vmatprep.subr.mxu0 0.0
    %1459 = vmatpush2.msra.mxu0 0.0
    %1460 = vmatprep.subr.mxu0 0.0
    %1461 = vmatpush2.msra.mxu0 0.0
    %1462 = vmatprep.subr.mxu0 0.0
    %1463 = vmatpush2.msra.mxu0 0.0
    %1464 = vmatprep.subr.mxu0 0.0
    %1465 = vmatpush2.msra.mxu0 0.0
    %1466 = vmatprep.subr.mxu0 0.0
    %1467 = vmatpush2.msra.mxu0 0.0
    %1468 = vmatprep.subr.mxu0 0.0
    %1469 = vmatpush2.msra.mxu0 0.0
    %1470 = vmatprep.subr.mxu0 0.0
    %1471 = vmatpush2.msra.mxu0 0.0
    %1472 = vmatprep.subr.mxu0 0.0
    %1473 = vmatpush2.msra.mxu0 0.0
    %1474 = vmatprep.mubr.f32.mxu0 0.0
    %1475 = vmatmul.mubr.f32.gmra.mxu0 %v1405
    %v1476 = vpop.f32.mrf.mxu0
    %v1477 = vadd.f32 %v1396, %v1476
    %v1478 = vpop.f32.mrf.mxu0
    %1479 = vmatprep.mubr.f32.mxu0 0.0
    %1480 = vmatmul.mubr.f32.gmra.mxu0 %v1408
    %v1481 = vpop.f32.mrf.mxu0
    %v1482 = vadd.f32 %v1401, %v1481
    %v1483 = vpop.f32.mrf.mxu0
    %1484 = vdwg.mxu0
    %s1485 = scalar_lea.vmem %s3, 720
    %v1486 = vld [vmem:[%s1485] sm:$0xff]
    %v1487 = vld [vmem:[%s1485 + $0x8] sm:$0xff]
    %v1488 = vld [vmem:[%s1485 + $0x10] sm:$0xff]
    %v1489 = vld [vmem:[%s1485 + $0x18] sm:$0xff]
    %v1490 = vld [vmem:[%s1485 + $0x20] sm:$0xff]
    %v1491 = vld [vmem:[%s1485 + $0x28] sm:$0xff]
    %v1492 = vld [vmem:[%s1485 + $0x30] sm:$0xff]
    %v1493 = vld [vmem:[%s1485 + $0x38] sm:$0xff]
    %v1494 = vld [vmem:[%s1485 + $0x40] sm:$0xff]
    %v1495 = vld [vmem:[%s1485 + $0x48] sm:$0xff]
    %v1496 = vld [vmem:[%s1485 + $0x50] sm:$0xff]
    %v1497 = vld [vmem:[%s1485 + $0x58] sm:$0xff]
    %v1498 = vld [vmem:[%s1485 + $0x60] sm:$0xff]
    %v1499 = vld [vmem:[%s1485 + $0x68] sm:$0xff]
    %v1500 = vld [vmem:[%s1485 + $0x70] sm:$0xff]
    %1501 = vmatprep.subr.mxu0 0.0
    %1502 = vmatpush1.msra.mxu0 0.0
    %1503 = vmatprep.subr.mxu0 0.0
    %1504 = vmatpush1.msra.mxu0 %v1500
    %1505 = vmatprep.subr.mxu0 0.0
    %1506 = vmatpush1.msra.mxu0 %v1499
    %1507 = vmatprep.subr.mxu0 0.0
    %1508 = vmatpush1.msra.mxu0 %v1498
    %1509 = vmatprep.subr.mxu0 0.0
    %1510 = vmatpush1.msra.mxu0 %v1497
    %1511 = vmatprep.subr.mxu0 0.0
    %1512 = vmatpush1.msra.mxu0 %v1496
    %1513 = vmatprep.subr.mxu0 0.0
    %1514 = vmatpush1.msra.mxu0 %v1495
    %1515 = vmatprep.subr.mxu0 0.0
    %1516 = vmatpush1.msra.mxu0 %v1494
    %1517 = vmatprep.subr.mxu0 0.0
    %1518 = vmatpush1.msra.mxu0 %v1493
    %1519 = vmatprep.subr.mxu0 0.0
    %1520 = vmatpush1.msra.mxu0 %v1492
    %1521 = vmatprep.subr.mxu0 0.0
    %1522 = vmatpush1.msra.mxu0 %v1491
    %1523 = vmatprep.subr.mxu0 0.0
    %1524 = vmatpush1.msra.mxu0 %v1490
    %1525 = vmatprep.subr.mxu0 0.0
    %1526 = vmatpush1.msra.mxu0 %v1489
    %1527 = vmatprep.subr.mxu0 0.0
    %1528 = vmatpush1.msra.mxu0 %v1488
    %1529 = vmatprep.subr.mxu0 0.0
    %1530 = vmatpush1.msra.mxu0 %v1487
    %1531 = vmatprep.subr.mxu0 0.0
    %1532 = vmatpush1.msra.mxu0 %v1486
    %1533 = vmatprep.subr.mxu0 0.0
    %1534 = vmatpush2.msra.mxu0 0.0
    %1535 = vmatprep.subr.mxu0 0.0
    %1536 = vmatpush2.msra.mxu0 0.0
    %1537 = vmatprep.subr.mxu0 0.0
    %1538 = vmatpush2.msra.mxu0 0.0
    %1539 = vmatprep.subr.mxu0 0.0
    %1540 = vmatpush2.msra.mxu0 0.0
    %1541 = vmatprep.subr.mxu0 0.0
    %1542 = vmatpush2.msra.mxu0 0.0
    %1543 = vmatprep.subr.mxu0 0.0
    %1544 = vmatpush2.msra.mxu0 0.0
    %1545 = vmatprep.subr.mxu0 0.0
    %1546 = vmatpush2.msra.mxu0 0.0
    %1547 = vmatprep.subr.mxu0 0.0
    %1548 = vmatpush2.msra.mxu0 0.0
    %1549 = vmatprep.subr.mxu0 0.0
    %1550 = vmatpush2.msra.mxu0 0.0
    %1551 = vmatprep.subr.mxu0 0.0
    %1552 = vmatpush2.msra.mxu0 0.0
    %1553 = vmatprep.subr.mxu0 0.0
    %1554 = vmatpush2.msra.mxu0 0.0
    %1555 = vmatprep.subr.mxu0 0.0
    %1556 = vmatpush2.msra.mxu0 0.0
    %1557 = vmatprep.subr.mxu0 0.0
    %1558 = vmatpush2.msra.mxu0 0.0
    %1559 = vmatprep.subr.mxu0 0.0
    %1560 = vmatpush2.msra.mxu0 0.0
    %1561 = vmatprep.subr.mxu0 0.0
    %1562 = vmatpush2.msra.mxu0 0.0
    %1563 = vmatprep.subr.mxu0 0.0
    %1564 = vmatpush2.msra.mxu0 0.0
    %1565 = vmatprep.mubr.f32.mxu0 0.0
    %1566 = vmatmul.mubr.f32.gmra.mxu0 %v1324
    %v1567 = vpop.f32.mrf.mxu0
    %v1568 = vadd.f32 0.0, %v1567
    %v1569 = vpop.f32.mrf.mxu0
    %1570 = vmatprep.mubr.f32.mxu0 0.0
    %1571 = vmatmul.mubr.f32.gmra.mxu0 %v1327
    %v1572 = vpop.f32.mrf.mxu0
    %v1573 = vadd.f32 0.0, %v1572
    %v1574 = vpop.f32.mrf.mxu0
    %1575 = vdwg.mxu0
    %1576 = vmatprep.subr.mxu0 0.0
    %1577 = vmatpush1.msra.mxu0 0.0
    %1578 = vmatprep.subr.mxu0 0.0
    %1579 = vmatpush1.msra.mxu0 %v1304
    %1580 = vmatprep.subr.mxu0 0.0
    %1581 = vmatpush1.msra.mxu0 %v1303
    %1582 = vmatprep.subr.mxu0 0.0
    %1583 = vmatpush1.msra.mxu0 %v1302
    %1584 = vmatprep.subr.mxu0 0.0
    %1585 = vmatpush1.msra.mxu0 %v1301
    %1586 = vmatprep.subr.mxu0 0.0
    %1587 = vmatpush1.msra.mxu0 %v1300
    %1588 = vmatprep.subr.mxu0 0.0
    %1589 = vmatpush1.msra.mxu0 %v1299
    %1590 = vmatprep.subr.mxu0 0.0
    %1591 = vmatpush1.msra.mxu0 %v1298
    %1592 = vmatprep.subr.mxu0 0.0
    %1593 = vmatpush1.msra.mxu0 %v1297
    %1594 = vmatprep.subr.mxu0 0.0
    %1595 = vmatpush1.msra.mxu0 %v1296
    %1596 = vmatprep.subr.mxu0 0.0
    %1597 = vmatpush1.msra.mxu0 %v1295
    %1598 = vmatprep.subr.mxu0 0.0
    %1599 = vmatpush1.msra.mxu0 %v1294
    %1600 = vmatprep.subr.mxu0 0.0
    %1601 = vmatpush1.msra.mxu0 %v1293
    %1602 = vmatprep.subr.mxu0 0.0
    %1603 = vmatpush1.msra.mxu0 %v1292
    %1604 = vmatprep.subr.mxu0 0.0
    %1605 = vmatpush1.msra.mxu0 %v1291
    %1606 = vmatprep.subr.mxu0 0.0
    %1607 = vmatpush1.msra.mxu0 %v1290
    %1608 = vmatprep.subr.mxu0 0.0
    %1609 = vmatpush2.msra.mxu0 0.0
    %1610 = vmatprep.subr.mxu0 0.0
    %1611 = vmatpush2.msra.mxu0 0.0
    %1612 = vmatprep.subr.mxu0 0.0
    %1613 = vmatpush2.msra.mxu0 0.0
    %1614 = vmatprep.subr.mxu0 0.0
    %1615 = vmatpush2.msra.mxu0 0.0
    %1616 = vmatprep.subr.mxu0 0.0
    %1617 = vmatpush2.msra.mxu0 0.0
    %1618 = vmatprep.subr.mxu0 0.0
    %1619 = vmatpush2.msra.mxu0 0.0
    %1620 = vmatprep.subr.mxu0 0.0
    %1621 = vmatpush2.msra.mxu0 0.0
    %1622 = vmatprep.subr.mxu0 0.0
    %1623 = vmatpush2.msra.mxu0 0.0
    %1624 = vmatprep.subr.mxu0 0.0
    %1625 = vmatpush2.msra.mxu0 0.0
    %1626 = vmatprep.subr.mxu0 0.0
    %1627 = vmatpush2.msra.mxu0 0.0
    %1628 = vmatprep.subr.mxu0 0.0
    %1629 = vmatpush2.msra.mxu0 0.0
    %1630 = vmatprep.subr.mxu0 0.0
    %1631 = vmatpush2.msra.mxu0 0.0
    %1632 = vmatprep.subr.mxu0 0.0
    %1633 = vmatpush2.msra.mxu0 0.0
    %1634 = vmatprep.subr.mxu0 0.0
    %1635 = vmatpush2.msra.mxu0 0.0
    %1636 = vmatprep.subr.mxu0 0.0
    %1637 = vmatpush2.msra.mxu0 0.0
    %1638 = vmatprep.subr.mxu0 0.0
    %1639 = vmatpush2.msra.mxu0 0.0
    %1640 = vmatprep.mubr.f32.mxu0 0.0
    %1641 = vmatmul.mubr.f32.gmra.mxu0 %v1405
    %v1642 = vpop.f32.mrf.mxu0
    %v1643 = vadd.f32 %v1568, %v1642
    %v1644 = vpop.f32.mrf.mxu0
    %1645 = vmatprep.mubr.f32.mxu0 0.0
    %1646 = vmatmul.mubr.f32.gmra.mxu0 %v1408
    %v1647 = vpop.f32.mrf.mxu0
    %v1648 = vadd.f32 %v1573, %v1647
    %v1649 = vpop.f32.mrf.mxu0
    %1650 = vdwg.mxu0
    %v1651 = vld [vmem:[#allocation3 + $0x2] sm:$0xff]
    %v1652 = vld [vmem:[#allocation3 + $0x12] sm:$0xff]
    %s1653 = scalar_lea.vmem %s3, 240
    %v1654 = vld [vmem:[%s1653] sm:$0xff]
    %v1655 = vld [vmem:[%s1653 + $0x8] sm:$0xff]
    %v1656 = vld [vmem:[%s1653 + $0x10] sm:$0xff]
    %v1657 = vld [vmem:[%s1653 + $0x18] sm:$0xff]
    %v1658 = vld [vmem:[%s1653 + $0x20] sm:$0xff]
    %v1659 = vld [vmem:[%s1653 + $0x28] sm:$0xff]
    %v1660 = vld [vmem:[%s1653 + $0x30] sm:$0xff]
    %v1661 = vld [vmem:[%s1653 + $0x38] sm:$0xff]
    %v1662 = vld [vmem:[%s1653 + $0x40] sm:$0xff]
    %v1663 = vld [vmem:[%s1653 + $0x48] sm:$0xff]
    %v1664 = vld [vmem:[%s1653 + $0x50] sm:$0xff]
    %v1665 = vld [vmem:[%s1653 + $0x58] sm:$0xff]
    %v1666 = vld [vmem:[%s1653 + $0x60] sm:$0xff]
    %v1667 = vld [vmem:[%s1653 + $0x68] sm:$0xff]
    %v1668 = vld [vmem:[%s1653 + $0x70] sm:$0xff]
    %v1670 = vsel %vm1226, %v1651, 0
    %v1673 = vsel %vm1226, %v1652, 0
    %1675 = vmatprep.subr.mxu0 0.0
    %1676 = vmatpush1.msra.mxu0 0.0
    %1677 = vmatprep.subr.mxu0 0.0
    %1678 = vmatpush1.msra.mxu0 %v1668
    %1679 = vmatprep.subr.mxu0 0.0
    %1680 = vmatpush1.msra.mxu0 %v1667
    %1681 = vmatprep.subr.mxu0 0.0
    %1682 = vmatpush1.msra.mxu0 %v1666
    %1683 = vmatprep.subr.mxu0 0.0
    %1684 = vmatpush1.msra.mxu0 %v1665
    %1685 = vmatprep.subr.mxu0 0.0
    %1686 = vmatpush1.msra.mxu0 %v1664
    %1687 = vmatprep.subr.mxu0 0.0
    %1688 = vmatpush1.msra.mxu0 %v1663
    %1689 = vmatprep.subr.mxu0 0.0
    %1690 = vmatpush1.msra.mxu0 %v1662
    %1691 = vmatprep.subr.mxu0 0.0
    %1692 = vmatpush1.msra.mxu0 %v1661
    %1693 = vmatprep.subr.mxu0 0.0
    %1694 = vmatpush1.msra.mxu0 %v1660
    %1695 = vmatprep.subr.mxu0 0.0
    %1696 = vmatpush1.msra.mxu0 %v1659
    %1697 = vmatprep.subr.mxu0 0.0
    %1698 = vmatpush1.msra.mxu0 %v1658
    %1699 = vmatprep.subr.mxu0 0.0
    %1700 = vmatpush1.msra.mxu0 %v1657
    %1701 = vmatprep.subr.mxu0 0.0
    %1702 = vmatpush1.msra.mxu0 %v1656
    %1703 = vmatprep.subr.mxu0 0.0
    %1704 = vmatpush1.msra.mxu0 %v1655
    %1705 = vmatprep.subr.mxu0 0.0
    %1706 = vmatpush1.msra.mxu0 %v1654
    %1707 = vmatprep.subr.mxu0 0.0
    %1708 = vmatpush2.msra.mxu0 0.0
    %1709 = vmatprep.subr.mxu0 0.0
    %1710 = vmatpush2.msra.mxu0 0.0
    %1711 = vmatprep.subr.mxu0 0.0
    %1712 = vmatpush2.msra.mxu0 0.0
    %1713 = vmatprep.subr.mxu0 0.0
    %1714 = vmatpush2.msra.mxu0 0.0
    %1715 = vmatprep.subr.mxu0 0.0
    %1716 = vmatpush2.msra.mxu0 0.0
    %1717 = vmatprep.subr.mxu0 0.0
    %1718 = vmatpush2.msra.mxu0 0.0
    %1719 = vmatprep.subr.mxu0 0.0
    %1720 = vmatpush2.msra.mxu0 0.0
    %1721 = vmatprep.subr.mxu0 0.0
    %1722 = vmatpush2.msra.mxu0 0.0
    %1723 = vmatprep.subr.mxu0 0.0
    %1724 = vmatpush2.msra.mxu0 0.0
    %1725 = vmatprep.subr.mxu0 0.0
    %1726 = vmatpush2.msra.mxu0 0.0
    %1727 = vmatprep.subr.mxu0 0.0
    %1728 = vmatpush2.msra.mxu0 0.0
    %1729 = vmatprep.subr.mxu0 0.0
    %1730 = vmatpush2.msra.mxu0 0.0
    %1731 = vmatprep.subr.mxu0 0.0
    %1732 = vmatpush2.msra.mxu0 0.0
    %1733 = vmatprep.subr.mxu0 0.0
    %1734 = vmatpush2.msra.mxu0 0.0
    %1735 = vmatprep.subr.mxu0 0.0
    %1736 = vmatpush2.msra.mxu0 0.0
    %1737 = vmatprep.subr.mxu0 0.0
    %1738 = vmatpush2.msra.mxu0 0.0
    %1739 = vmatprep.mubr.f32.mxu0 0.0
    %1740 = vmatmul.mubr.f32.gmra.mxu0 %v1670
    %v1741 = vpop.f32.mrf.mxu0
    %v1742 = vadd.f32 0.0, %v1741
    %v1743 = vpop.f32.mrf.mxu0
    %1744 = vmatprep.mubr.f32.mxu0 0.0
    %1745 = vmatmul.mubr.f32.gmra.mxu0 %v1673
    %v1746 = vpop.f32.mrf.mxu0
    %v1747 = vadd.f32 0.0, %v1746
    %v1748 = vpop.f32.mrf.mxu0
    %1749 = vdwg.mxu0
    %v1750 = vadd.f32 %v1477, %v1742
    %v1751 = vadd.f32 %v1482, %v1747
    %s1752 = scalar_lea.vmem %s3, 840
    %v1753 = vld [vmem:[%s1752] sm:$0xff]
    %v1754 = vld [vmem:[%s1752 + $0x8] sm:$0xff]
    %v1755 = vld [vmem:[%s1752 + $0x10] sm:$0xff]
    %v1756 = vld [vmem:[%s1752 + $0x18] sm:$0xff]
    %v1757 = vld [vmem:[%s1752 + $0x20] sm:$0xff]
    %v1758 = vld [vmem:[%s1752 + $0x28] sm:$0xff]
    %v1759 = vld [vmem:[%s1752 + $0x30] sm:$0xff]
    %v1760 = vld [vmem:[%s1752 + $0x38] sm:$0xff]
    %v1761 = vld [vmem:[%s1752 + $0x40] sm:$0xff]
    %v1762 = vld [vmem:[%s1752 + $0x48] sm:$0xff]
    %v1763 = vld [vmem:[%s1752 + $0x50] sm:$0xff]
    %v1764 = vld [vmem:[%s1752 + $0x58] sm:$0xff]
    %v1765 = vld [vmem:[%s1752 + $0x60] sm:$0xff]
    %v1766 = vld [vmem:[%s1752 + $0x68] sm:$0xff]
    %v1767 = vld [vmem:[%s1752 + $0x70] sm:$0xff]
    %1768 = vmatprep.subr.mxu0 0.0
    %1769 = vmatpush1.msra.mxu0 0.0
    %1770 = vmatprep.subr.mxu0 0.0
    %1771 = vmatpush1.msra.mxu0 %v1767
    %1772 = vmatprep.subr.mxu0 0.0
    %1773 = vmatpush1.msra.mxu0 %v1766
    %1774 = vmatprep.subr.mxu0 0.0
    %1775 = vmatpush1.msra.mxu0 %v1765
    %1776 = vmatprep.subr.mxu0 0.0
    %1777 = vmatpush1.msra.mxu0 %v1764
    %1778 = vmatprep.subr.mxu0 0.0
    %1779 = vmatpush1.msra.mxu0 %v1763
    %1780 = vmatprep.subr.mxu0 0.0
    %1781 = vmatpush1.msra.mxu0 %v1762
    %1782 = vmatprep.subr.mxu0 0.0
    %1783 = vmatpush1.msra.mxu0 %v1761
    %1784 = vmatprep.subr.mxu0 0.0
    %1785 = vmatpush1.msra.mxu0 %v1760
    %1786 = vmatprep.subr.mxu0 0.0
    %1787 = vmatpush1.msra.mxu0 %v1759
    %1788 = vmatprep.subr.mxu0 0.0
    %1789 = vmatpush1.msra.mxu0 %v1758
    %1790 = vmatprep.subr.mxu0 0.0
    %1791 = vmatpush1.msra.mxu0 %v1757
    %1792 = vmatprep.subr.mxu0 0.0
    %1793 = vmatpush1.msra.mxu0 %v1756
    %1794 = vmatprep.subr.mxu0 0.0
    %1795 = vmatpush1.msra.mxu0 %v1755
    %1796 = vmatprep.subr.mxu0 0.0
    %1797 = vmatpush1.msra.mxu0 %v1754
    %1798 = vmatprep.subr.mxu0 0.0
    %1799 = vmatpush1.msra.mxu0 %v1753
    %1800 = vmatprep.subr.mxu0 0.0
    %1801 = vmatpush2.msra.mxu0 0.0
    %1802 = vmatprep.subr.mxu0 0.0
    %1803 = vmatpush2.msra.mxu0 0.0
    %1804 = vmatprep.subr.mxu0 0.0
    %1805 = vmatpush2.msra.mxu0 0.0
    %1806 = vmatprep.subr.mxu0 0.0
    %1807 = vmatpush2.msra.mxu0 0.0
    %1808 = vmatprep.subr.mxu0 0.0
    %1809 = vmatpush2.msra.mxu0 0.0
    %1810 = vmatprep.subr.mxu0 0.0
    %1811 = vmatpush2.msra.mxu0 0.0
    %1812 = vmatprep.subr.mxu0 0.0
    %1813 = vmatpush2.msra.mxu0 0.0
    %1814 = vmatprep.subr.mxu0 0.0
    %1815 = vmatpush2.msra.mxu0 0.0
    %1816 = vmatprep.subr.mxu0 0.0
    %1817 = vmatpush2.msra.mxu0 0.0
    %1818 = vmatprep.subr.mxu0 0.0
    %1819 = vmatpush2.msra.mxu0 0.0
    %1820 = vmatprep.subr.mxu0 0.0
    %1821 = vmatpush2.msra.mxu0 0.0
    %1822 = vmatprep.subr.mxu0 0.0
    %1823 = vmatpush2.msra.mxu0 0.0
    %1824 = vmatprep.subr.mxu0 0.0
    %1825 = vmatpush2.msra.mxu0 0.0
    %1826 = vmatprep.subr.mxu0 0.0
    %1827 = vmatpush2.msra.mxu0 0.0
    %1828 = vmatprep.subr.mxu0 0.0
    %1829 = vmatpush2.msra.mxu0 0.0
    %1830 = vmatprep.subr.mxu0 0.0
    %1831 = vmatpush2.msra.mxu0 0.0
    %1832 = vmatprep.mubr.f32.mxu0 0.0
    %1833 = vmatmul.mubr.f32.gmra.mxu0 %v1670
    %v1834 = vpop.f32.mrf.mxu0
    %v1835 = vadd.f32 0.0, %v1834
    %v1836 = vpop.f32.mrf.mxu0
    %1837 = vmatprep.mubr.f32.mxu0 0.0
    %1838 = vmatmul.mubr.f32.gmra.mxu0 %v1673
    %v1839 = vpop.f32.mrf.mxu0
    %v1840 = vadd.f32 0.0, %v1839
    %v1841 = vpop.f32.mrf.mxu0
    %1842 = vdwg.mxu0
    %v1843 = vadd.f32 %v1643, %v1835
    %v1844 = vadd.f32 %v1648, %v1840
    %v1845 = vld [vmem:[#allocation3 + $0x3] sm:$0xff]
    %v1846 = vld [vmem:[#allocation3 + $0x13] sm:$0xff]
    %s1847 = scalar_lea.vmem %s3, 360
    %v1848 = vld [vmem:[%s1847] sm:$0xff]
    %v1849 = vld [vmem:[%s1847 + $0x8] sm:$0xff]
    %v1850 = vld [vmem:[%s1847 + $0x10] sm:$0xff]
    %v1851 = vld [vmem:[%s1847 + $0x18] sm:$0xff]
    %v1852 = vld [vmem:[%s1847 + $0x20] sm:$0xff]
    %v1853 = vld [vmem:[%s1847 + $0x28] sm:$0xff]
    %v1854 = vld [vmem:[%s1847 + $0x30] sm:$0xff]
    %v1855 = vld [vmem:[%s1847 + $0x38] sm:$0xff]
    %v1856 = vld [vmem:[%s1847 + $0x40] sm:$0xff]
    %v1857 = vld [vmem:[%s1847 + $0x48] sm:$0xff]
    %v1858 = vld [vmem:[%s1847 + $0x50] sm:$0xff]
    %v1859 = vld [vmem:[%s1847 + $0x58] sm:$0xff]
    %v1860 = vld [vmem:[%s1847 + $0x60] sm:$0xff]
    %v1861 = vld [vmem:[%s1847 + $0x68] sm:$0xff]
    %v1862 = vld [vmem:[%s1847 + $0x70] sm:$0xff]
    %v1864 = vsel %vm1226, %v1845, 0
    %v1867 = vsel %vm1226, %v1846, 0
    %1869 = vmatprep.subr.mxu0 0.0
    %1870 = vmatpush1.msra.mxu0 0.0
    %1871 = vmatprep.subr.mxu0 0.0
    %1872 = vmatpush1.msra.mxu0 %v1862
    %1873 = vmatprep.subr.mxu0 0.0
    %1874 = vmatpush1.msra.mxu0 %v1861
    %1875 = vmatprep.subr.mxu0 0.0
    %1876 = vmatpush1.msra.mxu0 %v1860
    %1877 = vmatprep.subr.mxu0 0.0
    %1878 = vmatpush1.msra.mxu0 %v1859
    %1879 = vmatprep.subr.mxu0 0.0
    %1880 = vmatpush1.msra.mxu0 %v1858
    %1881 = vmatprep.subr.mxu0 0.0
    %1882 = vmatpush1.msra.mxu0 %v1857
    %1883 = vmatprep.subr.mxu0 0.0
    %1884 = vmatpush1.msra.mxu0 %v1856
    %1885 = vmatprep.subr.mxu0 0.0
    %1886 = vmatpush1.msra.mxu0 %v1855
    %1887 = vmatprep.subr.mxu0 0.0
    %1888 = vmatpush1.msra.mxu0 %v1854
    %1889 = vmatprep.subr.mxu0 0.0
    %1890 = vmatpush1.msra.mxu0 %v1853
    %1891 = vmatprep.subr.mxu0 0.0
    %1892 = vmatpush1.msra.mxu0 %v1852
    %1893 = vmatprep.subr.mxu0 0.0
    %1894 = vmatpush1.msra.mxu0 %v1851
    %1895 = vmatprep.subr.mxu0 0.0
    %1896 = vmatpush1.msra.mxu0 %v1850
    %1897 = vmatprep.subr.mxu0 0.0
    %1898 = vmatpush1.msra.mxu0 %v1849
    %1899 = vmatprep.subr.mxu0 0.0
    %1900 = vmatpush1.msra.mxu0 %v1848
    %1901 = vmatprep.subr.mxu0 0.0
    %1902 = vmatpush2.msra.mxu0 0.0
    %1903 = vmatprep.subr.mxu0 0.0
    %1904 = vmatpush2.msra.mxu0 0.0
    %1905 = vmatprep.subr.mxu0 0.0
    %1906 = vmatpush2.msra.mxu0 0.0
    %1907 = vmatprep.subr.mxu0 0.0
    %1908 = vmatpush2.msra.mxu0 0.0
    %1909 = vmatprep.subr.mxu0 0.0
    %1910 = vmatpush2.msra.mxu0 0.0
    %1911 = vmatprep.subr.mxu0 0.0
    %1912 = vmatpush2.msra.mxu0 0.0
    %1913 = vmatprep.subr.mxu0 0.0
    %1914 = vmatpush2.msra.mxu0 0.0
    %1915 = vmatprep.subr.mxu0 0.0
    %1916 = vmatpush2.msra.mxu0 0.0
    %1917 = vmatprep.subr.mxu0 0.0
    %1918 = vmatpush2.msra.mxu0 0.0
    %1919 = vmatprep.subr.mxu0 0.0
    %1920 = vmatpush2.msra.mxu0 0.0
    %1921 = vmatprep.subr.mxu0 0.0
    %1922 = vmatpush2.msra.mxu0 0.0
    %1923 = vmatprep.subr.mxu0 0.0
    %1924 = vmatpush2.msra.mxu0 0.0
    %1925 = vmatprep.subr.mxu0 0.0
    %1926 = vmatpush2.msra.mxu0 0.0
    %1927 = vmatprep.subr.mxu0 0.0
    %1928 = vmatpush2.msra.mxu0 0.0
    %1929 = vmatprep.subr.mxu0 0.0
    %1930 = vmatpush2.msra.mxu0 0.0
    %1931 = vmatprep.subr.mxu0 0.0
    %1932 = vmatpush2.msra.mxu0 0.0
    %1933 = vmatprep.mubr.f32.mxu0 0.0
    %1934 = vmatmul.mubr.f32.gmra.mxu0 %v1864
    %v1935 = vpop.f32.mrf.mxu0
    %v1936 = vadd.f32 0.0, %v1935
    %v1937 = vpop.f32.mrf.mxu0
    %1938 = vmatprep.mubr.f32.mxu0 0.0
    %1939 = vmatmul.mubr.f32.gmra.mxu0 %v1867
    %v1940 = vpop.f32.mrf.mxu0
    %v1941 = vadd.f32 0.0, %v1940
    %v1942 = vpop.f32.mrf.mxu0
    %1943 = vdwg.mxu0
    %v1944 = vadd.f32 %v1750, %v1936
    %v1945 = vadd.f32 %v1751, %v1941
    %s1946 = scalar_lea.vmem %s3, 960
    %v1947 = vld [vmem:[%s1946] sm:$0xff]
    %v1948 = vld [vmem:[%s1946 + $0x8] sm:$0xff]
    %v1949 = vld [vmem:[%s1946 + $0x10] sm:$0xff]
    %v1950 = vld [vmem:[%s1946 + $0x18] sm:$0xff]
    %v1951 = vld [vmem:[%s1946 + $0x20] sm:$0xff]
    %v1952 = vld [vmem:[%s1946 + $0x28] sm:$0xff]
    %v1953 = vld [vmem:[%s1946 + $0x30] sm:$0xff]
    %v1954 = vld [vmem:[%s1946 + $0x38] sm:$0xff]
    %v1955 = vld [vmem:[%s1946 + $0x40] sm:$0xff]
    %v1956 = vld [vmem:[%s1946 + $0x48] sm:$0xff]
    %v1957 = vld [vmem:[%s1946 + $0x50] sm:$0xff]
    %v1958 = vld [vmem:[%s1946 + $0x58] sm:$0xff]
    %v1959 = vld [vmem:[%s1946 + $0x60] sm:$0xff]
    %v1960 = vld [vmem:[%s1946 + $0x68] sm:$0xff]
    %v1961 = vld [vmem:[%s1946 + $0x70] sm:$0xff]
    %1962 = vmatprep.subr.mxu0 0.0
    %1963 = vmatpush1.msra.mxu0 0.0
    %1964 = vmatprep.subr.mxu0 0.0
    %1965 = vmatpush1.msra.mxu0 %v1961
    %1966 = vmatprep.subr.mxu0 0.0
    %1967 = vmatpush1.msra.mxu0 %v1960
    %1968 = vmatprep.subr.mxu0 0.0
    %1969 = vmatpush1.msra.mxu0 %v1959
    %1970 = vmatprep.subr.mxu0 0.0
    %1971 = vmatpush1.msra.mxu0 %v1958
    %1972 = vmatprep.subr.mxu0 0.0
    %1973 = vmatpush1.msra.mxu0 %v1957
    %1974 = vmatprep.subr.mxu0 0.0
    %1975 = vmatpush1.msra.mxu0 %v1956
    %1976 = vmatprep.subr.mxu0 0.0
    %1977 = vmatpush1.msra.mxu0 %v1955
    %1978 = vmatprep.subr.mxu0 0.0
    %1979 = vmatpush1.msra.mxu0 %v1954
    %1980 = vmatprep.subr.mxu0 0.0
    %1981 = vmatpush1.msra.mxu0 %v1953
    %1982 = vmatprep.subr.mxu0 0.0
    %1983 = vmatpush1.msra.mxu0 %v1952
    %1984 = vmatprep.subr.mxu0 0.0
    %1985 = vmatpush1.msra.mxu0 %v1951
    %1986 = vmatprep.subr.mxu0 0.0
    %1987 = vmatpush1.msra.mxu0 %v1950
    %1988 = vmatprep.subr.mxu0 0.0
    %1989 = vmatpush1.msra.mxu0 %v1949
    %1990 = vmatprep.subr.mxu0 0.0
    %1991 = vmatpush1.msra.mxu0 %v1948
    %1992 = vmatprep.subr.mxu0 0.0
    %1993 = vmatpush1.msra.mxu0 %v1947
    %1994 = vmatprep.subr.mxu0 0.0
    %1995 = vmatpush2.msra.mxu0 0.0
    %1996 = vmatprep.subr.mxu0 0.0
    %1997 = vmatpush2.msra.mxu0 0.0
    %1998 = vmatprep.subr.mxu0 0.0
    %1999 = vmatpush2.msra.mxu0 0.0
    %2000 = vmatprep.subr.mxu0 0.0
    %2001 = vmatpush2.msra.mxu0 0.0
    %2002 = vmatprep.subr.mxu0 0.0
    %2003 = vmatpush2.msra.mxu0 0.0
    %2004 = vmatprep.subr.mxu0 0.0
    %2005 = vmatpush2.msra.mxu0 0.0
    %2006 = vmatprep.subr.mxu0 0.0
    %2007 = vmatpush2.msra.mxu0 0.0
    %2008 = vmatprep.subr.mxu0 0.0
    %2009 = vmatpush2.msra.mxu0 0.0
    %2010 = vmatprep.subr.mxu0 0.0
    %2011 = vmatpush2.msra.mxu0 0.0
    %2012 = vmatprep.subr.mxu0 0.0
    %2013 = vmatpush2.msra.mxu0 0.0
    %2014 = vmatprep.subr.mxu0 0.0
    %2015 = vmatpush2.msra.mxu0 0.0
    %2016 = vmatprep.subr.mxu0 0.0
    %2017 = vmatpush2.msra.mxu0 0.0
    %2018 = vmatprep.subr.mxu0 0.0
    %2019 = vmatpush2.msra.mxu0 0.0
    %2020 = vmatprep.subr.mxu0 0.0
    %2021 = vmatpush2.msra.mxu0 0.0
    %2022 = vmatprep.subr.mxu0 0.0
    %2023 = vmatpush2.msra.mxu0 0.0
    %2024 = vmatprep.subr.mxu0 0.0
    %2025 = vmatpush2.msra.mxu0 0.0
    %2026 = vmatprep.mubr.f32.mxu0 0.0
    %2027 = vmatmul.mubr.f32.gmra.mxu0 %v1864
    %v2028 = vpop.f32.mrf.mxu0
    %v2029 = vadd.f32 0.0, %v2028
    %v2030 = vpop.f32.mrf.mxu0
    %2031 = vmatprep.mubr.f32.mxu0 0.0
    %2032 = vmatmul.mubr.f32.gmra.mxu0 %v1867
    %v2033 = vpop.f32.mrf.mxu0
    %v2034 = vadd.f32 0.0, %v2033
    %v2035 = vpop.f32.mrf.mxu0
    %2036 = vdwg.mxu0
    %v2037 = vadd.f32 %v1843, %v2029
    %v2038 = vadd.f32 %v1844, %v2034
    %v2039 = vld [vmem:[#allocation3 + $0x4] sm:$0xff]
    %v2040 = vld [vmem:[#allocation3 + $0x14] sm:$0xff]
    %s2041 = scalar_lea.vmem %s3, 480
    %v2042 = vld [vmem:[%s2041] sm:$0xff]
    %v2043 = vld [vmem:[%s2041 + $0x8] sm:$0xff]
    %v2044 = vld [vmem:[%s2041 + $0x10] sm:$0xff]
    %v2045 = vld [vmem:[%s2041 + $0x18] sm:$0xff]
    %v2046 = vld [vmem:[%s2041 + $0x20] sm:$0xff]
    %v2047 = vld [vmem:[%s2041 + $0x28] sm:$0xff]
    %v2048 = vld [vmem:[%s2041 + $0x30] sm:$0xff]
    %v2049 = vld [vmem:[%s2041 + $0x38] sm:$0xff]
    %v2050 = vld [vmem:[%s2041 + $0x40] sm:$0xff]
    %v2051 = vld [vmem:[%s2041 + $0x48] sm:$0xff]
    %v2052 = vld [vmem:[%s2041 + $0x50] sm:$0xff]
    %v2053 = vld [vmem:[%s2041 + $0x58] sm:$0xff]
    %v2054 = vld [vmem:[%s2041 + $0x60] sm:$0xff]
    %v2055 = vld [vmem:[%s2041 + $0x68] sm:$0xff]
    %v2056 = vld [vmem:[%s2041 + $0x70] sm:$0xff]
    %v2058 = vsel %vm1226, %v2039, 0
    %v2061 = vsel %vm1226, %v2040, 0
    %2063 = vmatprep.subr.mxu0 0.0
    %2064 = vmatpush1.msra.mxu0 0.0
    %2065 = vmatprep.subr.mxu0 0.0
    %2066 = vmatpush1.msra.mxu0 %v2056
    %2067 = vmatprep.subr.mxu0 0.0
    %2068 = vmatpush1.msra.mxu0 %v2055
    %2069 = vmatprep.subr.mxu0 0.0
    %2070 = vmatpush1.msra.mxu0 %v2054
    %2071 = vmatprep.subr.mxu0 0.0
    %2072 = vmatpush1.msra.mxu0 %v2053
    %2073 = vmatprep.subr.mxu0 0.0
    %2074 = vmatpush1.msra.mxu0 %v2052
    %2075 = vmatprep.subr.mxu0 0.0
    %2076 = vmatpush1.msra.mxu0 %v2051
    %2077 = vmatprep.subr.mxu0 0.0
    %2078 = vmatpush1.msra.mxu0 %v2050
    %2079 = vmatprep.subr.mxu0 0.0
    %2080 = vmatpush1.msra.mxu0 %v2049
    %2081 = vmatprep.subr.mxu0 0.0
    %2082 = vmatpush1.msra.mxu0 %v2048
    %2083 = vmatprep.subr.mxu0 0.0
    %2084 = vmatpush1.msra.mxu0 %v2047
    %2085 = vmatprep.subr.mxu0 0.0
    %2086 = vmatpush1.msra.mxu0 %v2046
    %2087 = vmatprep.subr.mxu0 0.0
    %2088 = vmatpush1.msra.mxu0 %v2045
    %2089 = vmatprep.subr.mxu0 0.0
    %2090 = vmatpush1.msra.mxu0 %v2044
    %2091 = vmatprep.subr.mxu0 0.0
    %2092 = vmatpush1.msra.mxu0 %v2043
    %2093 = vmatprep.subr.mxu0 0.0
    %2094 = vmatpush1.msra.mxu0 %v2042
    %2095 = vmatprep.subr.mxu0 0.0
    %2096 = vmatpush2.msra.mxu0 0.0
    %2097 = vmatprep.subr.mxu0 0.0
    %2098 = vmatpush2.msra.mxu0 0.0
    %2099 = vmatprep.subr.mxu0 0.0
    %2100 = vmatpush2.msra.mxu0 0.0
    %2101 = vmatprep.subr.mxu0 0.0
    %2102 = vmatpush2.msra.mxu0 0.0
    %2103 = vmatprep.subr.mxu0 0.0
    %2104 = vmatpush2.msra.mxu0 0.0
    %2105 = vmatprep.subr.mxu0 0.0
    %2106 = vmatpush2.msra.mxu0 0.0
    %2107 = vmatprep.subr.mxu0 0.0
    %2108 = vmatpush2.msra.mxu0 0.0
    %2109 = vmatprep.subr.mxu0 0.0
    %2110 = vmatpush2.msra.mxu0 0.0
    %2111 = vmatprep.subr.mxu0 0.0
    %2112 = vmatpush2.msra.mxu0 0.0
    %2113 = vmatprep.subr.mxu0 0.0
    %2114 = vmatpush2.msra.mxu0 0.0
    %2115 = vmatprep.subr.mxu0 0.0
    %2116 = vmatpush2.msra.mxu0 0.0
    %2117 = vmatprep.subr.mxu0 0.0
    %2118 = vmatpush2.msra.mxu0 0.0
    %2119 = vmatprep.subr.mxu0 0.0
    %2120 = vmatpush2.msra.mxu0 0.0
    %2121 = vmatprep.subr.mxu0 0.0
    %2122 = vmatpush2.msra.mxu0 0.0
    %2123 = vmatprep.subr.mxu0 0.0
    %2124 = vmatpush2.msra.mxu0 0.0
    %2125 = vmatprep.subr.mxu0 0.0
    %2126 = vmatpush2.msra.mxu0 0.0
    %2127 = vmatprep.mubr.f32.mxu0 0.0
    %2128 = vmatmul.mubr.f32.gmra.mxu0 %v2058
    %v2129 = vpop.f32.mrf.mxu0
    %v2130 = vadd.f32 0.0, %v2129
    %v2131 = vpop.f32.mrf.mxu0
    %2132 = vmatprep.mubr.f32.mxu0 0.0
    %2133 = vmatmul.mubr.f32.gmra.mxu0 %v2061
    %v2134 = vpop.f32.mrf.mxu0
    %v2135 = vadd.f32 0.0, %v2134
    %v2136 = vpop.f32.mrf.mxu0
    %2137 = vdwg.mxu0
    %v2138 = vadd.f32 %v1944, %v2130
    %v2139 = vadd.f32 %v1945, %v2135
    %s2140 = scalar_lea.vmem %s3, 1080
    %v2141 = vld [vmem:[%s2140] sm:$0xff]
    %v2142 = vld [vmem:[%s2140 + $0x8] sm:$0xff]
    %v2143 = vld [vmem:[%s2140 + $0x10] sm:$0xff]
    %v2144 = vld [vmem:[%s2140 + $0x18] sm:$0xff]
    %v2145 = vld [vmem:[%s2140 + $0x20] sm:$0xff]
    %v2146 = vld [vmem:[%s2140 + $0x28] sm:$0xff]
    %v2147 = vld [vmem:[%s2140 + $0x30] sm:$0xff]
    %v2148 = vld [vmem:[%s2140 + $0x38] sm:$0xff]
    %v2149 = vld [vmem:[%s2140 + $0x40] sm:$0xff]
    %v2150 = vld [vmem:[%s2140 + $0x48] sm:$0xff]
    %v2151 = vld [vmem:[%s2140 + $0x50] sm:$0xff]
    %v2152 = vld [vmem:[%s2140 + $0x58] sm:$0xff]
    %v2153 = vld [vmem:[%s2140 + $0x60] sm:$0xff]
    %v2154 = vld [vmem:[%s2140 + $0x68] sm:$0xff]
    %v2155 = vld [vmem:[%s2140 + $0x70] sm:$0xff]
    %2156 = vmatprep.subr.mxu0 0.0
    %2157 = vmatpush1.msra.mxu0 0.0
    %2158 = vmatprep.subr.mxu0 0.0
    %2159 = vmatpush1.msra.mxu0 %v2155
    %2160 = vmatprep.subr.mxu0 0.0
    %2161 = vmatpush1.msra.mxu0 %v2154
    %2162 = vmatprep.subr.mxu0 0.0
    %2163 = vmatpush1.msra.mxu0 %v2153
    %2164 = vmatprep.subr.mxu0 0.0
    %2165 = vmatpush1.msra.mxu0 %v2152
    %2166 = vmatprep.subr.mxu0 0.0
    %2167 = vmatpush1.msra.mxu0 %v2151
    %2168 = vmatprep.subr.mxu0 0.0
    %2169 = vmatpush1.msra.mxu0 %v2150
    %2170 = vmatprep.subr.mxu0 0.0
    %2171 = vmatpush1.msra.mxu0 %v2149
    %2172 = vmatprep.subr.mxu0 0.0
    %2173 = vmatpush1.msra.mxu0 %v2148
    %2174 = vmatprep.subr.mxu0 0.0
    %2175 = vmatpush1.msra.mxu0 %v2147
    %2176 = vmatprep.subr.mxu0 0.0
    %2177 = vmatpush1.msra.mxu0 %v2146
    %2178 = vmatprep.subr.mxu0 0.0
    %2179 = vmatpush1.msra.mxu0 %v2145
    %2180 = vmatprep.subr.mxu0 0.0
    %2181 = vmatpush1.msra.mxu0 %v2144
    %2182 = vmatprep.subr.mxu0 0.0
    %2183 = vmatpush1.msra.mxu0 %v2143
    %2184 = vmatprep.subr.mxu0 0.0
    %2185 = vmatpush1.msra.mxu0 %v2142
    %2186 = vmatprep.subr.mxu0 0.0
    %2187 = vmatpush1.msra.mxu0 %v2141
    %2188 = vmatprep.subr.mxu0 0.0
    %2189 = vmatpush2.msra.mxu0 0.0
    %2190 = vmatprep.subr.mxu0 0.0
    %2191 = vmatpush2.msra.mxu0 0.0
    %2192 = vmatprep.subr.mxu0 0.0
    %2193 = vmatpush2.msra.mxu0 0.0
    %2194 = vmatprep.subr.mxu0 0.0
    %2195 = vmatpush2.msra.mxu0 0.0
    %2196 = vmatprep.subr.mxu0 0.0
    %2197 = vmatpush2.msra.mxu0 0.0
    %2198 = vmatprep.subr.mxu0 0.0
    %2199 = vmatpush2.msra.mxu0 0.0
    %2200 = vmatprep.subr.mxu0 0.0
    %2201 = vmatpush2.msra.mxu0 0.0
    %2202 = vmatprep.subr.mxu0 0.0
    %2203 = vmatpush2.msra.mxu0 0.0
    %2204 = vmatprep.subr.mxu0 0.0
    %2205 = vmatpush2.msra.mxu0 0.0
    %2206 = vmatprep.subr.mxu0 0.0
    %2207 = vmatpush2.msra.mxu0 0.0
    %2208 = vmatprep.subr.mxu0 0.0
    %2209 = vmatpush2.msra.mxu0 0.0
    %2210 = vmatprep.subr.mxu0 0.0
    %2211 = vmatpush2.msra.mxu0 0.0
    %2212 = vmatprep.subr.mxu0 0.0
    %2213 = vmatpush2.msra.mxu0 0.0
    %2214 = vmatprep.subr.mxu0 0.0
    %2215 = vmatpush2.msra.mxu0 0.0
    %2216 = vmatprep.subr.mxu0 0.0
    %2217 = vmatpush2.msra.mxu0 0.0
    %2218 = vmatprep.subr.mxu0 0.0
    %2219 = vmatpush2.msra.mxu0 0.0
    %2220 = vmatprep.mubr.f32.mxu0 0.0
    %2221 = vmatmul.mubr.f32.gmra.mxu0 %v2058
    %v2222 = vpop.f32.mrf.mxu0
    %v2223 = vadd.f32 0.0, %v2222
    %v2224 = vpop.f32.mrf.mxu0
    %2225 = vmatprep.mubr.f32.mxu0 0.0
    %2226 = vmatmul.mubr.f32.gmra.mxu0 %v2061
    %v2227 = vpop.f32.mrf.mxu0
    %v2228 = vadd.f32 0.0, %v2227
    %v2229 = vpop.f32.mrf.mxu0
    %2230 = vdwg.mxu0
    %v2231 = vadd.f32 %v2037, %v2223
    %v2232 = vadd.f32 %v2038, %v2228
    %v2233 = vmax.f32 %v2138, %v2231
    %v2234 = vmax.f32 %v2139, %v2232
    %vm2235 = vcmask 654336
    %2236 = vst.msk [vmem:[#allocation4] sm:$0xff] %vm2235, %v2233
    %2237 = vst.msk [vmem:[#allocation4 + $0x8] sm:$0xff] %vm2235, %v2234
    %v2238 = vld [vmem:[#allocation4] ss:$2 sm:$0xf]
    %s2239 = scalar_lea.vmem [#allocation4], 8
    %v2240 = vld [vmem:[%s2239] ss:$2 sm:$0xf]
    %s2241 = scalar_lea.vmem [#allocation4], 1
    %v2242 = vld [vmem:[%s2241] ss:$2 sm:$0xf]
    %s2243 = scalar_lea.vmem [#allocation4], 9
    %v2244 = vld [vmem:[%s2243] ss:$2 sm:$0xf]
    %v2245 = vmax.f32 %v2238, %v2242
    %v2246 = vmax.f32 %v2240, %v2244
    %v2247 = vld [vmem:[%s4] sm:$0x1]
    %v2249 = vlaneseq
    %v2250 = vshrl.u32 %v2249, 7
    %v2251 = vsub.s32 0, %v2250
    %v2252 = vrot.slane %v2247, %v2251
    %v2254 = vadd.f32 %v2245, %v2252
    %v2255 = vadd.f32 %v2246, %v2252
    %v2256 = vmax.f32 %v2254, 0.0
    %v2257 = vmax.f32 %v2255, 0.0
    %vm2258 = vcmask 650240
    %2259 = vst.msk [vmem:[#allocation5] sm:$0xf] %vm2258, %v2256
    %2260 = vst.msk [vmem:[#allocation5 + $0x4] sm:$0xf] %vm2258, %v2257
    %v2261 = vld [vmem:[#allocation5] sm:$0x1]
    %v2262 = vld [vmem:[#allocation5 + $0x4] sm:$0x1]
    %v2263 = vld [vmem:[%s5] sm:$0xff]
    %v2264 = vld [vmem:[%s5 + $0x8] sm:$0xff]
    %v2265 = vld [vmem:[%s5 + $0x10] sm:$0xff]
    %v2266 = vld [vmem:[%s5 + $0x18] sm:$0xff]
    %v2267 = vld [vmem:[%s5 + $0x20] sm:$0xff]
    %v2268 = vld [vmem:[%s5 + $0x28] sm:$0xff]
    %v2269 = vld [vmem:[%s5 + $0x30] sm:$0xff]
    %v2270 = vld [vmem:[%s5 + $0x38] sm:$0xff]
    %v2271 = vld [vmem:[%s5 + $0x40] sm:$0xff]
    %v2272 = vld [vmem:[%s5 + $0x48] sm:$0xff]
    %v2273 = vld [vmem:[#allocation5 + $0x1] sm:$0x1]
    %v2274 = vld [vmem:[#allocation5 + $0x5] sm:$0x1]
    %s2275 = scalar_lea.vmem %s5, 80
    %v2276 = vld [vmem:[%s2275] sm:$0xff]
    %v2277 = vld [vmem:[%s2275 + $0x8] sm:$0xff]
    %v2278 = vld [vmem:[%s2275 + $0x10] sm:$0xff]
    %v2279 = vld [vmem:[%s2275 + $0x18] sm:$0xff]
    %v2280 = vld [vmem:[%s2275 + $0x20] sm:$0xff]
    %v2281 = vld [vmem:[%s2275 + $0x28] sm:$0xff]
    %v2282 = vld [vmem:[%s2275 + $0x30] sm:$0xff]
    %v2283 = vld [vmem:[%s2275 + $0x38] sm:$0xff]
    %v2284 = vld [vmem:[%s2275 + $0x40] sm:$0xff]
    %v2285 = vld [vmem:[%s2275 + $0x48] sm:$0xff]
    %v2288 = vrot.slane %v2274, 7
    %vm2289 = vcmask 1041409
    %v2290 = vsel %vm2289, %v2288, %v2273
    %v2291 = vsel %vm2235, %v2290, 0
    %2293 = vmatprep.subr.mxu0 0.0
    %2294 = vmatpush1.msra.mxu0 0.0
    %2295 = vmatprep.subr.mxu0 0.0
    %2296 = vmatpush1.msra.mxu0 0.0
    %2297 = vmatprep.subr.mxu0 0.0
    %2298 = vmatpush1.msra.mxu0 0.0
    %2299 = vmatprep.subr.mxu0 0.0
    %2300 = vmatpush1.msra.mxu0 0.0
    %2301 = vmatprep.subr.mxu0 0.0
    %2302 = vmatpush1.msra.mxu0 0.0
    %2303 = vmatprep.subr.mxu0 0.0
    %2304 = vmatpush1.msra.mxu0 0.0
    %2305 = vmatprep.subr.mxu0 0.0
    %2306 = vmatpush1.msra.mxu0 %v2285
    %2307 = vmatprep.subr.mxu0 0.0
    %2308 = vmatpush1.msra.mxu0 %v2284
    %2309 = vmatprep.subr.mxu0 0.0
    %2310 = vmatpush1.msra.mxu0 %v2283
    %2311 = vmatprep.subr.mxu0 0.0
    %2312 = vmatpush1.msra.mxu0 %v2282
    %2313 = vmatprep.subr.mxu0 0.0
    %2314 = vmatpush1.msra.mxu0 %v2281
    %2315 = vmatprep.subr.mxu0 0.0
    %2316 = vmatpush1.msra.mxu0 %v2280
    %2317 = vmatprep.subr.mxu0 0.0
    %2318 = vmatpush1.msra.mxu0 %v2279
    %2319 = vmatprep.subr.mxu0 0.0
    %2320 = vmatpush1.msra.mxu0 %v2278
    %2321 = vmatprep.subr.mxu0 0.0
    %2322 = vmatpush1.msra.mxu0 %v2277
    %2323 = vmatprep.subr.mxu0 0.0
    %2324 = vmatpush1.msra.mxu0 %v2276
    %2325 = vmatprep.subr.mxu0 0.0
    %2326 = vmatpush2.msra.mxu0 0.0
    %2327 = vmatprep.subr.mxu0 0.0
    %2328 = vmatpush2.msra.mxu0 0.0
    %2329 = vmatprep.subr.mxu0 0.0
    %2330 = vmatpush2.msra.mxu0 0.0
    %2331 = vmatprep.subr.mxu0 0.0
    %2332 = vmatpush2.msra.mxu0 0.0
    %2333 = vmatprep.subr.mxu0 0.0
    %2334 = vmatpush2.msra.mxu0 0.0
    %2335 = vmatprep.subr.mxu0 0.0
    %2336 = vmatpush2.msra.mxu0 0.0
    %2337 = vmatprep.subr.mxu0 0.0
    %2338 = vmatpush2.msra.mxu0 0.0
    %2339 = vmatprep.subr.mxu0 0.0
    %2340 = vmatpush2.msra.mxu0 0.0
    %2341 = vmatprep.subr.mxu0 0.0
    %2342 = vmatpush2.msra.mxu0 0.0
    %2343 = vmatprep.subr.mxu0 0.0
    %2344 = vmatpush2.msra.mxu0 0.0
    %2345 = vmatprep.subr.mxu0 0.0
    %2346 = vmatpush2.msra.mxu0 0.0
    %2347 = vmatprep.subr.mxu0 0.0
    %2348 = vmatpush2.msra.mxu0 0.0
    %2349 = vmatprep.subr.mxu0 0.0
    %2350 = vmatpush2.msra.mxu0 0.0
    %2351 = vmatprep.subr.mxu0 0.0
    %2352 = vmatpush2.msra.mxu0 0.0
    %2353 = vmatprep.subr.mxu0 0.0
    %2354 = vmatpush2.msra.mxu0 0.0
    %2355 = vmatprep.subr.mxu0 0.0
    %2356 = vmatpush2.msra.mxu0 0.0
    %2357 = vmatprep.mubr.f32.mxu0 0.0
    %2358 = vmatmul.mubr.f32.gmra.mxu0 %v2291
    %v2359 = vpop.f32.mrf.mxu0
    %v2360 = vadd.f32 0.0, %v2359
    %v2361 = vpop.f32.mrf.mxu0
    %2362 = vdwg.mxu0
    %v2365 = vrot.slane %v2262, 7
    %v2366 = vsel %vm2289, %v2365, %v2261
    %v2367 = vsel %vm2235, %v2366, 0
    %2369 = vmatprep.subr.mxu0 0.0
    %2370 = vmatpush1.msra.mxu0 0.0
    %2371 = vmatprep.subr.mxu0 0.0
    %2372 = vmatpush1.msra.mxu0 0.0
    %2373 = vmatprep.subr.mxu0 0.0
    %2374 = vmatpush1.msra.mxu0 0.0
    %2375 = vmatprep.subr.mxu0 0.0
    %2376 = vmatpush1.msra.mxu0 0.0
    %2377 = vmatprep.subr.mxu0 0.0
    %2378 = vmatpush1.msra.mxu0 0.0
    %2379 = vmatprep.subr.mxu0 0.0
    %2380 = vmatpush1.msra.mxu0 0.0
    %2381 = vmatprep.subr.mxu0 0.0
    %2382 = vmatpush1.msra.mxu0 %v2272
    %2383 = vmatprep.subr.mxu0 0.0
    %2384 = vmatpush1.msra.mxu0 %v2271
    %2385 = vmatprep.subr.mxu0 0.0
    %2386 = vmatpush1.msra.mxu0 %v2270
    %2387 = vmatprep.subr.mxu0 0.0
    %2388 = vmatpush1.msra.mxu0 %v2269
    %2389 = vmatprep.subr.mxu0 0.0
    %2390 = vmatpush1.msra.mxu0 %v2268
    %2391 = vmatprep.subr.mxu0 0.0
    %2392 = vmatpush1.msra.mxu0 %v2267
    %2393 = vmatprep.subr.mxu0 0.0
    %2394 = vmatpush1.msra.mxu0 %v2266
    %2395 = vmatprep.subr.mxu0 0.0
    %2396 = vmatpush1.msra.mxu0 %v2265
    %2397 = vmatprep.subr.mxu0 0.0
    %2398 = vmatpush1.msra.mxu0 %v2264
    %2399 = vmatprep.subr.mxu0 0.0
    %2400 = vmatpush1.msra.mxu0 %v2263
    %2401 = vmatprep.subr.mxu0 0.0
    %2402 = vmatpush2.msra.mxu0 0.0
    %2403 = vmatprep.subr.mxu0 0.0
    %2404 = vmatpush2.msra.mxu0 0.0
    %2405 = vmatprep.subr.mxu0 0.0
    %2406 = vmatpush2.msra.mxu0 0.0
    %2407 = vmatprep.subr.mxu0 0.0
    %2408 = vmatpush2.msra.mxu0 0.0
    %2409 = vmatprep.subr.mxu0 0.0
    %2410 = vmatpush2.msra.mxu0 0.0
    %2411 = vmatprep.subr.mxu0 0.0
    %2412 = vmatpush2.msra.mxu0 0.0
    %2413 = vmatprep.subr.mxu0 0.0
    %2414 = vmatpush2.msra.mxu0 0.0
    %2415 = vmatprep.subr.mxu0 0.0
    %2416 = vmatpush2.msra.mxu0 0.0
    %2417 = vmatprep.subr.mxu0 0.0
    %2418 = vmatpush2.msra.mxu0 0.0
    %2419 = vmatprep.subr.mxu0 0.0
    %2420 = vmatpush2.msra.mxu0 0.0
    %2421 = vmatprep.subr.mxu0 0.0
    %2422 = vmatpush2.msra.mxu0 0.0
    %2423 = vmatprep.subr.mxu0 0.0
    %2424 = vmatpush2.msra.mxu0 0.0
    %2425 = vmatprep.subr.mxu0 0.0
    %2426 = vmatpush2.msra.mxu0 0.0
    %2427 = vmatprep.subr.mxu0 0.0
    %2428 = vmatpush2.msra.mxu0 0.0
    %2429 = vmatprep.subr.mxu0 0.0
    %2430 = vmatpush2.msra.mxu0 0.0
    %2431 = vmatprep.subr.mxu0 0.0
    %2432 = vmatpush2.msra.mxu0 0.0
    %2433 = vmatprep.mubr.f32.mxu0 0.0
    %2434 = vmatmul.mubr.f32.gmra.mxu0 %v2367
    %v2435 = vpop.f32.mrf.mxu0
    %v2436 = vadd.f32 %v2360, %v2435
    %v2437 = vpop.f32.mrf.mxu0
    %2438 = vdwg.mxu0
    %v2439 = vld [vmem:[#allocation5 + $0x2] sm:$0x1]
    %v2440 = vld [vmem:[#allocation5 + $0x6] sm:$0x1]
    %s2441 = scalar_lea.vmem %s5, 160
    %v2442 = vld [vmem:[%s2441] sm:$0xff]
    %v2443 = vld [vmem:[%s2441 + $0x8] sm:$0xff]
    %v2444 = vld [vmem:[%s2441 + $0x10] sm:$0xff]
    %v2445 = vld [vmem:[%s2441 + $0x18] sm:$0xff]
    %v2446 = vld [vmem:[%s2441 + $0x20] sm:$0xff]
    %v2447 = vld [vmem:[%s2441 + $0x28] sm:$0xff]
    %v2448 = vld [vmem:[%s2441 + $0x30] sm:$0xff]
    %v2449 = vld [vmem:[%s2441 + $0x38] sm:$0xff]
    %v2450 = vld [vmem:[%s2441 + $0x40] sm:$0xff]
    %v2451 = vld [vmem:[%s2441 + $0x48] sm:$0xff]
    %v2454 = vrot.slane %v2440, 7
    %v2455 = vsel %vm2289, %v2454, %v2439
    %v2456 = vsel %vm2235, %v2455, 0
    %2458 = vmatprep.subr.mxu0 0.0
    %2459 = vmatpush1.msra.mxu0 0.0
    %2460 = vmatprep.subr.mxu0 0.0
    %2461 = vmatpush1.msra.mxu0 0.0
    %2462 = vmatprep.subr.mxu0 0.0
    %2463 = vmatpush1.msra.mxu0 0.0
    %2464 = vmatprep.subr.mxu0 0.0
    %2465 = vmatpush1.msra.mxu0 0.0
    %2466 = vmatprep.subr.mxu0 0.0
    %2467 = vmatpush1.msra.mxu0 0.0
    %2468 = vmatprep.subr.mxu0 0.0
    %2469 = vmatpush1.msra.mxu0 0.0
    %2470 = vmatprep.subr.mxu0 0.0
    %2471 = vmatpush1.msra.mxu0 %v2451
    %2472 = vmatprep.subr.mxu0 0.0
    %2473 = vmatpush1.msra.mxu0 %v2450
    %2474 = vmatprep.subr.mxu0 0.0
    %2475 = vmatpush1.msra.mxu0 %v2449
    %2476 = vmatprep.subr.mxu0 0.0
    %2477 = vmatpush1.msra.mxu0 %v2448
    %2478 = vmatprep.subr.mxu0 0.0
    %2479 = vmatpush1.msra.mxu0 %v2447
    %2480 = vmatprep.subr.mxu0 0.0
    %2481 = vmatpush1.msra.mxu0 %v2446
    %2482 = vmatprep.subr.mxu0 0.0
    %2483 = vmatpush1.msra.mxu0 %v2445
    %2484 = vmatprep.subr.mxu0 0.0
    %2485 = vmatpush1.msra.mxu0 %v2444
    %2486 = vmatprep.subr.mxu0 0.0
    %2487 = vmatpush1.msra.mxu0 %v2443
    %2488 = vmatprep.subr.mxu0 0.0
    %2489 = vmatpush1.msra.mxu0 %v2442
    %2490 = vmatprep.subr.mxu0 0.0
    %2491 = vmatpush2.msra.mxu0 0.0
    %2492 = vmatprep.subr.mxu0 0.0
    %2493 = vmatpush2.msra.mxu0 0.0
    %2494 = vmatprep.subr.mxu0 0.0
    %2495 = vmatpush2.msra.mxu0 0.0
    %2496 = vmatprep.subr.mxu0 0.0
    %2497 = vmatpush2.msra.mxu0 0.0
    %2498 = vmatprep.subr.mxu0 0.0
    %2499 = vmatpush2.msra.mxu0 0.0
    %2500 = vmatprep.subr.mxu0 0.0
    %2501 = vmatpush2.msra.mxu0 0.0
    %2502 = vmatprep.subr.mxu0 0.0
    %2503 = vmatpush2.msra.mxu0 0.0
    %2504 = vmatprep.subr.mxu0 0.0
    %2505 = vmatpush2.msra.mxu0 0.0
    %2506 = vmatprep.subr.mxu0 0.0
    %2507 = vmatpush2.msra.mxu0 0.0
    %2508 = vmatprep.subr.mxu0 0.0
    %2509 = vmatpush2.msra.mxu0 0.0
    %2510 = vmatprep.subr.mxu0 0.0
    %2511 = vmatpush2.msra.mxu0 0.0
    %2512 = vmatprep.subr.mxu0 0.0
    %2513 = vmatpush2.msra.mxu0 0.0
    %2514 = vmatprep.subr.mxu0 0.0
    %2515 = vmatpush2.msra.mxu0 0.0
    %2516 = vmatprep.subr.mxu0 0.0
    %2517 = vmatpush2.msra.mxu0 0.0
    %2518 = vmatprep.subr.mxu0 0.0
    %2519 = vmatpush2.msra.mxu0 0.0
    %2520 = vmatprep.subr.mxu0 0.0
    %2521 = vmatpush2.msra.mxu0 0.0
    %2522 = vmatprep.mubr.f32.mxu0 0.0
    %2523 = vmatmul.mubr.f32.gmra.mxu0 %v2456
    %v2524 = vpop.f32.mrf.mxu0
    %v2525 = vadd.f32 0.0, %v2524
    %v2526 = vpop.f32.mrf.mxu0
    %2527 = vdwg.mxu0
    %v2528 = vadd.f32 %v2436, %v2525
    %v2529 = vld [vmem:[#allocation5 + $0x3] sm:$0x1]
    %v2530 = vld [vmem:[#allocation5 + $0x7] sm:$0x1]
    %s2531 = scalar_lea.vmem %s5, 240
    %v2532 = vld [vmem:[%s2531] sm:$0xff]
    %v2533 = vld [vmem:[%s2531 + $0x8] sm:$0xff]
    %v2534 = vld [vmem:[%s2531 + $0x10] sm:$0xff]
    %v2535 = vld [vmem:[%s2531 + $0x18] sm:$0xff]
    %v2536 = vld [vmem:[%s2531 + $0x20] sm:$0xff]
    %v2537 = vld [vmem:[%s2531 + $0x28] sm:$0xff]
    %v2538 = vld [vmem:[%s2531 + $0x30] sm:$0xff]
    %v2539 = vld [vmem:[%s2531 + $0x38] sm:$0xff]
    %v2540 = vld [vmem:[%s2531 + $0x40] sm:$0xff]
    %v2541 = vld [vmem:[%s2531 + $0x48] sm:$0xff]
    %v2544 = vrot.slane %v2530, 7
    %v2545 = vsel %vm2289, %v2544, %v2529
    %v2546 = vsel %vm2235, %v2545, 0
    %2548 = vmatprep.subr.mxu0 0.0
    %2549 = vmatpush1.msra.mxu0 0.0
    %2550 = vmatprep.subr.mxu0 0.0
    %2551 = vmatpush1.msra.mxu0 0.0
    %2552 = vmatprep.subr.mxu0 0.0
    %2553 = vmatpush1.msra.mxu0 0.0
    %2554 = vmatprep.subr.mxu0 0.0
    %2555 = vmatpush1.msra.mxu0 0.0
    %2556 = vmatprep.subr.mxu0 0.0
    %2557 = vmatpush1.msra.mxu0 0.0
    %2558 = vmatprep.subr.mxu0 0.0
    %2559 = vmatpush1.msra.mxu0 0.0
    %2560 = vmatprep.subr.mxu0 0.0
    %2561 = vmatpush1.msra.mxu0 %v2541
    %2562 = vmatprep.subr.mxu0 0.0
    %2563 = vmatpush1.msra.mxu0 %v2540
    %2564 = vmatprep.subr.mxu0 0.0
    %2565 = vmatpush1.msra.mxu0 %v2539
    %2566 = vmatprep.subr.mxu0 0.0
    %2567 = vmatpush1.msra.mxu0 %v2538
    %2568 = vmatprep.subr.mxu0 0.0
    %2569 = vmatpush1.msra.mxu0 %v2537
    %2570 = vmatprep.subr.mxu0 0.0
    %2571 = vmatpush1.msra.mxu0 %v2536
    %2572 = vmatprep.subr.mxu0 0.0
    %2573 = vmatpush1.msra.mxu0 %v2535
    %2574 = vmatprep.subr.mxu0 0.0
    %2575 = vmatpush1.msra.mxu0 %v2534
    %2576 = vmatprep.subr.mxu0 0.0
    %2577 = vmatpush1.msra.mxu0 %v2533
    %2578 = vmatprep.subr.mxu0 0.0
    %2579 = vmatpush1.msra.mxu0 %v2532
    %2580 = vmatprep.subr.mxu0 0.0
    %2581 = vmatpush2.msra.mxu0 0.0
    %2582 = vmatprep.subr.mxu0 0.0
    %2583 = vmatpush2.msra.mxu0 0.0
    %2584 = vmatprep.subr.mxu0 0.0
    %2585 = vmatpush2.msra.mxu0 0.0
    %2586 = vmatprep.subr.mxu0 0.0
    %2587 = vmatpush2.msra.mxu0 0.0
    %2588 = vmatprep.subr.mxu0 0.0
    %2589 = vmatpush2.msra.mxu0 0.0
    %2590 = vmatprep.subr.mxu0 0.0
    %2591 = vmatpush2.msra.mxu0 0.0
    %2592 = vmatprep.subr.mxu0 0.0
    %2593 = vmatpush2.msra.mxu0 0.0
    %2594 = vmatprep.subr.mxu0 0.0
    %2595 = vmatpush2.msra.mxu0 0.0
    %2596 = vmatprep.subr.mxu0 0.0
    %2597 = vmatpush2.msra.mxu0 0.0
    %2598 = vmatprep.subr.mxu0 0.0
    %2599 = vmatpush2.msra.mxu0 0.0
    %2600 = vmatprep.subr.mxu0 0.0
    %2601 = vmatpush2.msra.mxu0 0.0
    %2602 = vmatprep.subr.mxu0 0.0
    %2603 = vmatpush2.msra.mxu0 0.0
    %2604 = vmatprep.subr.mxu0 0.0
    %2605 = vmatpush2.msra.mxu0 0.0
    %2606 = vmatprep.subr.mxu0 0.0
    %2607 = vmatpush2.msra.mxu0 0.0
    %2608 = vmatprep.subr.mxu0 0.0
    %2609 = vmatpush2.msra.mxu0 0.0
    %2610 = vmatprep.subr.mxu0 0.0
    %2611 = vmatpush2.msra.mxu0 0.0
    %2612 = vmatprep.mubr.f32.mxu0 0.0
    %2613 = vmatmul.mubr.f32.gmra.mxu0 %v2546
    %v2614 = vpop.f32.mrf.mxu0
    %v2615 = vadd.f32 0.0, %v2614
    %v2616 = vpop.f32.mrf.mxu0
    %2617 = vdwg.mxu0
    %v2618 = vadd.f32 %v2528, %v2615
    %v2619 = vld [vmem:[%s6] sm:$0x1]
    %v2621 = vlaneseq
    %v2622 = vshrl.u32 %v2621, 7
    %v2623 = vsub.s32 0, %v2622
    %v2624 = vrot.slane %v2619, %v2623
    %v2626 = vadd.f32 %v2618, %v2624
    %v2627 = vmax.f32 %v2626, 0.0
    %v2628 = vld [vmem:[%s7] sm:$0xff]
    %v2629 = vld [vmem:[%s7 + $0x8] sm:$0xff]
    %v2630 = vld [vmem:[%s7 + $0x10] sm:$0xff]
    %v2631 = vld [vmem:[%s7 + $0x18] sm:$0xff]
    %v2632 = vld [vmem:[%s7 + $0x20] sm:$0xff]
    %v2633 = vld [vmem:[%s7 + $0x28] sm:$0xff]
    %v2634 = vld [vmem:[%s7 + $0x30] sm:$0x3]
    %v2635 = vld [vmem:[%s8] sm:$0x1]
    %v2637 = vlaneseq
    %v2638 = vshrl.u32 %v2637, 7
    %v2639 = vsub.s32 0, %v2638
    %v2640 = vrot.slane %v2635, %v2639
    %vm2642 = vcmask 408576
    %v2644 = vsel %vm2642, %v2627, 0
    %vm2646 = vcmask 1041408
    %v2648 = vsel %vm2646, %v2634, 0
    %2650 = vmatprep.subr.mxu0 0.0
    %2651 = vmatpush1.msra.mxu0 0.0
    %2652 = vmatprep.subr.mxu0 0.0
    %2653 = vmatpush1.msra.mxu0 0.0
    %2654 = vmatprep.subr.mxu0 0.0
    %2655 = vmatpush1.msra.mxu0 0.0
    %2656 = vmatprep.subr.mxu0 0.0
    %2657 = vmatpush1.msra.mxu0 0.0
    %2658 = vmatprep.subr.mxu0 0.0
    %2659 = vmatpush1.msra.mxu0 0.0
    %2660 = vmatprep.subr.mxu0 0.0
    %2661 = vmatpush1.msra.mxu0 0.0
    %2662 = vmatprep.subr.mxu0 0.0
    %2663 = vmatpush1.msra.mxu0 0.0
    %2664 = vmatprep.subr.mxu0 0.0
    %2665 = vmatpush1.msra.mxu0 0.0
    %2666 = vmatprep.subr.mxu0 0.0
    %2667 = vmatpush1.msra.mxu0 0.0
    %2668 = vmatprep.subr.mxu0 0.0
    %2669 = vmatpush1.msra.mxu0 %v2648
    %2670 = vmatprep.subr.mxu0 0.0
    %2671 = vmatpush1.msra.mxu0 %v2633
    %2672 = vmatprep.subr.mxu0 0.0
    %2673 = vmatpush1.msra.mxu0 %v2632
    %2674 = vmatprep.subr.mxu0 0.0
    %2675 = vmatpush1.msra.mxu0 %v2631
    %2676 = vmatprep.subr.mxu0 0.0
    %2677 = vmatpush1.msra.mxu0 %v2630
    %2678 = vmatprep.subr.mxu0 0.0
    %2679 = vmatpush1.msra.mxu0 %v2629
    %2680 = vmatprep.subr.mxu0 0.0
    %2681 = vmatpush1.msra.mxu0 %v2628
    %2682 = vmatprep.subr.mxu0 0.0
    %2683 = vmatpush2.msra.mxu0 0.0
    %2684 = vmatprep.subr.mxu0 0.0
    %2685 = vmatpush2.msra.mxu0 0.0
    %2686 = vmatprep.subr.mxu0 0.0
    %2687 = vmatpush2.msra.mxu0 0.0
    %2688 = vmatprep.subr.mxu0 0.0
    %2689 = vmatpush2.msra.mxu0 0.0
    %2690 = vmatprep.subr.mxu0 0.0
    %2691 = vmatpush2.msra.mxu0 0.0
    %2692 = vmatprep.subr.mxu0 0.0
    %2693 = vmatpush2.msra.mxu0 0.0
    %2694 = vmatprep.subr.mxu0 0.0
    %2695 = vmatpush2.msra.mxu0 0.0
    %2696 = vmatprep.subr.mxu0 0.0
    %2697 = vmatpush2.msra.mxu0 0.0
    %2698 = vmatprep.subr.mxu0 0.0
    %2699 = vmatpush2.msra.mxu0 0.0
    %2700 = vmatprep.subr.mxu0 0.0
    %2701 = vmatpush2.msra.mxu0 0.0
    %2702 = vmatprep.subr.mxu0 0.0
    %2703 = vmatpush2.msra.mxu0 0.0
    %2704 = vmatprep.subr.mxu0 0.0
    %2705 = vmatpush2.msra.mxu0 0.0
    %2706 = vmatprep.subr.mxu0 0.0
    %2707 = vmatpush2.msra.mxu0 0.0
    %2708 = vmatprep.subr.mxu0 0.0
    %2709 = vmatpush2.msra.mxu0 0.0
    %2710 = vmatprep.subr.mxu0 0.0
    %2711 = vmatpush2.msra.mxu0 0.0
    %2712 = vmatprep.subr.mxu0 0.0
    %2713 = vmatpush2.msra.mxu0 0.0
    %2714 = vmatprep.mubr.f32.mxu0 0.0
    %2715 = vmatmul.mubr.f32.gmra.mxu0 %v2644
    %v2716 = vpop.f32.mrf.mxu0
    %v2717 = vadd.f32 %v2640, %v2716
    %v2718 = vpop.f32.mrf.mxu0
    %2719 = vdwg.mxu0
    %vm2720 = vcmask 74752
    %2721 = vst.msk [vmem:[#allocation6] sm:$0x3] %vm2720, %v2717
    // Predicated region
    $region38: #{net_forward.1} parent=1 // pred_check
      _
    $region39: #{net_forward.1} parent=1 // pred_check_branch
      %2723 = sbr.rel (0) target = $region41
    $region40: #{net_forward.1} parent=1 // pred_region
      %s2725 = ssub.s32 32, 32
      %2726 = vsyncadd [#allocation7], %s2725
      %s2728 = sshll.u32 [#allocation6], 4
      %s2729 = int_to_ptr.vmem [resolvable:$true] %s2728
      %2731 = dma.vmem_to_hbm [thread:$0]  %s2729, 32, %s9, [#allocation7]
    $region41: #{net_forward.1} parent=1 // pred_fallthru
      _
    // Predicated region
    $region42: #{net_forward.1} parent=1 // pred_check
      _
    $region43: #{net_forward.1} parent=1 // pred_check_branch
      %2733 = sbr.rel (0) target = $region45
    $region44: #{net_forward.1} parent=1 // pred_region
      %2734 = dma.done [#allocation7], 32
    $region45: #{net_forward.1} parent=1 // pred_fallthru
      _
    %2735 = vsyncpa [#allocation7], 1

</llo_original>
